<compile_context>
chip_gen: v7x
topology: tpu7x:2x2x1
jax: 0.10.0
libtpu: 0.0.40
codegen_flags: <defaults>
</compile_context>

<pallas_src>
import functools

import jax
import jax.numpy as jnp
import numpy as np
from jax.experimental import pallas as pl
from jax.experimental.pallas import tpu as pltpu

EPS = 1e-5  # nn.LayerNorm default eps


# --------------------------- fused Pallas kernel -----------------------------

def encoder_kernel(x_ref, c1_ref, c2_ref,
                   fcw_ref, fcb_ref,
                   w1_ref, b1_ref, g1_ref, beta1_ref,
                   w2_ref, b2_ref, g2_ref, beta2_ref,
                   out_ref, att_ref,
                   *, num_heads, emb_size):
    n = x_ref.shape[0]
    e = emb_size
    d = e // num_heads
    scaling = jnp.float32(emb_size ** 0.5)

    # --- FeedForwardBlock: ReLU(x @ W + b); Dropout(p=0) is identity ----------
    embs = jnp.dot(x_ref[...], fcw_ref[...], preferred_element_type=jnp.float32)
    embs = jnp.maximum(embs + fcb_ref[...], 0.0)

    def mhla(h_act, cnt, w_ref, b_ref):
        # fused QKV projection: (n, 3e) in one lane-dense matmul
        qkv = jnp.dot(h_act, w_ref[...], preferred_element_type=jnp.float32)
        qkv = qkv + b_ref[...]
        q = qkv[:, :e]
        k = qkv[:, e:2 * e]
        v = qkv[:, 2 * e:]

        has = cnt > 0.0                       # (n, n) neighbourhood membership
        out_parts = []
        attsum = jnp.zeros((n, 1), jnp.float32)
        for hh in range(num_heads):           # static unroll, all 2-D ops
            sl = slice(hh * d, (hh + 1) * d)
            qh, kh, vh = q[:, sl], k[:, sl], v[:, sl]
            # energies against ALL key positions for this head: (n, n)
            en = jax.lax.dot_general(qh, kh, (((1,), (1,)), ((), ())),
                                     preferred_element_type=jnp.float32)
            en = jnp.where(has, en, jnp.float32(-1e30))   # restrict to local set
            m = jnp.max(en, axis=-1, keepdims=True)
            # duplicate neighbour indices accumulate via the counts matrix
            p = cnt * jnp.exp(en - m)
            denom = jnp.sum(p, axis=-1, keepdims=True)
            # softmax denominator and post-softmax /sqrt(emb) in one reciprocal
            inv = pl.reciprocal(denom * scaling, approx=True)
            att = p * inv                                   # (n, n)
            out_parts.append(jnp.dot(att, vh,
                                     preferred_element_type=jnp.float32))
            attsum = attsum + denom * inv                   # = sum_k att[i, k]
        return jnp.concatenate(out_parts, axis=-1), attsum  # (n, e), (n, 1)

    def add_ln(y, res, g, b):
        z = y + res
        mu = jnp.mean(z, axis=-1, keepdims=True)
        c = z - mu
        var = jnp.mean(c * c, axis=-1, keepdims=True)
        return c * jax.lax.rsqrt(var + EPS) * g + b

    blk1, _ = mhla(embs, c1_ref[...], w1_ref, b1_ref)
    h1 = add_ln(blk1, embs, g1_ref[...], beta1_ref[...])
    blk2, att2 = mhla(h1, c2_ref[...], w2_ref, b2_ref)
    h2 = add_ln(blk2, h1, g2_ref[...], beta2_ref[...])

    out_ref[...] = h2
    att_ref[...] = att2


# --------------------------- wrapper -----------------------------------------

def make_counts(a_idx, n):
    """counts[i, k] = #{j : a_idx[i, j] == k}.  a_idx: (n, N) int32 -> (n, n) f32."""
    eq = a_idx[:, :, None] == jnp.arange(n, dtype=a_idx.dtype)[None, None, :]
    return jnp.sum(eq.astype(jnp.float32), axis=1)


def local_transformer_encoder(x, a, params, *, num_heads):
    """x: (1, n, input_emb) f32 ; a: (1, n, N) int32.  Returns ((1,n,emb), (n,1))."""
    b, n, _ = x.shape
    assert b == 1, "PyTorch reference semantics (torch.squeeze on A) require batch == 1"
    emb = params["fc_w"].shape[1]
    x2, a2 = x[0], a[0]

    # precomputed neighbour-count matrices (one per MHLA block)
    c1 = make_counts(a2[:, :16], n)
    c2 = make_counts(a2[:, :64], n)

    vmem = pl.BlockSpec(memory_space=pltpu.MemorySpace.VMEM)
    out, att2 = pl.pallas_call(
        functools.partial(encoder_kernel, num_heads=num_heads, emb_size=emb),
        out_shape=(jax.ShapeDtypeStruct((n, emb), jnp.float32),
                   jax.ShapeDtypeStruct((n, 1), jnp.float32)),
        in_specs=[vmem] * 13,
        out_specs=(vmem, vmem),
    )(x2, c1, c2,
      params["fc_w"], params["fc_b"].reshape(1, emb),
      params["mhla1"]["wqkv"], params["mhla1"]["bqkv"].reshape(1, 3 * emb),
      params["ln1_g"].reshape(1, emb), params["ln1_b"].reshape(1, emb),
      params["mhla2"]["wqkv"], params["mhla2"]["bqkv"].reshape(1, 3 * emb),
      params["ln2_g"].reshape(1, emb), params["ln2_b"].reshape(1, emb))
    return out[None], att2


# --------------------------- plain-JAX reference -----------------------------

def _ref_mhla(x, a_idx, p, *, num_heads, emb_size):
    n, e = x.shape
    d = e // num_heads
    scaling = emb_size ** 0.5
    qkv = x @ p["wqkv"] + p["bqkv"]
    q = qkv[:, :e].reshape(n, num_heads, d).transpose(1, 0, 2)
    k = qkv[:, e:2 * e].reshape(n, num_heads, d).transpose(1, 0, 2)
    v = qkv[:, 2 * e:].reshape(n, num_heads, d).transpose(1, 0, 2)
    outs, atts = [], []
    for i in range(n):
        lk = k[:, a_idx[i], :]
        lv = v[:, a_idx[i], :]
        en = jnp.einsum("hd,hkd->hk", q[:, i, :], lk)
        att = jax.nn.softmax(en, axis=-1) / scaling
        atts.append(jnp.sum(att))
        outs.append(jnp.einsum("hk,hkd->hd", att, lv).reshape(e))
    return jnp.stack(outs, 0), jnp.stack(atts).reshape(n, 1)


def _ref_ln(x, g, b):
    mu = jnp.mean(x, -1, keepdims=True)
    var = jnp.mean((x - mu) ** 2, -1, keepdims=True)
    return (x - mu) / jnp.sqrt(var + EPS) * g + b


def ref_encoder(x, a, params, *, num_heads):
    emb = params["fc_w"].shape[1]
    x2, a2 = x[0], a[0]
    embs = jax.nn.relu(x2 @ params["fc_w"] + params["fc_b"])
    b1, _ = _ref_mhla(embs, a2[:, :16], params["mhla1"], num_heads=num_heads, emb_size=emb)
    b1 = _ref_ln(b1 + embs, params["ln1_g"], params["ln1_b"])
    b2, att2 = _ref_mhla(b1, a2[:, :64], params["mhla2"], num_heads=num_heads, emb_size=emb)
    b2 = _ref_ln(b2 + b1, params["ln2_g"], params["ln2_b"])
    return b2[None], att2


# --------------------------- parameter init ----------------------------------

def init_params(key, input_emb, emb):
    def w(k, shape, scale):
        return jax.random.normal(k, shape, jnp.float32) * scale

    def mhla_params(k):
        k1, k2 = jax.random.split(k)
        s = 1.0 / np.sqrt(emb)
        # fused [q | k | v] projection
        return dict(wqkv=w(k1, (emb, 3 * emb), s), bqkv=w(k2, (3 * emb,), 0.02))

    ks = jax.random.split(key, 8)
    return dict(
        fc_w=w(ks[0], (input_emb, emb), 1.0 / np.sqrt(input_emb)),
        fc_b=w(ks[1], (emb,), 0.02),
        mhla1=mhla_params(ks[2]),
        mhla2=mhla_params(ks[3]),
        ln1_g=1.0 + w(ks[4], (emb,), 0.1),
        ln1_b=w(ks[5], (emb,), 0.1),
        ln2_g=1.0 + w(ks[6], (emb,), 0.1),
        ln2_b=w(ks[7], (emb,), 0.1),
    )


# --------------------------- main ---------------------------------------------

if __name__ == "__main__":
    B, n_patches, input_emb, emb, num_heads, n_nbrs = 1, 16, 128, 64, 8, 64

    key = jax.random.PRNGKey(0)
    kx, ka, kp = jax.random.split(key, 3)
    x = jax.random.normal(kx, (B, n_patches, input_emb), jnp.float32)
    A = jax.random.randint(ka, (B, n_patches, n_nbrs), 0, n_patches, dtype=jnp.int32)
    params = init_params(kp, input_emb, emb)

    fwd = jax.jit(functools.partial(local_transformer_encoder, num_heads=num_heads))
    out, att2 = fwd(x, A, params)
    jax.block_until_ready((out, att2))

    ref_out, ref_att2 = ref_encoder(x, A, params, num_heads=num_heads)
    assert out.shape == (B, n_patches, emb) and att2.shape == (n_patches, B)
    np.testing.assert_allclose(np.asarray(out), np.asarray(ref_out), rtol=2e-2, atol=2e-2)
    np.testing.assert_allclose(np.asarray(att2), np.asarray(ref_att2), rtol=2e-2, atol=2e-2)

    print("KERNEL_OK")
</pallas_src>

<mosaic_0001>
module attributes {stable_mosaic.version = 11 : i64} {
  func.func @encoder_kernel(%arg0: memref<16x128xf32, #tpu.memory_space<vmem>>, %arg1: memref<16x16xf32, #tpu.memory_space<vmem>>, %arg2: memref<16x16xf32, #tpu.memory_space<vmem>>, %arg3: memref<128x64xf32, #tpu.memory_space<vmem>>, %arg4: memref<1x64xf32, #tpu.memory_space<vmem>>, %arg5: memref<64x192xf32, #tpu.memory_space<vmem>>, %arg6: memref<1x192xf32, #tpu.memory_space<vmem>>, %arg7: memref<1x64xf32, #tpu.memory_space<vmem>>, %arg8: memref<1x64xf32, #tpu.memory_space<vmem>>, %arg9: memref<64x192xf32, #tpu.memory_space<vmem>>, %arg10: memref<1x192xf32, #tpu.memory_space<vmem>>, %arg11: memref<1x64xf32, #tpu.memory_space<vmem>>, %arg12: memref<1x64xf32, #tpu.memory_space<vmem>>, %arg13: memref<16x64xf32, #tpu.memory_space<vmem>>, %arg14: memref<16x1xf32, #tpu.memory_space<vmem>>) attributes {dimension_semantics = [], scalar_prefetch = 0 : i64, scratch_operands = 0 : i64, tpu.core_type = #tpu.core_type<tc>} {
    %c0 = arith.constant 0 : index
    %c0_0 = arith.constant 0 : index
    %0 = vector.load %arg0[%c0, %c0_0] : memref<16x128xf32, #tpu.memory_space<vmem>>, vector<16x128xf32>
    %c0_1 = arith.constant 0 : index
    %c0_2 = arith.constant 0 : index
    %1 = vector.load %arg3[%c0_1, %c0_2] : memref<128x64xf32, #tpu.memory_space<vmem>>, vector<128x64xf32>
    %cst = arith.constant dense<0.000000e+00> : vector<16x64xf32>
    %2 = tpu.matmul %0, %1, %cst {dimension_numbers = #tpu.dot_dimension_numbers<[1], [0], [0], [1], [0, 0, 1, 1], [], []>} : vector<16x128xf32>, vector<128x64xf32>, vector<16x64xf32> -> vector<16x64xf32>
    %c0_3 = arith.constant 0 : index
    %c0_4 = arith.constant 0 : index
    %3 = vector.load %arg4[%c0_3, %c0_4] : memref<1x64xf32, #tpu.memory_space<vmem>>, vector<1x64xf32>
    %4 = vector.broadcast %3 : vector<1x64xf32> to vector<16x64xf32>
    %5 = arith.addf %2, %4 : vector<16x64xf32>
    %cst_5 = arith.constant 0.000000e+00 : f32
    %6 = vector.broadcast %cst_5 : f32 to vector<16x64xf32>
    %7 = arith.maximumf %5, %6 : vector<16x64xf32>
    %c0_6 = arith.constant 0 : index
    %c0_7 = arith.constant 0 : index
    %8 = vector.load %arg1[%c0_6, %c0_7] : memref<16x16xf32, #tpu.memory_space<vmem>>, vector<16x16xf32>
    %c0_8 = arith.constant 0 : index
    %c0_9 = arith.constant 0 : index
    %9 = vector.load %arg5[%c0_8, %c0_9] : memref<64x192xf32, #tpu.memory_space<vmem>>, vector<64x192xf32>
    %cst_10 = arith.constant dense<0.000000e+00> : vector<16x192xf32>
    %10 = tpu.matmul %7, %9, %cst_10 {dimension_numbers = #tpu.dot_dimension_numbers<[1], [0], [0], [1], [0, 0, 1, 1], [], []>} : vector<16x64xf32>, vector<64x192xf32>, vector<16x192xf32> -> vector<16x192xf32>
    %c0_11 = arith.constant 0 : index
    %c0_12 = arith.constant 0 : index
    %11 = vector.load %arg6[%c0_11, %c0_12] : memref<1x192xf32, #tpu.memory_space<vmem>>, vector<1x192xf32>
    %12 = vector.broadcast %11 : vector<1x192xf32> to vector<16x192xf32>
    %13 = arith.addf %10, %12 : vector<16x192xf32>
    %14 = vector.extract_strided_slice %13 {offsets = [0, 0], sizes = [16, 64], strides = [1, 1]} : vector<16x192xf32> to vector<16x64xf32>
    %15 = vector.extract_strided_slice %13 {offsets = [0, 64], sizes = [16, 64], strides = [1, 1]} : vector<16x192xf32> to vector<16x64xf32>
    %16 = vector.extract_strided_slice %13 {offsets = [0, 128], sizes = [16, 64], strides = [1, 1]} : vector<16x192xf32> to vector<16x64xf32>
    %cst_13 = arith.constant 0.000000e+00 : f32
    %17 = vector.broadcast %cst_13 : f32 to vector<16x16xf32>
    %18 = arith.cmpf ogt, %8, %17 : vector<16x16xf32>
    %19 = vector.extract_strided_slice %14 {offsets = [0, 0], sizes = [16, 8], strides = [1, 1]} : vector<16x64xf32> to vector<16x8xf32>
    %20 = vector.extract_strided_slice %15 {offsets = [0, 0], sizes = [16, 8], strides = [1, 1]} : vector<16x64xf32> to vector<16x8xf32>
    %21 = vector.extract_strided_slice %16 {offsets = [0, 0], sizes = [16, 8], strides = [1, 1]} : vector<16x64xf32> to vector<16x8xf32>
    %cst_14 = arith.constant dense<0.000000e+00> : vector<16x16xf32>
    %22 = tpu.matmul %19, %20, %cst_14 {dimension_numbers = #tpu.dot_dimension_numbers<[1], [1], [0], [0], [0, 0, 1, 0], [], []>} : vector<16x8xf32>, vector<16x8xf32>, vector<16x16xf32> -> vector<16x16xf32>
    %cst_15 = arith.constant -1.000000e+30 : f32
    %23 = vector.broadcast %cst_15 : f32 to vector<16x16xf32>
    %24 = arith.select %18, %22, %23 : vector<16x16xi1>, vector<16x16xf32>
    %cst_16 = arith.constant dense<0xFF800000> : vector<16xf32>
    %25 = vector.multi_reduction <maximumf>, %24, %cst_16 [1] : vector<16x16xf32> to vector<16xf32>
    %26 = vector.shape_cast %25 : vector<16xf32> to vector<16x1xf32>
    %27 = vector.broadcast %26 : vector<16x1xf32> to vector<16x16xf32>
    %28 = arith.subf %24, %27 : vector<16x16xf32>
    %29 = math.exp %28 : vector<16x16xf32>
    %30 = arith.mulf %8, %29 : vector<16x16xf32>
    %cst_17 = arith.constant dense<0.000000e+00> : vector<16xf32>
    %31 = vector.multi_reduction <add>, %30, %cst_17 [1] : vector<16x16xf32> to vector<16xf32>
    %32 = vector.shape_cast %31 : vector<16xf32> to vector<16x1xf32>
    %cst_18 = arith.constant 8.000000e+00 : f32
    %33 = vector.broadcast %cst_18 : f32 to vector<16x1xf32>
    %34 = arith.mulf %32, %33 : vector<16x1xf32>
    %35 = tpu.reciprocal %34 {approx = true} : vector<16x1xf32> -> vector<16x1xf32>
    %36 = vector.broadcast %35 : vector<16x1xf32> to vector<16x16xf32>
    %37 = arith.mulf %30, %36 : vector<16x16xf32>
    %cst_19 = arith.constant dense<0.000000e+00> : vector<16x8xf32>
    %38 = tpu.matmul %37, %21, %cst_19 {dimension_numbers = #tpu.dot_dimension_numbers<[1], [0], [0], [1], [0, 0, 1, 1], [], []>} : vector<16x16xf32>, vector<16x8xf32>, vector<16x8xf32> -> vector<16x8xf32>
    %39 = vector.extract_strided_slice %14 {offsets = [0, 8], sizes = [16, 8], strides = [1, 1]} : vector<16x64xf32> to vector<16x8xf32>
    %40 = vector.extract_strided_slice %15 {offsets = [0, 8], sizes = [16, 8], strides = [1, 1]} : vector<16x64xf32> to vector<16x8xf32>
    %41 = vector.extract_strided_slice %16 {offsets = [0, 8], sizes = [16, 8], strides = [1, 1]} : vector<16x64xf32> to vector<16x8xf32>
    %cst_20 = arith.constant dense<0.000000e+00> : vector<16x16xf32>
    %42 = tpu.matmul %39, %40, %cst_20 {dimension_numbers = #tpu.dot_dimension_numbers<[1], [1], [0], [0], [0, 0, 1, 0], [], []>} : vector<16x8xf32>, vector<16x8xf32>, vector<16x16xf32> -> vector<16x16xf32>
    %cst_21 = arith.constant -1.000000e+30 : f32
    %43 = vector.broadcast %cst_21 : f32 to vector<16x16xf32>
    %44 = arith.select %18, %42, %43 : vector<16x16xi1>, vector<16x16xf32>
    %cst_22 = arith.constant dense<0xFF800000> : vector<16xf32>
    %45 = vector.multi_reduction <maximumf>, %44, %cst_22 [1] : vector<16x16xf32> to vector<16xf32>
    %46 = vector.shape_cast %45 : vector<16xf32> to vector<16x1xf32>
    %47 = vector.broadcast %46 : vector<16x1xf32> to vector<16x16xf32>
    %48 = arith.subf %44, %47 : vector<16x16xf32>
    %49 = math.exp %48 : vector<16x16xf32>
    %50 = arith.mulf %8, %49 : vector<16x16xf32>
    %cst_23 = arith.constant dense<0.000000e+00> : vector<16xf32>
    %51 = vector.multi_reduction <add>, %50, %cst_23 [1] : vector<16x16xf32> to vector<16xf32>
    %52 = vector.shape_cast %51 : vector<16xf32> to vector<16x1xf32>
    %cst_24 = arith.constant 8.000000e+00 : f32
    %53 = vector.broadcast %cst_24 : f32 to vector<16x1xf32>
    %54 = arith.mulf %52, %53 : vector<16x1xf32>
    %55 = tpu.reciprocal %54 {approx = true} : vector<16x1xf32> -> vector<16x1xf32>
    %56 = vector.broadcast %55 : vector<16x1xf32> to vector<16x16xf32>
    %57 = arith.mulf %50, %56 : vector<16x16xf32>
    %cst_25 = arith.constant dense<0.000000e+00> : vector<16x8xf32>
    %58 = tpu.matmul %57, %41, %cst_25 {dimension_numbers = #tpu.dot_dimension_numbers<[1], [0], [0], [1], [0, 0, 1, 1], [], []>} : vector<16x16xf32>, vector<16x8xf32>, vector<16x8xf32> -> vector<16x8xf32>
    %59 = vector.extract_strided_slice %14 {offsets = [0, 16], sizes = [16, 8], strides = [1, 1]} : vector<16x64xf32> to vector<16x8xf32>
    %60 = vector.extract_strided_slice %15 {offsets = [0, 16], sizes = [16, 8], strides = [1, 1]} : vector<16x64xf32> to vector<16x8xf32>
    %61 = vector.extract_strided_slice %16 {offsets = [0, 16], sizes = [16, 8], strides = [1, 1]} : vector<16x64xf32> to vector<16x8xf32>
    %cst_26 = arith.constant dense<0.000000e+00> : vector<16x16xf32>
    %62 = tpu.matmul %59, %60, %cst_26 {dimension_numbers = #tpu.dot_dimension_numbers<[1], [1], [0], [0], [0, 0, 1, 0], [], []>} : vector<16x8xf32>, vector<16x8xf32>, vector<16x16xf32> -> vector<16x16xf32>
    %cst_27 = arith.constant -1.000000e+30 : f32
    %63 = vector.broadcast %cst_27 : f32 to vector<16x16xf32>
    %64 = arith.select %18, %62, %63 : vector<16x16xi1>, vector<16x16xf32>
    %cst_28 = arith.constant dense<0xFF800000> : vector<16xf32>
    %65 = vector.multi_reduction <maximumf>, %64, %cst_28 [1] : vector<16x16xf32> to vector<16xf32>
    %66 = vector.shape_cast %65 : vector<16xf32> to vector<16x1xf32>
    %67 = vector.broadcast %66 : vector<16x1xf32> to vector<16x16xf32>
    %68 = arith.subf %64, %67 : vector<16x16xf32>
    %69 = math.exp %68 : vector<16x16xf32>
    %70 = arith.mulf %8, %69 : vector<16x16xf32>
    %cst_29 = arith.constant dense<0.000000e+00> : vector<16xf32>
    %71 = vector.multi_reduction <add>, %70, %cst_29 [1] : vector<16x16xf32> to vector<16xf32>
    %72 = vector.shape_cast %71 : vector<16xf32> to vector<16x1xf32>
    %cst_30 = arith.constant 8.000000e+00 : f32
    %73 = vector.broadcast %cst_30 : f32 to vector<16x1xf32>
    %74 = arith.mulf %72, %73 : vector<16x1xf32>
    %75 = tpu.reciprocal %74 {approx = true} : vector<16x1xf32> -> vector<16x1xf32>
    %76 = vector.broadcast %75 : vector<16x1xf32> to vector<16x16xf32>
    %77 = arith.mulf %70, %76 : vector<16x16xf32>
    %cst_31 = arith.constant dense<0.000000e+00> : vector<16x8xf32>
    %78 = tpu.matmul %77, %61, %cst_31 {dimension_numbers = #tpu.dot_dimension_numbers<[1], [0], [0], [1], [0, 0, 1, 1], [], []>} : vector<16x16xf32>, vector<16x8xf32>, vector<16x8xf32> -> vector<16x8xf32>
    %79 = vector.extract_strided_slice %14 {offsets = [0, 24], sizes = [16, 8], strides = [1, 1]} : vector<16x64xf32> to vector<16x8xf32>
    %80 = vector.extract_strided_slice %15 {offsets = [0, 24], sizes = [16, 8], strides = [1, 1]} : vector<16x64xf32> to vector<16x8xf32>
    %81 = vector.extract_strided_slice %16 {offsets = [0, 24], sizes = [16, 8], strides = [1, 1]} : vector<16x64xf32> to vector<16x8xf32>
    %cst_32 = arith.constant dense<0.000000e+00> : vector<16x16xf32>
    %82 = tpu.matmul %79, %80, %cst_32 {dimension_numbers = #tpu.dot_dimension_numbers<[1], [1], [0], [0], [0, 0, 1, 0], [], []>} : vector<16x8xf32>, vector<16x8xf32>, vector<16x16xf32> -> vector<16x16xf32>
    %cst_33 = arith.constant -1.000000e+30 : f32
    %83 = vector.broadcast %cst_33 : f32 to vector<16x16xf32>
    %84 = arith.select %18, %82, %83 : vector<16x16xi1>, vector<16x16xf32>
    %cst_34 = arith.constant dense<0xFF800000> : vector<16xf32>
    %85 = vector.multi_reduction <maximumf>, %84, %cst_34 [1] : vector<16x16xf32> to vector<16xf32>
    %86 = vector.shape_cast %85 : vector<16xf32> to vector<16x1xf32>
    %87 = vector.broadcast %86 : vector<16x1xf32> to vector<16x16xf32>
    %88 = arith.subf %84, %87 : vector<16x16xf32>
    %89 = math.exp %88 : vector<16x16xf32>
    %90 = arith.mulf %8, %89 : vector<16x16xf32>
    %cst_35 = arith.constant dense<0.000000e+00> : vector<16xf32>
    %91 = vector.multi_reduction <add>, %90, %cst_35 [1] : vector<16x16xf32> to vector<16xf32>
    %92 = vector.shape_cast %91 : vector<16xf32> to vector<16x1xf32>
    %cst_36 = arith.constant 8.000000e+00 : f32
    %93 = vector.broadcast %cst_36 : f32 to vector<16x1xf32>
    %94 = arith.mulf %92, %93 : vector<16x1xf32>
    %95 = tpu.reciprocal %94 {approx = true} : vector<16x1xf32> -> vector<16x1xf32>
    %96 = vector.broadcast %95 : vector<16x1xf32> to vector<16x16xf32>
    %97 = arith.mulf %90, %96 : vector<16x16xf32>
    %cst_37 = arith.constant dense<0.000000e+00> : vector<16x8xf32>
    %98 = tpu.matmul %97, %81, %cst_37 {dimension_numbers = #tpu.dot_dimension_numbers<[1], [0], [0], [1], [0, 0, 1, 1], [], []>} : vector<16x16xf32>, vector<16x8xf32>, vector<16x8xf32> -> vector<16x8xf32>
    %99 = vector.extract_strided_slice %14 {offsets = [0, 32], sizes = [16, 8], strides = [1, 1]} : vector<16x64xf32> to vector<16x8xf32>
    %100 = vector.extract_strided_slice %15 {offsets = [0, 32], sizes = [16, 8], strides = [1, 1]} : vector<16x64xf32> to vector<16x8xf32>
    %101 = vector.extract_strided_slice %16 {offsets = [0, 32], sizes = [16, 8], strides = [1, 1]} : vector<16x64xf32> to vector<16x8xf32>
    %cst_38 = arith.constant dense<0.000000e+00> : vector<16x16xf32>
    %102 = tpu.matmul %99, %100, %cst_38 {dimension_numbers = #tpu.dot_dimension_numbers<[1], [1], [0], [0], [0, 0, 1, 0], [], []>} : vector<16x8xf32>, vector<16x8xf32>, vector<16x16xf32> -> vector<16x16xf32>
    %cst_39 = arith.constant -1.000000e+30 : f32
    %103 = vector.broadcast %cst_39 : f32 to vector<16x16xf32>
    %104 = arith.select %18, %102, %103 : vector<16x16xi1>, vector<16x16xf32>
    %cst_40 = arith.constant dense<0xFF800000> : vector<16xf32>
    %105 = vector.multi_reduction <maximumf>, %104, %cst_40 [1] : vector<16x16xf32> to vector<16xf32>
    %106 = vector.shape_cast %105 : vector<16xf32> to vector<16x1xf32>
    %107 = vector.broadcast %106 : vector<16x1xf32> to vector<16x16xf32>
    %108 = arith.subf %104, %107 : vector<16x16xf32>
    %109 = math.exp %108 : vector<16x16xf32>
    %110 = arith.mulf %8, %109 : vector<16x16xf32>
    %cst_41 = arith.constant dense<0.000000e+00> : vector<16xf32>
    %111 = vector.multi_reduction <add>, %110, %cst_41 [1] : vector<16x16xf32> to vector<16xf32>
    %112 = vector.shape_cast %111 : vector<16xf32> to vector<16x1xf32>
    %cst_42 = arith.constant 8.000000e+00 : f32
    %113 = vector.broadcast %cst_42 : f32 to vector<16x1xf32>
    %114 = arith.mulf %112, %113 : vector<16x1xf32>
    %115 = tpu.reciprocal %114 {approx = true} : vector<16x1xf32> -> vector<16x1xf32>
    %116 = vector.broadcast %115 : vector<16x1xf32> to vector<16x16xf32>
    %117 = arith.mulf %110, %116 : vector<16x16xf32>
    %cst_43 = arith.constant dense<0.000000e+00> : vector<16x8xf32>
    %118 = tpu.matmul %117, %101, %cst_43 {dimension_numbers = #tpu.dot_dimension_numbers<[1], [0], [0], [1], [0, 0, 1, 1], [], []>} : vector<16x16xf32>, vector<16x8xf32>, vector<16x8xf32> -> vector<16x8xf32>
    %119 = vector.extract_strided_slice %14 {offsets = [0, 40], sizes = [16, 8], strides = [1, 1]} : vector<16x64xf32> to vector<16x8xf32>
    %120 = vector.extract_strided_slice %15 {offsets = [0, 40], sizes = [16, 8], strides = [1, 1]} : vector<16x64xf32> to vector<16x8xf32>
    %121 = vector.extract_strided_slice %16 {offsets = [0, 40], sizes = [16, 8], strides = [1, 1]} : vector<16x64xf32> to vector<16x8xf32>
    %cst_44 = arith.constant dense<0.000000e+00> : vector<16x16xf32>
    %122 = tpu.matmul %119, %120, %cst_44 {dimension_numbers = #tpu.dot_dimension_numbers<[1], [1], [0], [0], [0, 0, 1, 0], [], []>} : vector<16x8xf32>, vector<16x8xf32>, vector<16x16xf32> -> vector<16x16xf32>
    %cst_45 = arith.constant -1.000000e+30 : f32
    %123 = vector.broadcast %cst_45 : f32 to vector<16x16xf32>
    %124 = arith.select %18, %122, %123 : vector<16x16xi1>, vector<16x16xf32>
    %cst_46 = arith.constant dense<0xFF800000> : vector<16xf32>
    %125 = vector.multi_reduction <maximumf>, %124, %cst_46 [1] : vector<16x16xf32> to vector<16xf32>
    %126 = vector.shape_cast %125 : vector<16xf32> to vector<16x1xf32>
    %127 = vector.broadcast %126 : vector<16x1xf32> to vector<16x16xf32>
    %128 = arith.subf %124, %127 : vector<16x16xf32>
    %129 = math.exp %128 : vector<16x16xf32>
    %130 = arith.mulf %8, %129 : vector<16x16xf32>
    %cst_47 = arith.constant dense<0.000000e+00> : vector<16xf32>
    %131 = vector.multi_reduction <add>, %130, %cst_47 [1] : vector<16x16xf32> to vector<16xf32>
    %132 = vector.shape_cast %131 : vector<16xf32> to vector<16x1xf32>
    %cst_48 = arith.constant 8.000000e+00 : f32
    %133 = vector.broadcast %cst_48 : f32 to vector<16x1xf32>
    %134 = arith.mulf %132, %133 : vector<16x1xf32>
    %135 = tpu.reciprocal %134 {approx = true} : vector<16x1xf32> -> vector<16x1xf32>
    %136 = vector.broadcast %135 : vector<16x1xf32> to vector<16x16xf32>
    %137 = arith.mulf %130, %136 : vector<16x16xf32>
    %cst_49 = arith.constant dense<0.000000e+00> : vector<16x8xf32>
    %138 = tpu.matmul %137, %121, %cst_49 {dimension_numbers = #tpu.dot_dimension_numbers<[1], [0], [0], [1], [0, 0, 1, 1], [], []>} : vector<16x16xf32>, vector<16x8xf32>, vector<16x8xf32> -> vector<16x8xf32>
    %139 = vector.extract_strided_slice %14 {offsets = [0, 48], sizes = [16, 8], strides = [1, 1]} : vector<16x64xf32> to vector<16x8xf32>
    %140 = vector.extract_strided_slice %15 {offsets = [0, 48], sizes = [16, 8], strides = [1, 1]} : vector<16x64xf32> to vector<16x8xf32>
    %141 = vector.extract_strided_slice %16 {offsets = [0, 48], sizes = [16, 8], strides = [1, 1]} : vector<16x64xf32> to vector<16x8xf32>
    %cst_50 = arith.constant dense<0.000000e+00> : vector<16x16xf32>
    %142 = tpu.matmul %139, %140, %cst_50 {dimension_numbers = #tpu.dot_dimension_numbers<[1], [1], [0], [0], [0, 0, 1, 0], [], []>} : vector<16x8xf32>, vector<16x8xf32>, vector<16x16xf32> -> vector<16x16xf32>
    %cst_51 = arith.constant -1.000000e+30 : f32
    %143 = vector.broadcast %cst_51 : f32 to vector<16x16xf32>
    %144 = arith.select %18, %142, %143 : vector<16x16xi1>, vector<16x16xf32>
    %cst_52 = arith.constant dense<0xFF800000> : vector<16xf32>
    %145 = vector.multi_reduction <maximumf>, %144, %cst_52 [1] : vector<16x16xf32> to vector<16xf32>
    %146 = vector.shape_cast %145 : vector<16xf32> to vector<16x1xf32>
    %147 = vector.broadcast %146 : vector<16x1xf32> to vector<16x16xf32>
    %148 = arith.subf %144, %147 : vector<16x16xf32>
    %149 = math.exp %148 : vector<16x16xf32>
    %150 = arith.mulf %8, %149 : vector<16x16xf32>
    %cst_53 = arith.constant dense<0.000000e+00> : vector<16xf32>
    %151 = vector.multi_reduction <add>, %150, %cst_53 [1] : vector<16x16xf32> to vector<16xf32>
    %152 = vector.shape_cast %151 : vector<16xf32> to vector<16x1xf32>
    %cst_54 = arith.constant 8.000000e+00 : f32
    %153 = vector.broadcast %cst_54 : f32 to vector<16x1xf32>
    %154 = arith.mulf %152, %153 : vector<16x1xf32>
    %155 = tpu.reciprocal %154 {approx = true} : vector<16x1xf32> -> vector<16x1xf32>
    %156 = vector.broadcast %155 : vector<16x1xf32> to vector<16x16xf32>
    %157 = arith.mulf %150, %156 : vector<16x16xf32>
    %cst_55 = arith.constant dense<0.000000e+00> : vector<16x8xf32>
    %158 = tpu.matmul %157, %141, %cst_55 {dimension_numbers = #tpu.dot_dimension_numbers<[1], [0], [0], [1], [0, 0, 1, 1], [], []>} : vector<16x16xf32>, vector<16x8xf32>, vector<16x8xf32> -> vector<16x8xf32>
    %159 = vector.extract_strided_slice %14 {offsets = [0, 56], sizes = [16, 8], strides = [1, 1]} : vector<16x64xf32> to vector<16x8xf32>
    %160 = vector.extract_strided_slice %15 {offsets = [0, 56], sizes = [16, 8], strides = [1, 1]} : vector<16x64xf32> to vector<16x8xf32>
    %161 = vector.extract_strided_slice %16 {offsets = [0, 56], sizes = [16, 8], strides = [1, 1]} : vector<16x64xf32> to vector<16x8xf32>
    %cst_56 = arith.constant dense<0.000000e+00> : vector<16x16xf32>
    %162 = tpu.matmul %159, %160, %cst_56 {dimension_numbers = #tpu.dot_dimension_numbers<[1], [1], [0], [0], [0, 0, 1, 0], [], []>} : vector<16x8xf32>, vector<16x8xf32>, vector<16x16xf32> -> vector<16x16xf32>
    %cst_57 = arith.constant -1.000000e+30 : f32
    %163 = vector.broadcast %cst_57 : f32 to vector<16x16xf32>
    %164 = arith.select %18, %162, %163 : vector<16x16xi1>, vector<16x16xf32>
    %cst_58 = arith.constant dense<0xFF800000> : vector<16xf32>
    %165 = vector.multi_reduction <maximumf>, %164, %cst_58 [1] : vector<16x16xf32> to vector<16xf32>
    %166 = vector.shape_cast %165 : vector<16xf32> to vector<16x1xf32>
    %167 = vector.broadcast %166 : vector<16x1xf32> to vector<16x16xf32>
    %168 = arith.subf %164, %167 : vector<16x16xf32>
    %169 = math.exp %168 : vector<16x16xf32>
    %170 = arith.mulf %8, %169 : vector<16x16xf32>
    %cst_59 = arith.constant dense<0.000000e+00> : vector<16xf32>
    %171 = vector.multi_reduction <add>, %170, %cst_59 [1] : vector<16x16xf32> to vector<16xf32>
    %172 = vector.shape_cast %171 : vector<16xf32> to vector<16x1xf32>
    %cst_60 = arith.constant 8.000000e+00 : f32
    %173 = vector.broadcast %cst_60 : f32 to vector<16x1xf32>
    %174 = arith.mulf %172, %173 : vector<16x1xf32>
    %175 = tpu.reciprocal %174 {approx = true} : vector<16x1xf32> -> vector<16x1xf32>
    %176 = vector.broadcast %175 : vector<16x1xf32> to vector<16x16xf32>
    %177 = arith.mulf %170, %176 : vector<16x16xf32>
    %cst_61 = arith.constant dense<0.000000e+00> : vector<16x8xf32>
    %178 = tpu.matmul %177, %161, %cst_61 {dimension_numbers = #tpu.dot_dimension_numbers<[1], [0], [0], [1], [0, 0, 1, 1], [], []>} : vector<16x16xf32>, vector<16x8xf32>, vector<16x8xf32> -> vector<16x8xf32>
    %179 = tpu.concatenate %38, %58, %78, %98, %118, %138, %158, %178 in 1 : vector<16x8xf32>, vector<16x8xf32>, vector<16x8xf32>, vector<16x8xf32>, vector<16x8xf32>, vector<16x8xf32>, vector<16x8xf32>, vector<16x8xf32> -> vector<16x64xf32>
    %c0_62 = arith.constant 0 : index
    %c0_63 = arith.constant 0 : index
    %180 = vector.load %arg7[%c0_62, %c0_63] : memref<1x64xf32, #tpu.memory_space<vmem>>, vector<1x64xf32>
    %c0_64 = arith.constant 0 : index
    %c0_65 = arith.constant 0 : index
    %181 = vector.load %arg8[%c0_64, %c0_65] : memref<1x64xf32, #tpu.memory_space<vmem>>, vector<1x64xf32>
    %182 = arith.addf %179, %7 : vector<16x64xf32>
    %cst_66 = arith.constant dense<0.000000e+00> : vector<16xf32>
    %183 = vector.multi_reduction <add>, %182, %cst_66 [1] : vector<16x64xf32> to vector<16xf32>
    %184 = vector.shape_cast %183 : vector<16xf32> to vector<16x1xf32>
    %cst_67 = arith.constant 6.400000e+01 : f32
    %185 = vector.broadcast %cst_67 : f32 to vector<16x1xf32>
    %186 = arith.divf %184, %185 : vector<16x1xf32>
    %187 = vector.broadcast %186 : vector<16x1xf32> to vector<16x64xf32>
    %188 = arith.subf %182, %187 : vector<16x64xf32>
    %189 = arith.mulf %188, %188 : vector<16x64xf32>
    %cst_68 = arith.constant dense<0.000000e+00> : vector<16xf32>
    %190 = vector.multi_reduction <add>, %189, %cst_68 [1] : vector<16x64xf32> to vector<16xf32>
    %191 = vector.shape_cast %190 : vector<16xf32> to vector<16x1xf32>
    %cst_69 = arith.constant 6.400000e+01 : f32
    %192 = vector.broadcast %cst_69 : f32 to vector<16x1xf32>
    %193 = arith.divf %191, %192 : vector<16x1xf32>
    %cst_70 = arith.constant 9.99999974E-6 : f32
    %194 = vector.broadcast %cst_70 : f32 to vector<16x1xf32>
    %195 = arith.addf %193, %194 : vector<16x1xf32>
    %196 = math.rsqrt %195 : vector<16x1xf32>
    %197 = vector.broadcast %196 : vector<16x1xf32> to vector<16x64xf32>
    %198 = arith.mulf %188, %197 : vector<16x64xf32>
    %199 = vector.broadcast %180 : vector<1x64xf32> to vector<16x64xf32>
    %200 = arith.mulf %198, %199 : vector<16x64xf32>
    %201 = vector.broadcast %181 : vector<1x64xf32> to vector<16x64xf32>
    %202 = arith.addf %200, %201 : vector<16x64xf32>
    %c0_71 = arith.constant 0 : index
    %c0_72 = arith.constant 0 : index
    %203 = vector.load %arg2[%c0_71, %c0_72] : memref<16x16xf32, #tpu.memory_space<vmem>>, vector<16x16xf32>
    %c0_73 = arith.constant 0 : index
    %c0_74 = arith.constant 0 : index
    %204 = vector.load %arg9[%c0_73, %c0_74] : memref<64x192xf32, #tpu.memory_space<vmem>>, vector<64x192xf32>
    %cst_75 = arith.constant dense<0.000000e+00> : vector<16x192xf32>
    %205 = tpu.matmul %202, %204, %cst_75 {dimension_numbers = #tpu.dot_dimension_numbers<[1], [0], [0], [1], [0, 0, 1, 1], [], []>} : vector<16x64xf32>, vector<64x192xf32>, vector<16x192xf32> -> vector<16x192xf32>
    %c0_76 = arith.constant 0 : index
    %c0_77 = arith.constant 0 : index
    %206 = vector.load %arg10[%c0_76, %c0_77] : memref<1x192xf32, #tpu.memory_space<vmem>>, vector<1x192xf32>
    %207 = vector.broadcast %206 : vector<1x192xf32> to vector<16x192xf32>
    %208 = arith.addf %205, %207 : vector<16x192xf32>
    %209 = vector.extract_strided_slice %208 {offsets = [0, 0], sizes = [16, 64], strides = [1, 1]} : vector<16x192xf32> to vector<16x64xf32>
    %210 = vector.extract_strided_slice %208 {offsets = [0, 64], sizes = [16, 64], strides = [1, 1]} : vector<16x192xf32> to vector<16x64xf32>
    %211 = vector.extract_strided_slice %208 {offsets = [0, 128], sizes = [16, 64], strides = [1, 1]} : vector<16x192xf32> to vector<16x64xf32>
    %cst_78 = arith.constant 0.000000e+00 : f32
    %212 = vector.broadcast %cst_78 : f32 to vector<16x16xf32>
    %213 = arith.cmpf ogt, %203, %212 : vector<16x16xf32>
    %cst_79 = arith.constant 0.000000e+00 : f32
    %214 = vector.broadcast %cst_79 : f32 to vector<16x1xf32>
    %215 = vector.extract_strided_slice %209 {offsets = [0, 0], sizes = [16, 8], strides = [1, 1]} : vector<16x64xf32> to vector<16x8xf32>
    %216 = vector.extract_strided_slice %210 {offsets = [0, 0], sizes = [16, 8], strides = [1, 1]} : vector<16x64xf32> to vector<16x8xf32>
    %217 = vector.extract_strided_slice %211 {offsets = [0, 0], sizes = [16, 8], strides = [1, 1]} : vector<16x64xf32> to vector<16x8xf32>
    %cst_80 = arith.constant dense<0.000000e+00> : vector<16x16xf32>
    %218 = tpu.matmul %215, %216, %cst_80 {dimension_numbers = #tpu.dot_dimension_numbers<[1], [1], [0], [0], [0, 0, 1, 0], [], []>} : vector<16x8xf32>, vector<16x8xf32>, vector<16x16xf32> -> vector<16x16xf32>
    %cst_81 = arith.constant -1.000000e+30 : f32
    %219 = vector.broadcast %cst_81 : f32 to vector<16x16xf32>
    %220 = arith.select %213, %218, %219 : vector<16x16xi1>, vector<16x16xf32>
    %cst_82 = arith.constant dense<0xFF800000> : vector<16xf32>
    %221 = vector.multi_reduction <maximumf>, %220, %cst_82 [1] : vector<16x16xf32> to vector<16xf32>
    %222 = vector.shape_cast %221 : vector<16xf32> to vector<16x1xf32>
    %223 = vector.broadcast %222 : vector<16x1xf32> to vector<16x16xf32>
    %224 = arith.subf %220, %223 : vector<16x16xf32>
    %225 = math.exp %224 : vector<16x16xf32>
    %226 = arith.mulf %203, %225 : vector<16x16xf32>
    %cst_83 = arith.constant dense<0.000000e+00> : vector<16xf32>
    %227 = vector.multi_reduction <add>, %226, %cst_83 [1] : vector<16x16xf32> to vector<16xf32>
    %228 = vector.shape_cast %227 : vector<16xf32> to vector<16x1xf32>
    %cst_84 = arith.constant 8.000000e+00 : f32
    %229 = vector.broadcast %cst_84 : f32 to vector<16x1xf32>
    %230 = arith.mulf %228, %229 : vector<16x1xf32>
    %231 = tpu.reciprocal %230 {approx = true} : vector<16x1xf32> -> vector<16x1xf32>
    %232 = vector.broadcast %231 : vector<16x1xf32> to vector<16x16xf32>
    %233 = arith.mulf %226, %232 : vector<16x16xf32>
    %cst_85 = arith.constant dense<0.000000e+00> : vector<16x8xf32>
    %234 = tpu.matmul %233, %217, %cst_85 {dimension_numbers = #tpu.dot_dimension_numbers<[1], [0], [0], [1], [0, 0, 1, 1], [], []>} : vector<16x16xf32>, vector<16x8xf32>, vector<16x8xf32> -> vector<16x8xf32>
    %235 = arith.mulf %228, %231 : vector<16x1xf32>
    %236 = arith.addf %214, %235 : vector<16x1xf32>
    %237 = vector.extract_strided_slice %209 {offsets = [0, 8], sizes = [16, 8], strides = [1, 1]} : vector<16x64xf32> to vector<16x8xf32>
    %238 = vector.extract_strided_slice %210 {offsets = [0, 8], sizes = [16, 8], strides = [1, 1]} : vector<16x64xf32> to vector<16x8xf32>
    %239 = vector.extract_strided_slice %211 {offsets = [0, 8], sizes = [16, 8], strides = [1, 1]} : vector<16x64xf32> to vector<16x8xf32>
    %cst_86 = arith.constant dense<0.000000e+00> : vector<16x16xf32>
    %240 = tpu.matmul %237, %238, %cst_86 {dimension_numbers = #tpu.dot_dimension_numbers<[1], [1], [0], [0], [0, 0, 1, 0], [], []>} : vector<16x8xf32>, vector<16x8xf32>, vector<16x16xf32> -> vector<16x16xf32>
    %cst_87 = arith.constant -1.000000e+30 : f32
    %241 = vector.broadcast %cst_87 : f32 to vector<16x16xf32>
    %242 = arith.select %213, %240, %241 : vector<16x16xi1>, vector<16x16xf32>
    %cst_88 = arith.constant dense<0xFF800000> : vector<16xf32>
    %243 = vector.multi_reduction <maximumf>, %242, %cst_88 [1] : vector<16x16xf32> to vector<16xf32>
    %244 = vector.shape_cast %243 : vector<16xf32> to vector<16x1xf32>
    %245 = vector.broadcast %244 : vector<16x1xf32> to vector<16x16xf32>
    %246 = arith.subf %242, %245 : vector<16x16xf32>
    %247 = math.exp %246 : vector<16x16xf32>
    %248 = arith.mulf %203, %247 : vector<16x16xf32>
    %cst_89 = arith.constant dense<0.000000e+00> : vector<16xf32>
    %249 = vector.multi_reduction <add>, %248, %cst_89 [1] : vector<16x16xf32> to vector<16xf32>
    %250 = vector.shape_cast %249 : vector<16xf32> to vector<16x1xf32>
    %cst_90 = arith.constant 8.000000e+00 : f32
    %251 = vector.broadcast %cst_90 : f32 to vector<16x1xf32>
    %252 = arith.mulf %250, %251 : vector<16x1xf32>
    %253 = tpu.reciprocal %252 {approx = true} : vector<16x1xf32> -> vector<16x1xf32>
    %254 = vector.broadcast %253 : vector<16x1xf32> to vector<16x16xf32>
    %255 = arith.mulf %248, %254 : vector<16x16xf32>
    %cst_91 = arith.constant dense<0.000000e+00> : vector<16x8xf32>
    %256 = tpu.matmul %255, %239, %cst_91 {dimension_numbers = #tpu.dot_dimension_numbers<[1], [0], [0], [1], [0, 0, 1, 1], [], []>} : vector<16x16xf32>, vector<16x8xf32>, vector<16x8xf32> -> vector<16x8xf32>
    %257 = arith.mulf %250, %253 : vector<16x1xf32>
    %258 = arith.addf %236, %257 : vector<16x1xf32>
    %259 = vector.extract_strided_slice %209 {offsets = [0, 16], sizes = [16, 8], strides = [1, 1]} : vector<16x64xf32> to vector<16x8xf32>
    %260 = vector.extract_strided_slice %210 {offsets = [0, 16], sizes = [16, 8], strides = [1, 1]} : vector<16x64xf32> to vector<16x8xf32>
    %261 = vector.extract_strided_slice %211 {offsets = [0, 16], sizes = [16, 8], strides = [1, 1]} : vector<16x64xf32> to vector<16x8xf32>
    %cst_92 = arith.constant dense<0.000000e+00> : vector<16x16xf32>
    %262 = tpu.matmul %259, %260, %cst_92 {dimension_numbers = #tpu.dot_dimension_numbers<[1], [1], [0], [0], [0, 0, 1, 0], [], []>} : vector<16x8xf32>, vector<16x8xf32>, vector<16x16xf32> -> vector<16x16xf32>
    %cst_93 = arith.constant -1.000000e+30 : f32
    %263 = vector.broadcast %cst_93 : f32 to vector<16x16xf32>
    %264 = arith.select %213, %262, %263 : vector<16x16xi1>, vector<16x16xf32>
    %cst_94 = arith.constant dense<0xFF800000> : vector<16xf32>
    %265 = vector.multi_reduction <maximumf>, %264, %cst_94 [1] : vector<16x16xf32> to vector<16xf32>
    %266 = vector.shape_cast %265 : vector<16xf32> to vector<16x1xf32>
    %267 = vector.broadcast %266 : vector<16x1xf32> to vector<16x16xf32>
    %268 = arith.subf %264, %267 : vector<16x16xf32>
    %269 = math.exp %268 : vector<16x16xf32>
    %270 = arith.mulf %203, %269 : vector<16x16xf32>
    %cst_95 = arith.constant dense<0.000000e+00> : vector<16xf32>
    %271 = vector.multi_reduction <add>, %270, %cst_95 [1] : vector<16x16xf32> to vector<16xf32>
    %272 = vector.shape_cast %271 : vector<16xf32> to vector<16x1xf32>
    %cst_96 = arith.constant 8.000000e+00 : f32
    %273 = vector.broadcast %cst_96 : f32 to vector<16x1xf32>
    %274 = arith.mulf %272, %273 : vector<16x1xf32>
    %275 = tpu.reciprocal %274 {approx = true} : vector<16x1xf32> -> vector<16x1xf32>
    %276 = vector.broadcast %275 : vector<16x1xf32> to vector<16x16xf32>
    %277 = arith.mulf %270, %276 : vector<16x16xf32>
    %cst_97 = arith.constant dense<0.000000e+00> : vector<16x8xf32>
    %278 = tpu.matmul %277, %261, %cst_97 {dimension_numbers = #tpu.dot_dimension_numbers<[1], [0], [0], [1], [0, 0, 1, 1], [], []>} : vector<16x16xf32>, vector<16x8xf32>, vector<16x8xf32> -> vector<16x8xf32>
    %279 = arith.mulf %272, %275 : vector<16x1xf32>
    %280 = arith.addf %258, %279 : vector<16x1xf32>
    %281 = vector.extract_strided_slice %209 {offsets = [0, 24], sizes = [16, 8], strides = [1, 1]} : vector<16x64xf32> to vector<16x8xf32>
    %282 = vector.extract_strided_slice %210 {offsets = [0, 24], sizes = [16, 8], strides = [1, 1]} : vector<16x64xf32> to vector<16x8xf32>
    %283 = vector.extract_strided_slice %211 {offsets = [0, 24], sizes = [16, 8], strides = [1, 1]} : vector<16x64xf32> to vector<16x8xf32>
    %cst_98 = arith.constant dense<0.000000e+00> : vector<16x16xf32>
    %284 = tpu.matmul %281, %282, %cst_98 {dimension_numbers = #tpu.dot_dimension_numbers<[1], [1], [0], [0], [0, 0, 1, 0], [], []>} : vector<16x8xf32>, vector<16x8xf32>, vector<16x16xf32> -> vector<16x16xf32>
    %cst_99 = arith.constant -1.000000e+30 : f32
    %285 = vector.broadcast %cst_99 : f32 to vector<16x16xf32>
    %286 = arith.select %213, %284, %285 : vector<16x16xi1>, vector<16x16xf32>
    %cst_100 = arith.constant dense<0xFF800000> : vector<16xf32>
    %287 = vector.multi_reduction <maximumf>, %286, %cst_100 [1] : vector<16x16xf32> to vector<16xf32>
    %288 = vector.shape_cast %287 : vector<16xf32> to vector<16x1xf32>
    %289 = vector.broadcast %288 : vector<16x1xf32> to vector<16x16xf32>
    %290 = arith.subf %286, %289 : vector<16x16xf32>
    %291 = math.exp %290 : vector<16x16xf32>
    %292 = arith.mulf %203, %291 : vector<16x16xf32>
    %cst_101 = arith.constant dense<0.000000e+00> : vector<16xf32>
    %293 = vector.multi_reduction <add>, %292, %cst_101 [1] : vector<16x16xf32> to vector<16xf32>
    %294 = vector.shape_cast %293 : vector<16xf32> to vector<16x1xf32>
    %cst_102 = arith.constant 8.000000e+00 : f32
    %295 = vector.broadcast %cst_102 : f32 to vector<16x1xf32>
    %296 = arith.mulf %294, %295 : vector<16x1xf32>
    %297 = tpu.reciprocal %296 {approx = true} : vector<16x1xf32> -> vector<16x1xf32>
    %298 = vector.broadcast %297 : vector<16x1xf32> to vector<16x16xf32>
    %299 = arith.mulf %292, %298 : vector<16x16xf32>
    %cst_103 = arith.constant dense<0.000000e+00> : vector<16x8xf32>
    %300 = tpu.matmul %299, %283, %cst_103 {dimension_numbers = #tpu.dot_dimension_numbers<[1], [0], [0], [1], [0, 0, 1, 1], [], []>} : vector<16x16xf32>, vector<16x8xf32>, vector<16x8xf32> -> vector<16x8xf32>
    %301 = arith.mulf %294, %297 : vector<16x1xf32>
    %302 = arith.addf %280, %301 : vector<16x1xf32>
    %303 = vector.extract_strided_slice %209 {offsets = [0, 32], sizes = [16, 8], strides = [1, 1]} : vector<16x64xf32> to vector<16x8xf32>
    %304 = vector.extract_strided_slice %210 {offsets = [0, 32], sizes = [16, 8], strides = [1, 1]} : vector<16x64xf32> to vector<16x8xf32>
    %305 = vector.extract_strided_slice %211 {offsets = [0, 32], sizes = [16, 8], strides = [1, 1]} : vector<16x64xf32> to vector<16x8xf32>
    %cst_104 = arith.constant dense<0.000000e+00> : vector<16x16xf32>
    %306 = tpu.matmul %303, %304, %cst_104 {dimension_numbers = #tpu.dot_dimension_numbers<[1], [1], [0], [0], [0, 0, 1, 0], [], []>} : vector<16x8xf32>, vector<16x8xf32>, vector<16x16xf32> -> vector<16x16xf32>
    %cst_105 = arith.constant -1.000000e+30 : f32
    %307 = vector.broadcast %cst_105 : f32 to vector<16x16xf32>
    %308 = arith.select %213, %306, %307 : vector<16x16xi1>, vector<16x16xf32>
    %cst_106 = arith.constant dense<0xFF800000> : vector<16xf32>
    %309 = vector.multi_reduction <maximumf>, %308, %cst_106 [1] : vector<16x16xf32> to vector<16xf32>
    %310 = vector.shape_cast %309 : vector<16xf32> to vector<16x1xf32>
    %311 = vector.broadcast %310 : vector<16x1xf32> to vector<16x16xf32>
    %312 = arith.subf %308, %311 : vector<16x16xf32>
    %313 = math.exp %312 : vector<16x16xf32>
    %314 = arith.mulf %203, %313 : vector<16x16xf32>
    %cst_107 = arith.constant dense<0.000000e+00> : vector<16xf32>
    %315 = vector.multi_reduction <add>, %314, %cst_107 [1] : vector<16x16xf32> to vector<16xf32>
    %316 = vector.shape_cast %315 : vector<16xf32> to vector<16x1xf32>
    %cst_108 = arith.constant 8.000000e+00 : f32
    %317 = vector.broadcast %cst_108 : f32 to vector<16x1xf32>
    %318 = arith.mulf %316, %317 : vector<16x1xf32>
    %319 = tpu.reciprocal %318 {approx = true} : vector<16x1xf32> -> vector<16x1xf32>
    %320 = vector.broadcast %319 : vector<16x1xf32> to vector<16x16xf32>
    %321 = arith.mulf %314, %320 : vector<16x16xf32>
    %cst_109 = arith.constant dense<0.000000e+00> : vector<16x8xf32>
    %322 = tpu.matmul %321, %305, %cst_109 {dimension_numbers = #tpu.dot_dimension_numbers<[1], [0], [0], [1], [0, 0, 1, 1], [], []>} : vector<16x16xf32>, vector<16x8xf32>, vector<16x8xf32> -> vector<16x8xf32>
    %323 = arith.mulf %316, %319 : vector<16x1xf32>
    %324 = arith.addf %302, %323 : vector<16x1xf32>
    %325 = vector.extract_strided_slice %209 {offsets = [0, 40], sizes = [16, 8], strides = [1, 1]} : vector<16x64xf32> to vector<16x8xf32>
    %326 = vector.extract_strided_slice %210 {offsets = [0, 40], sizes = [16, 8], strides = [1, 1]} : vector<16x64xf32> to vector<16x8xf32>
    %327 = vector.extract_strided_slice %211 {offsets = [0, 40], sizes = [16, 8], strides = [1, 1]} : vector<16x64xf32> to vector<16x8xf32>
    %cst_110 = arith.constant dense<0.000000e+00> : vector<16x16xf32>
    %328 = tpu.matmul %325, %326, %cst_110 {dimension_numbers = #tpu.dot_dimension_numbers<[1], [1], [0], [0], [0, 0, 1, 0], [], []>} : vector<16x8xf32>, vector<16x8xf32>, vector<16x16xf32> -> vector<16x16xf32>
    %cst_111 = arith.constant -1.000000e+30 : f32
    %329 = vector.broadcast %cst_111 : f32 to vector<16x16xf32>
    %330 = arith.select %213, %328, %329 : vector<16x16xi1>, vector<16x16xf32>
    %cst_112 = arith.constant dense<0xFF800000> : vector<16xf32>
    %331 = vector.multi_reduction <maximumf>, %330, %cst_112 [1] : vector<16x16xf32> to vector<16xf32>
    %332 = vector.shape_cast %331 : vector<16xf32> to vector<16x1xf32>
    %333 = vector.broadcast %332 : vector<16x1xf32> to vector<16x16xf32>
    %334 = arith.subf %330, %333 : vector<16x16xf32>
    %335 = math.exp %334 : vector<16x16xf32>
    %336 = arith.mulf %203, %335 : vector<16x16xf32>
    %cst_113 = arith.constant dense<0.000000e+00> : vector<16xf32>
    %337 = vector.multi_reduction <add>, %336, %cst_113 [1] : vector<16x16xf32> to vector<16xf32>
    %338 = vector.shape_cast %337 : vector<16xf32> to vector<16x1xf32>
    %cst_114 = arith.constant 8.000000e+00 : f32
    %339 = vector.broadcast %cst_114 : f32 to vector<16x1xf32>
    %340 = arith.mulf %338, %339 : vector<16x1xf32>
    %341 = tpu.reciprocal %340 {approx = true} : vector<16x1xf32> -> vector<16x1xf32>
    %342 = vector.broadcast %341 : vector<16x1xf32> to vector<16x16xf32>
    %343 = arith.mulf %336, %342 : vector<16x16xf32>
    %cst_115 = arith.constant dense<0.000000e+00> : vector<16x8xf32>
    %344 = tpu.matmul %343, %327, %cst_115 {dimension_numbers = #tpu.dot_dimension_numbers<[1], [0], [0], [1], [0, 0, 1, 1], [], []>} : vector<16x16xf32>, vector<16x8xf32>, vector<16x8xf32> -> vector<16x8xf32>
    %345 = arith.mulf %338, %341 : vector<16x1xf32>
    %346 = arith.addf %324, %345 : vector<16x1xf32>
    %347 = vector.extract_strided_slice %209 {offsets = [0, 48], sizes = [16, 8], strides = [1, 1]} : vector<16x64xf32> to vector<16x8xf32>
    %348 = vector.extract_strided_slice %210 {offsets = [0, 48], sizes = [16, 8], strides = [1, 1]} : vector<16x64xf32> to vector<16x8xf32>
    %349 = vector.extract_strided_slice %211 {offsets = [0, 48], sizes = [16, 8], strides = [1, 1]} : vector<16x64xf32> to vector<16x8xf32>
    %cst_116 = arith.constant dense<0.000000e+00> : vector<16x16xf32>
    %350 = tpu.matmul %347, %348, %cst_116 {dimension_numbers = #tpu.dot_dimension_numbers<[1], [1], [0], [0], [0, 0, 1, 0], [], []>} : vector<16x8xf32>, vector<16x8xf32>, vector<16x16xf32> -> vector<16x16xf32>
    %cst_117 = arith.constant -1.000000e+30 : f32
    %351 = vector.broadcast %cst_117 : f32 to vector<16x16xf32>
    %352 = arith.select %213, %350, %351 : vector<16x16xi1>, vector<16x16xf32>
    %cst_118 = arith.constant dense<0xFF800000> : vector<16xf32>
    %353 = vector.multi_reduction <maximumf>, %352, %cst_118 [1] : vector<16x16xf32> to vector<16xf32>
    %354 = vector.shape_cast %353 : vector<16xf32> to vector<16x1xf32>
    %355 = vector.broadcast %354 : vector<16x1xf32> to vector<16x16xf32>
    %356 = arith.subf %352, %355 : vector<16x16xf32>
    %357 = math.exp %356 : vector<16x16xf32>
    %358 = arith.mulf %203, %357 : vector<16x16xf32>
    %cst_119 = arith.constant dense<0.000000e+00> : vector<16xf32>
    %359 = vector.multi_reduction <add>, %358, %cst_119 [1] : vector<16x16xf32> to vector<16xf32>
    %360 = vector.shape_cast %359 : vector<16xf32> to vector<16x1xf32>
    %cst_120 = arith.constant 8.000000e+00 : f32
    %361 = vector.broadcast %cst_120 : f32 to vector<16x1xf32>
    %362 = arith.mulf %360, %361 : vector<16x1xf32>
    %363 = tpu.reciprocal %362 {approx = true} : vector<16x1xf32> -> vector<16x1xf32>
    %364 = vector.broadcast %363 : vector<16x1xf32> to vector<16x16xf32>
    %365 = arith.mulf %358, %364 : vector<16x16xf32>
    %cst_121 = arith.constant dense<0.000000e+00> : vector<16x8xf32>
    %366 = tpu.matmul %365, %349, %cst_121 {dimension_numbers = #tpu.dot_dimension_numbers<[1], [0], [0], [1], [0, 0, 1, 1], [], []>} : vector<16x16xf32>, vector<16x8xf32>, vector<16x8xf32> -> vector<16x8xf32>
    %367 = arith.mulf %360, %363 : vector<16x1xf32>
    %368 = arith.addf %346, %367 : vector<16x1xf32>
    %369 = vector.extract_strided_slice %209 {offsets = [0, 56], sizes = [16, 8], strides = [1, 1]} : vector<16x64xf32> to vector<16x8xf32>
    %370 = vector.extract_strided_slice %210 {offsets = [0, 56], sizes = [16, 8], strides = [1, 1]} : vector<16x64xf32> to vector<16x8xf32>
    %371 = vector.extract_strided_slice %211 {offsets = [0, 56], sizes = [16, 8], strides = [1, 1]} : vector<16x64xf32> to vector<16x8xf32>
    %cst_122 = arith.constant dense<0.000000e+00> : vector<16x16xf32>
    %372 = tpu.matmul %369, %370, %cst_122 {dimension_numbers = #tpu.dot_dimension_numbers<[1], [1], [0], [0], [0, 0, 1, 0], [], []>} : vector<16x8xf32>, vector<16x8xf32>, vector<16x16xf32> -> vector<16x16xf32>
    %cst_123 = arith.constant -1.000000e+30 : f32
    %373 = vector.broadcast %cst_123 : f32 to vector<16x16xf32>
    %374 = arith.select %213, %372, %373 : vector<16x16xi1>, vector<16x16xf32>
    %cst_124 = arith.constant dense<0xFF800000> : vector<16xf32>
    %375 = vector.multi_reduction <maximumf>, %374, %cst_124 [1] : vector<16x16xf32> to vector<16xf32>
    %376 = vector.shape_cast %375 : vector<16xf32> to vector<16x1xf32>
    %377 = vector.broadcast %376 : vector<16x1xf32> to vector<16x16xf32>
    %378 = arith.subf %374, %377 : vector<16x16xf32>
    %379 = math.exp %378 : vector<16x16xf32>
    %380 = arith.mulf %203, %379 : vector<16x16xf32>
    %cst_125 = arith.constant dense<0.000000e+00> : vector<16xf32>
    %381 = vector.multi_reduction <add>, %380, %cst_125 [1] : vector<16x16xf32> to vector<16xf32>
    %382 = vector.shape_cast %381 : vector<16xf32> to vector<16x1xf32>
    %cst_126 = arith.constant 8.000000e+00 : f32
    %383 = vector.broadcast %cst_126 : f32 to vector<16x1xf32>
    %384 = arith.mulf %382, %383 : vector<16x1xf32>
    %385 = tpu.reciprocal %384 {approx = true} : vector<16x1xf32> -> vector<16x1xf32>
    %386 = vector.broadcast %385 : vector<16x1xf32> to vector<16x16xf32>
    %387 = arith.mulf %380, %386 : vector<16x16xf32>
    %cst_127 = arith.constant dense<0.000000e+00> : vector<16x8xf32>
    %388 = tpu.matmul %387, %371, %cst_127 {dimension_numbers = #tpu.dot_dimension_numbers<[1], [0], [0], [1], [0, 0, 1, 1], [], []>} : vector<16x16xf32>, vector<16x8xf32>, vector<16x8xf32> -> vector<16x8xf32>
    %389 = arith.mulf %382, %385 : vector<16x1xf32>
    %390 = arith.addf %368, %389 : vector<16x1xf32>
    %391 = tpu.concatenate %234, %256, %278, %300, %322, %344, %366, %388 in 1 : vector<16x8xf32>, vector<16x8xf32>, vector<16x8xf32>, vector<16x8xf32>, vector<16x8xf32>, vector<16x8xf32>, vector<16x8xf32>, vector<16x8xf32> -> vector<16x64xf32>
    %c0_128 = arith.constant 0 : index
    %c0_129 = arith.constant 0 : index
    %392 = vector.load %arg11[%c0_128, %c0_129] : memref<1x64xf32, #tpu.memory_space<vmem>>, vector<1x64xf32>
    %c0_130 = arith.constant 0 : index
    %c0_131 = arith.constant 0 : index
    %393 = vector.load %arg12[%c0_130, %c0_131] : memref<1x64xf32, #tpu.memory_space<vmem>>, vector<1x64xf32>
    %394 = arith.addf %391, %202 : vector<16x64xf32>
    %cst_132 = arith.constant dense<0.000000e+00> : vector<16xf32>
    %395 = vector.multi_reduction <add>, %394, %cst_132 [1] : vector<16x64xf32> to vector<16xf32>
    %396 = vector.shape_cast %395 : vector<16xf32> to vector<16x1xf32>
    %cst_133 = arith.constant 6.400000e+01 : f32
    %397 = vector.broadcast %cst_133 : f32 to vector<16x1xf32>
    %398 = arith.divf %396, %397 : vector<16x1xf32>
    %399 = vector.broadcast %398 : vector<16x1xf32> to vector<16x64xf32>
    %400 = arith.subf %394, %399 : vector<16x64xf32>
    %401 = arith.mulf %400, %400 : vector<16x64xf32>
    %cst_134 = arith.constant dense<0.000000e+00> : vector<16xf32>
    %402 = vector.multi_reduction <add>, %401, %cst_134 [1] : vector<16x64xf32> to vector<16xf32>
    %403 = vector.shape_cast %402 : vector<16xf32> to vector<16x1xf32>
    %cst_135 = arith.constant 6.400000e+01 : f32
    %404 = vector.broadcast %cst_135 : f32 to vector<16x1xf32>
    %405 = arith.divf %403, %404 : vector<16x1xf32>
    %cst_136 = arith.constant 9.99999974E-6 : f32
    %406 = vector.broadcast %cst_136 : f32 to vector<16x1xf32>
    %407 = arith.addf %405, %406 : vector<16x1xf32>
    %408 = math.rsqrt %407 : vector<16x1xf32>
    %409 = vector.broadcast %408 : vector<16x1xf32> to vector<16x64xf32>
    %410 = arith.mulf %400, %409 : vector<16x64xf32>
    %411 = vector.broadcast %392 : vector<1x64xf32> to vector<16x64xf32>
    %412 = arith.mulf %410, %411 : vector<16x64xf32>
    %413 = vector.broadcast %393 : vector<1x64xf32> to vector<16x64xf32>
    %414 = arith.addf %412, %413 : vector<16x64xf32>
    %c0_137 = arith.constant 0 : index
    %c0_138 = arith.constant 0 : index
    %415 = vector.load %arg13[%c0_137, %c0_138] : memref<16x64xf32, #tpu.memory_space<vmem>>, vector<16x64xf32>
    tpu.vector_store %arg13[%c0_137, %c0_138], %414 {strides = array<i32>} : memref<16x64xf32, #tpu.memory_space<vmem>>, vector<16x64xf32>,
    %c0_139 = arith.constant 0 : index
    %c0_140 = arith.constant 0 : index
    %416 = vector.load %arg14[%c0_139, %c0_140] : memref<16x1xf32, #tpu.memory_space<vmem>>, vector<16x1xf32>
    tpu.vector_store %arg14[%c0_139, %c0_140], %390 {strides = array<i32>} : memref<16x1xf32, #tpu.memory_space<vmem>>, vector<16x1xf32>,
    return
  }
}

</mosaic_0001>

<llo_original>
// kernel: local_transformer_encoder.1
$region0: #{local_transformer_encoder.1}
  #allocation0 [shape = 'u32[]', space=smem, size = 0x4, offset = 0x4, fixed_abs, tag = 'smem constant byte address 0x4 - core index']
  #allocation1 [shape = 'u32[144,128]{1,0:T(1,128)}', space=vmem, size = 0x12000, scoped, tag = 'internal scratch']
  %s0 = inlined_call_operand.vmem [shape: f32[16,128], index: 0, kind: input, shape index: {}]
  %s1 = inlined_call_operand.vmem [shape: f32[16,16], index: 1, kind: input, shape index: {}]
  %s2 = inlined_call_operand.vmem [shape: f32[16,16], index: 2, kind: input, shape index: {}]
  %s3 = inlined_call_operand.vmem [shape: f32[128,64], index: 3, kind: input, shape index: {}]
  %s4 = inlined_call_operand.vmem [shape: f32[1,64], index: 4, kind: input, shape index: {}]
  %s5 = inlined_call_operand.vmem [shape: f32[64,192], index: 5, kind: input, shape index: {}]
  %s6 = inlined_call_operand.vmem [shape: f32[1,192], index: 6, kind: input, shape index: {}]
  %s7 = inlined_call_operand.vmem [shape: f32[1,64], index: 7, kind: input, shape index: {}]
  %s8 = inlined_call_operand.vmem [shape: f32[1,64], index: 8, kind: input, shape index: {}]
  %s9 = inlined_call_operand.vmem [shape: f32[64,192], index: 9, kind: input, shape index: {}]
  %s10 = inlined_call_operand.vmem [shape: f32[1,192], index: 10, kind: input, shape index: {}]
  %s11 = inlined_call_operand.vmem [shape: f32[1,64], index: 11, kind: input, shape index: {}]
  %s12 = inlined_call_operand.vmem [shape: f32[1,64], index: 12, kind: input, shape index: {}]
  %s13 = inlined_call_operand.hbm [shape: f32[16,64], index: 13, kind: output, shape index: {0}]
  %s14 = inlined_call_operand.vmem [shape: f32[16,1], index: 14, kind: output, shape index: {1}]
  %15 = xla_tuple %s13, %s14
  %s16 = sld [smem:[#allocation0]]
  $region70: #{local_transformer_encoder.1} parent=0
    _
  %s18 = ssub.s32 1, %s16
  %s19 = scalar_select 0, %s18, %s16
  $region1: #{local_transformer_encoder.1} parent=0
    #allocation2 [shape = 'u8[8192]{0}', space=vmem, size = 0x2000, scoped, tag = 'output window, operand 0, single buffered']
    #allocation3 [shape = 's32[1]{0}', space=sflag, size = 0x4, scoped, tag = 'scoped memory for local_transformer_encoder.1']
    %20 = vsyncpa [#allocation3], 0
    // Predicated region
    $region2: #{local_transformer_encoder.1} parent=1 // pred_check
      _
    $region3: #{local_transformer_encoder.1} parent=1 // pred_check_branch
      %22 = sbr.rel (0) target = $region5
    $region4: #{local_transformer_encoder.1} parent=1 // pred_region
      _
    $region5: #{local_transformer_encoder.1} parent=1 // pred_fallthru
      _
    // Predicated region
    $region6: #{local_transformer_encoder.1} parent=1 // pred_check
      _
    $region7: #{local_transformer_encoder.1} parent=1 // pred_check_branch
      %24 = sbr.rel (0) target = $region9
    $region8: #{local_transformer_encoder.1} parent=1 // pred_region
      _
    $region9: #{local_transformer_encoder.1} parent=1 // pred_fallthru
      _
    // Predicated region
    $region10: #{local_transformer_encoder.1} parent=1 // pred_check
      _
    $region11: #{local_transformer_encoder.1} parent=1 // pred_check_branch
      %26 = sbr.rel (0) target = $region13
    $region12: #{local_transformer_encoder.1} parent=1 // pred_region
      _
    $region13: #{local_transformer_encoder.1} parent=1 // pred_fallthru
      _
    // Predicated region
    $region14: #{local_transformer_encoder.1} parent=1 // pred_check
      _
    $region15: #{local_transformer_encoder.1} parent=1 // pred_check_branch
      %28 = sbr.rel (0) target = $region17
    $region16: #{local_transformer_encoder.1} parent=1 // pred_region
      _
    $region17: #{local_transformer_encoder.1} parent=1 // pred_fallthru
      _
    // Predicated region
    $region18: #{local_transformer_encoder.1} parent=1 // pred_check
      _
    $region19: #{local_transformer_encoder.1} parent=1 // pred_check_branch
      %30 = sbr.rel (0) target = $region21
    $region20: #{local_transformer_encoder.1} parent=1 // pred_region
      _
    $region21: #{local_transformer_encoder.1} parent=1 // pred_fallthru
      _
    // Predicated region
    $region22: #{local_transformer_encoder.1} parent=1 // pred_check
      _
    $region23: #{local_transformer_encoder.1} parent=1 // pred_check_branch
      %32 = sbr.rel (0) target = $region25
    $region24: #{local_transformer_encoder.1} parent=1 // pred_region
      _
    $region25: #{local_transformer_encoder.1} parent=1 // pred_fallthru
      _
    // Predicated region
    $region26: #{local_transformer_encoder.1} parent=1 // pred_check
      _
    $region27: #{local_transformer_encoder.1} parent=1 // pred_check_branch
      %34 = sbr.rel (0) target = $region29
    $region28: #{local_transformer_encoder.1} parent=1 // pred_region
      _
    $region29: #{local_transformer_encoder.1} parent=1 // pred_fallthru
      _
    // Predicated region
    $region30: #{local_transformer_encoder.1} parent=1 // pred_check
      _
    $region31: #{local_transformer_encoder.1} parent=1 // pred_check_branch
      %36 = sbr.rel (0) target = $region33
    $region32: #{local_transformer_encoder.1} parent=1 // pred_region
      _
    $region33: #{local_transformer_encoder.1} parent=1 // pred_fallthru
      _
    // Predicated region
    $region34: #{local_transformer_encoder.1} parent=1 // pred_check
      _
    $region35: #{local_transformer_encoder.1} parent=1 // pred_check_branch
      %38 = sbr.rel (0) target = $region37
    $region36: #{local_transformer_encoder.1} parent=1 // pred_region
      _
    $region37: #{local_transformer_encoder.1} parent=1 // pred_fallthru
      _
    // Predicated region
    $region38: #{local_transformer_encoder.1} parent=1 // pred_check
      _
    $region39: #{local_transformer_encoder.1} parent=1 // pred_check_branch
      %40 = sbr.rel (0) target = $region41
    $region40: #{local_transformer_encoder.1} parent=1 // pred_region
      _
    $region41: #{local_transformer_encoder.1} parent=1 // pred_fallthru
      _
    // Predicated region
    $region42: #{local_transformer_encoder.1} parent=1 // pred_check
      _
    $region43: #{local_transformer_encoder.1} parent=1 // pred_check_branch
      %42 = sbr.rel (0) target = $region45
    $region44: #{local_transformer_encoder.1} parent=1 // pred_region
      _
    $region45: #{local_transformer_encoder.1} parent=1 // pred_fallthru
      _
    // Predicated region
    $region46: #{local_transformer_encoder.1} parent=1 // pred_check
      _
    $region47: #{local_transformer_encoder.1} parent=1 // pred_check_branch
      %44 = sbr.rel (0) target = $region49
    $region48: #{local_transformer_encoder.1} parent=1 // pred_region
      _
    $region49: #{local_transformer_encoder.1} parent=1 // pred_fallthru
      _
    // Predicated region
    $region50: #{local_transformer_encoder.1} parent=1 // pred_check
      _
    $region51: #{local_transformer_encoder.1} parent=1 // pred_check_branch
      %46 = sbr.rel (0) target = $region53
    $region52: #{local_transformer_encoder.1} parent=1 // pred_region
      _
    $region53: #{local_transformer_encoder.1} parent=1 // pred_fallthru
      _
    %v47 = vld [vmem:[%s0] sm:$0xff]
    %v48 = vld [vmem:[%s0 + $0x8] sm:$0xff]
    %v49 = vld [vmem:[%s3] sm:$0xff]
    %v50 = vld [vmem:[%s3 + $0x8] sm:$0xff]
    %v51 = vld [vmem:[%s3 + $0x10] sm:$0xff]
    %v52 = vld [vmem:[%s3 + $0x18] sm:$0xff]
    %v53 = vld [vmem:[%s3 + $0x20] sm:$0xff]
    %v54 = vld [vmem:[%s3 + $0x28] sm:$0xff]
    %v55 = vld [vmem:[%s3 + $0x30] sm:$0xff]
    %v56 = vld [vmem:[%s3 + $0x38] sm:$0xff]
    %v57 = vld [vmem:[%s3 + $0x40] sm:$0xff]
    %v58 = vld [vmem:[%s3 + $0x48] sm:$0xff]
    %v59 = vld [vmem:[%s3 + $0x50] sm:$0xff]
    %v60 = vld [vmem:[%s3 + $0x58] sm:$0xff]
    %v61 = vld [vmem:[%s3 + $0x60] sm:$0xff]
    %v62 = vld [vmem:[%s3 + $0x68] sm:$0xff]
    %v63 = vld [vmem:[%s3 + $0x70] sm:$0xff]
    %v64 = vld [vmem:[%s3 + $0x78] sm:$0xff]
    %v65 = vld [vmem:[%s4] sm:$0x1]
    %v67 = vlaneseq
    %v68 = vshrl.u32 %v67, 7
    %v69 = vsub.s32 0, %v68
    %v70 = vrot.slane %v65, %v69
    %72 = vmatprep.subr.mxu0 0.0
    %73 = vmatpush1.msra.mxu0 %v49
    %74 = vmatprep.subr.mxu0 0.0
    %75 = vmatpush1.msra.mxu0 %v50
    %76 = vmatprep.subr.mxu0 0.0
    %77 = vmatpush1.msra.mxu0 %v51
    %78 = vmatprep.subr.mxu0 0.0
    %79 = vmatpush1.msra.mxu0 %v52
    %80 = vmatprep.subr.mxu0 0.0
    %81 = vmatpush1.msra.mxu0 %v53
    %82 = vmatprep.subr.mxu0 0.0
    %83 = vmatpush1.msra.mxu0 %v54
    %84 = vmatprep.subr.mxu0 0.0
    %85 = vmatpush1.msra.mxu0 %v55
    %86 = vmatprep.subr.mxu0 0.0
    %87 = vmatpush1.msra.mxu0 %v56
    %88 = vmatprep.subr.mxu0 0.0
    %89 = vmatpush1.msra.mxu0 %v57
    %90 = vmatprep.subr.mxu0 0.0
    %91 = vmatpush1.msra.mxu0 %v58
    %92 = vmatprep.subr.mxu0 0.0
    %93 = vmatpush1.msra.mxu0 %v59
    %94 = vmatprep.subr.mxu0 0.0
    %95 = vmatpush1.msra.mxu0 %v60
    %96 = vmatprep.subr.mxu0 0.0
    %97 = vmatpush1.msra.mxu0 %v61
    %98 = vmatprep.subr.mxu0 0.0
    %99 = vmatpush1.msra.mxu0 %v62
    %100 = vmatprep.subr.mxu0 0.0
    %101 = vmatpush1.msra.mxu0 %v63
    %102 = vmatprep.subr.mxu0 0.0
    %103 = vmatpush1.msra.mxu0 %v64
    %104 = vmatprep.subr.mxu0 0.0
    %105 = vmatpush1.msra.mxu0 0.0
    %106 = vmatprep.subr.mxu0 0.0
    %107 = vmatpush1.msra.mxu0 0.0
    %108 = vmatprep.subr.mxu0 0.0
    %109 = vmatpush1.msra.mxu0 0.0
    %110 = vmatprep.subr.mxu0 0.0
    %111 = vmatpush1.msra.mxu0 0.0
    %112 = vmatprep.subr.mxu0 0.0
    %113 = vmatpush1.msra.mxu0 0.0
    %114 = vmatprep.subr.mxu0 0.0
    %115 = vmatpush1.msra.mxu0 0.0
    %116 = vmatprep.subr.mxu0 0.0
    %117 = vmatpush1.msra.mxu0 0.0
    %118 = vmatprep.subr.mxu0 0.0
    %119 = vmatpush1.msra.mxu0 0.0
    %120 = vmatprep.subr.mxu0 0.0
    %121 = vmatpush1.msra.mxu0 0.0
    %122 = vmatprep.subr.mxu0 0.0
    %123 = vmatpush1.msra.mxu0 0.0
    %124 = vmatprep.subr.mxu0 0.0
    %125 = vmatpush1.msra.mxu0 0.0
    %126 = vmatprep.subr.mxu0 0.0
    %127 = vmatpush1.msra.mxu0 0.0
    %128 = vmatprep.subr.mxu0 0.0
    %129 = vmatpush1.msra.mxu0 0.0
    %130 = vmatprep.subr.mxu0 0.0
    %131 = vmatpush1.msra.mxu0 0.0
    %132 = vmatprep.subr.mxu0 0.0
    %133 = vmatpush1.msra.mxu0 0.0
    %134 = vmatprep.subr.mxu0 0.0
    %135 = vmatpush1.msra.mxu0 0.0
    %136 = vmatprep.mubr.f32.mxu0 0.0
    %137 = vmatmul.mubr.f32.gmra.mrb[0].mxu0 %v47
    %v138 = vpop.f32.mrb[0].mxu0
    %v139 = vadd.f32 %v70, %v138
    %v140 = vpop.f32.mrb[0].mxu0
    %141 = vmatprep.mubr.f32.mxu0 0.0
    %142 = vmatmul.mubr.f32.gmra.mrb[0].mxu0 %v48
    %v143 = vpop.f32.mrb[0].mxu0
    %v144 = vadd.f32 %v70, %v143
    %v145 = vpop.f32.mrb[0].mxu0
    %146 = vdwg.mxu0
    %v147 = vmax.f32 %v139, 0.0
    %v148 = vmax.f32 %v144, 0.0
    %v149 = vld [vmem:[%s1] sm:$0xff]
    %v150 = vld [vmem:[%s1 + $0x8] sm:$0xff]
    %v151 = vld [vmem:[%s5] sm:$0xff]
    %v152 = vld [vmem:[%s5 + $0x8] sm:$0xff]
    %v153 = vld [vmem:[%s5 + $0x10] sm:$0xff]
    %v154 = vld [vmem:[%s5 + $0x18] sm:$0xff]
    %v155 = vld [vmem:[%s5 + $0x20] sm:$0xff]
    %v156 = vld [vmem:[%s5 + $0x28] sm:$0xff]
    %v157 = vld [vmem:[%s5 + $0x30] sm:$0xff]
    %v158 = vld [vmem:[%s5 + $0x38] sm:$0xff]
    %v159 = vld [vmem:[%s5 + $0x40] sm:$0xff]
    %v160 = vld [vmem:[%s5 + $0x48] sm:$0xff]
    %v161 = vld [vmem:[%s5 + $0x50] sm:$0xff]
    %v162 = vld [vmem:[%s5 + $0x58] sm:$0xff]
    %v163 = vld [vmem:[%s5 + $0x60] sm:$0xff]
    %v164 = vld [vmem:[%s5 + $0x68] sm:$0xff]
    %v165 = vld [vmem:[%s5 + $0x70] sm:$0xff]
    %v166 = vld [vmem:[%s5 + $0x78] sm:$0xff]
    %v167 = vld [vmem:[%s6] sm:$0x3]
    %v169 = vlaneseq
    %v170 = vshrl.u32 %v169, 7
    %v171 = vsub.s32 0, %v170
    %v172 = vrot.slane %v167, %v171
    %v173 = vlaneseq
    %v174 = vshrl.u32 %v173, 7
    %v175 = vsub.s32 1, %v174
    %v176 = vrot.slane %v167, %v175
    %vm179 = vcmask 523264
    %v181 = vsel %vm179, %v147, 0
    %v184 = vsel %vm179, %v148, 0
    %186 = vmatprep.subr.mxu0 %v152
    %187 = vmatpush1.msra.mxu0 %v151
    %188 = vmatprep.subr.mxu0 %v154
    %189 = vmatpush1.msra.mxu0 %v153
    %190 = vmatprep.subr.mxu0 %v156
    %191 = vmatpush1.msra.mxu0 %v155
    %192 = vmatprep.subr.mxu0 %v158
    %193 = vmatpush1.msra.mxu0 %v157
    %194 = vmatprep.subr.mxu0 %v160
    %195 = vmatpush1.msra.mxu0 %v159
    %196 = vmatprep.subr.mxu0 %v162
    %197 = vmatpush1.msra.mxu0 %v161
    %198 = vmatprep.subr.mxu0 %v164
    %199 = vmatpush1.msra.mxu0 %v163
    %200 = vmatprep.subr.mxu0 %v166
    %201 = vmatpush1.msra.mxu0 %v165
    %202 = vmatprep.subr.mxu0 0.0
    %203 = vmatpush1.msra.mxu0 0.0
    %204 = vmatprep.subr.mxu0 0.0
    %205 = vmatpush1.msra.mxu0 0.0
    %206 = vmatprep.subr.mxu0 0.0
    %207 = vmatpush1.msra.mxu0 0.0
    %208 = vmatprep.subr.mxu0 0.0
    %209 = vmatpush1.msra.mxu0 0.0
    %210 = vmatprep.subr.mxu0 0.0
    %211 = vmatpush1.msra.mxu0 0.0
    %212 = vmatprep.subr.mxu0 0.0
    %213 = vmatpush1.msra.mxu0 0.0
    %214 = vmatprep.subr.mxu0 0.0
    %215 = vmatpush1.msra.mxu0 0.0
    %216 = vmatprep.subr.mxu0 0.0
    %217 = vmatpush1.msra.mxu0 0.0
    %218 = vmatprep.subr.mxu0 0.0
    %219 = vmatpush1.msra.mxu0 0.0
    %220 = vmatprep.subr.mxu0 0.0
    %221 = vmatpush1.msra.mxu0 0.0
    %222 = vmatprep.subr.mxu0 0.0
    %223 = vmatpush1.msra.mxu0 0.0
    %224 = vmatprep.subr.mxu0 0.0
    %225 = vmatpush1.msra.mxu0 0.0
    %226 = vmatprep.subr.mxu0 0.0
    %227 = vmatpush1.msra.mxu0 0.0
    %228 = vmatprep.subr.mxu0 0.0
    %229 = vmatpush1.msra.mxu0 0.0
    %230 = vmatprep.subr.mxu0 0.0
    %231 = vmatpush1.msra.mxu0 0.0
    %232 = vmatprep.subr.mxu0 0.0
    %233 = vmatpush1.msra.mxu0 0.0
    %234 = vmatprep.subr.mxu0 0.0
    %235 = vmatpush1.msra.mxu0 0.0
    %236 = vmatprep.subr.mxu0 0.0
    %237 = vmatpush1.msra.mxu0 0.0
    %238 = vmatprep.subr.mxu0 0.0
    %239 = vmatpush1.msra.mxu0 0.0
    %240 = vmatprep.subr.mxu0 0.0
    %241 = vmatpush1.msra.mxu0 0.0
    %242 = vmatprep.subr.mxu0 0.0
    %243 = vmatpush1.msra.mxu0 0.0
    %244 = vmatprep.subr.mxu0 0.0
    %245 = vmatpush1.msra.mxu0 0.0
    %246 = vmatprep.subr.mxu0 0.0
    %247 = vmatpush1.msra.mxu0 0.0
    %248 = vmatprep.subr.mxu0 0.0
    %249 = vmatpush1.msra.mxu0 0.0
    %250 = vmatprep.mubr.f32.mxu0 0.0
    %251 = vmatmul.mubr.f32.gmra.mrb[0].mxu0 %v181
    %v252 = vpop.f32.mrb[0].mxu0
    %v253 = vadd.f32 %v172, %v252
    %v254 = vpop.f32.mrb[0].mxu0
    %v255 = vadd.f32 %v176, %v254
    %256 = vmatprep.mubr.f32.mxu0 0.0
    %257 = vmatmul.mubr.f32.gmra.mrb[0].mxu0 %v184
    %v258 = vpop.f32.mrb[0].mxu0
    %v259 = vadd.f32 %v172, %v258
    %v260 = vpop.f32.mrb[0].mxu0
    %v261 = vadd.f32 %v176, %v260
    %262 = vdwg.mxu0
    %vm263 = vcmp.gt.f32.partialorder %v149, 0.0
    %vm264 = vcmp.gt.f32.partialorder %v150, 0.0
    %267 = vrot.lane.b32.xlu0 %v253, 64
    %v268 = vpop.permute.xlu0 %267
    %269 = vrot.lane.b32.xlu0 %v259, 64
    %v270 = vpop.permute.xlu0 %269
    %vm271 = vcmask 64512
    %v272 = vsel %vm271, %v253, 0
    %v274 = vsel %vm271, %v259, 0
    %v276 = vsel %vm271, %v268, 0
    %v278 = vsel %vm271, %v270, 0
    %280 = vmatprep.subr.mxu0 0.0
    %281 = vmatpush1.xpose.msra.mxu0 %v276
    %282 = vmatprep.subr.mxu0 0.0
    %283 = vmatpush1.xpose.msra.mxu0 %v278
    %284 = vmatprep.subr.mxu0 0.0
    %285 = vmatpush1.xpose.msra.mxu0 0.0
    %286 = vmatprep.subr.mxu0 0.0
    %287 = vmatpush1.xpose.msra.mxu0 0.0
    %288 = vmatprep.subr.mxu0 0.0
    %289 = vmatpush1.xpose.msra.mxu0 0.0
    %290 = vmatprep.subr.mxu0 0.0
    %291 = vmatpush1.xpose.msra.mxu0 0.0
    %292 = vmatprep.subr.mxu0 0.0
    %293 = vmatpush1.xpose.msra.mxu0 0.0
    %294 = vmatprep.subr.mxu0 0.0
    %295 = vmatpush1.xpose.msra.mxu0 0.0
    %296 = vmatprep.subr.mxu0 0.0
    %297 = vmatpush1.xpose.msra.mxu0 0.0
    %298 = vmatprep.subr.mxu0 0.0
    %299 = vmatpush1.xpose.msra.mxu0 0.0
    %300 = vmatprep.subr.mxu0 0.0
    %301 = vmatpush1.xpose.msra.mxu0 0.0
    %302 = vmatprep.subr.mxu0 0.0
    %303 = vmatpush1.xpose.msra.mxu0 0.0
    %304 = vmatprep.subr.mxu0 0.0
    %305 = vmatpush1.xpose.msra.mxu0 0.0
    %306 = vmatprep.subr.mxu0 0.0
    %307 = vmatpush1.xpose.msra.mxu0 0.0
    %308 = vmatprep.subr.mxu0 0.0
    %309 = vmatpush1.xpose.msra.mxu0 0.0
    %310 = vmatprep.subr.mxu0 0.0
    %311 = vmatpush1.xpose.msra.mxu0 0.0
    %312 = vmatprep.subr.mxu0 0.0
    %313 = vmatpush1.xpose.msra.mxu0 0.0
    %314 = vmatprep.subr.mxu0 0.0
    %315 = vmatpush1.xpose.msra.mxu0 0.0
    %316 = vmatprep.subr.mxu0 0.0
    %317 = vmatpush1.xpose.msra.mxu0 0.0
    %318 = vmatprep.subr.mxu0 0.0
    %319 = vmatpush1.xpose.msra.mxu0 0.0
    %320 = vmatprep.subr.mxu0 0.0
    %321 = vmatpush1.xpose.msra.mxu0 0.0
    %322 = vmatprep.subr.mxu0 0.0
    %323 = vmatpush1.xpose.msra.mxu0 0.0
    %324 = vmatprep.subr.mxu0 0.0
    %325 = vmatpush1.xpose.msra.mxu0 0.0
    %326 = vmatprep.subr.mxu0 0.0
    %327 = vmatpush1.xpose.msra.mxu0 0.0
    %328 = vmatprep.subr.mxu0 0.0
    %329 = vmatpush1.xpose.msra.mxu0 0.0
    %330 = vmatprep.subr.mxu0 0.0
    %331 = vmatpush1.xpose.msra.mxu0 0.0
    %332 = vmatprep.subr.mxu0 0.0
    %333 = vmatpush1.xpose.msra.mxu0 0.0
    %334 = vmatprep.subr.mxu0 0.0
    %335 = vmatpush1.xpose.msra.mxu0 0.0
    %336 = vmatprep.subr.mxu0 0.0
    %337 = vmatpush1.xpose.msra.mxu0 0.0
    %338 = vmatprep.subr.mxu0 0.0
    %339 = vmatpush1.xpose.msra.mxu0 0.0
    %340 = vmatprep.subr.mxu0 0.0
    %341 = vmatpush1.xpose.msra.mxu0 0.0
    %342 = vmatprep.subr.mxu0 0.0
    %343 = vmatpush1.xpose.msra.mxu0 0.0
    %344 = vmatprep.mubr.f32.mxu0 0.0
    %345 = vmatmul.mubr.f32.gmra.mrb[0].mxu0 %v272
    %v346 = vpop.f32.mrb[0].mxu0
    %v347 = vadd.f32 0.0, %v346
    %v348 = vpop.f32.mrb[0].mxu0
    %349 = vmatprep.mubr.f32.mxu0 0.0
    %350 = vmatmul.mubr.f32.gmra.mrb[0].mxu0 %v274
    %v351 = vpop.f32.mrb[0].mxu0
    %v352 = vadd.f32 0.0, %v351
    %v353 = vpop.f32.mrb[0].mxu0
    %354 = vdwg.mxu0
    %v355 = vsel %vm263, %v347, -1e+30
    %v356 = vsel %vm264, %v352, -1e+30
    %vm357 = vcmask 130048
    %v358 = vsel %vm357, %v355, -inf
    %359 = vmax.xlane.f32.xlu0 %v358
    %v360 = vpop.xlane.xlu0 %359
    %v361 = vsel %vm357, %v356, -inf
    %362 = vmax.xlane.f32.xlu0 %v361
    %v363 = vpop.xlane.xlu0 %362
    %v364 = vsub.f32 %v355, %v360
    %v365 = vsub.f32 %v356, %v363
    %v366 = vmul.f32 %v364, 1.442695
    %v367 = vpow.pop %v366
    %v368 = vmul.f32 %v365, 1.442695
    %v369 = vpow.pop %v368
    %v370 = vmul.f32 %v149, %v367
    %v371 = vmul.f32 %v150, %v369
    %v372 = vsel %vm357, %v370, 0.0
    %373 = vadd.xlane.f32.xlu0 %v372
    %v374 = vpop.xlane.xlu0 %373
    %v375 = vsel %vm357, %v371, 0.0
    %376 = vadd.xlane.f32.xlu0 %v375
    %v377 = vpop.xlane.xlu0 %376
    %v378 = vmul.f32 %v374, 8.0
    %v379 = vmul.f32 %v377, 8.0
    %v380 = vrcp.pop %v378
    %v381 = vrcp.pop %v379
    %v382 = vmul.f32 %v370, %v380
    %v383 = vmul.f32 %v371, %v381
    %v385 = vsel %vm357, %v382, 0
    %v388 = vsel %vm357, %v383, 0
    %390 = vmatprep.subr.mxu0 0.0
    %391 = vmatpush1.msra.mxu0 %v255
    %392 = vmatprep.subr.mxu0 0.0
    %393 = vmatpush1.msra.mxu0 %v261
    %394 = vmatprep.subr.mxu0 0.0
    %395 = vmatpush1.msra.mxu0 0.0
    %396 = vmatprep.subr.mxu0 0.0
    %397 = vmatpush1.msra.mxu0 0.0
    %398 = vmatprep.subr.mxu0 0.0
    %399 = vmatpush1.msra.mxu0 0.0
    %400 = vmatprep.subr.mxu0 0.0
    %401 = vmatpush1.msra.mxu0 0.0
    %402 = vmatprep.subr.mxu0 0.0
    %403 = vmatpush1.msra.mxu0 0.0
    %404 = vmatprep.subr.mxu0 0.0
    %405 = vmatpush1.msra.mxu0 0.0
    %406 = vmatprep.subr.mxu0 0.0
    %407 = vmatpush1.msra.mxu0 0.0
    %408 = vmatprep.subr.mxu0 0.0
    %409 = vmatpush1.msra.mxu0 0.0
    %410 = vmatprep.subr.mxu0 0.0
    %411 = vmatpush1.msra.mxu0 0.0
    %412 = vmatprep.subr.mxu0 0.0
    %413 = vmatpush1.msra.mxu0 0.0
    %414 = vmatprep.subr.mxu0 0.0
    %415 = vmatpush1.msra.mxu0 0.0
    %416 = vmatprep.subr.mxu0 0.0
    %417 = vmatpush1.msra.mxu0 0.0
    %418 = vmatprep.subr.mxu0 0.0
    %419 = vmatpush1.msra.mxu0 0.0
    %420 = vmatprep.subr.mxu0 0.0
    %421 = vmatpush1.msra.mxu0 0.0
    %422 = vmatprep.subr.mxu0 0.0
    %423 = vmatpush1.msra.mxu0 0.0
    %424 = vmatprep.subr.mxu0 0.0
    %425 = vmatpush1.msra.mxu0 0.0
    %426 = vmatprep.subr.mxu0 0.0
    %427 = vmatpush1.msra.mxu0 0.0
    %428 = vmatprep.subr.mxu0 0.0
    %429 = vmatpush1.msra.mxu0 0.0
    %430 = vmatprep.subr.mxu0 0.0
    %431 = vmatpush1.msra.mxu0 0.0
    %432 = vmatprep.subr.mxu0 0.0
    %433 = vmatpush1.msra.mxu0 0.0
    %434 = vmatprep.subr.mxu0 0.0
    %435 = vmatpush1.msra.mxu0 0.0
    %436 = vmatprep.subr.mxu0 0.0
    %437 = vmatpush1.msra.mxu0 0.0
    %438 = vmatprep.subr.mxu0 0.0
    %439 = vmatpush1.msra.mxu0 0.0
    %440 = vmatprep.subr.mxu0 0.0
    %441 = vmatpush1.msra.mxu0 0.0
    %442 = vmatprep.subr.mxu0 0.0
    %443 = vmatpush1.msra.mxu0 0.0
    %444 = vmatprep.subr.mxu0 0.0
    %445 = vmatpush1.msra.mxu0 0.0
    %446 = vmatprep.subr.mxu0 0.0
    %447 = vmatpush1.msra.mxu0 0.0
    %448 = vmatprep.subr.mxu0 0.0
    %449 = vmatpush1.msra.mxu0 0.0
    %450 = vmatprep.subr.mxu0 0.0
    %451 = vmatpush1.msra.mxu0 0.0
    %452 = vmatprep.subr.mxu0 0.0
    %453 = vmatpush1.msra.mxu0 0.0
    %454 = vmatprep.mubr.f32.mxu0 0.0
    %455 = vmatmul.mubr.f32.gmra.mrb[0].mxu0 %v385
    %v456 = vpop.f32.mrb[0].mxu0
    %v457 = vadd.f32 0.0, %v456
    %v458 = vpop.f32.mrb[0].mxu0
    %459 = vmatprep.mubr.f32.mxu0 0.0
    %460 = vmatmul.mubr.f32.gmra.mrb[0].mxu0 %v388
    %v461 = vpop.f32.mrb[0].mxu0
    %v462 = vadd.f32 0.0, %v461
    %v463 = vpop.f32.mrb[0].mxu0
    %464 = vdwg.mxu0
    %465 = vrot.lane.b32.xlu0 %v253, 120
    %v466 = vpop.permute.xlu0 %465
    %467 = vrot.lane.b32.xlu0 %v259, 120
    %v468 = vpop.permute.xlu0 %467
    %469 = vrot.lane.b32.xlu0 %v253, 56
    %v470 = vpop.permute.xlu0 %469
    %471 = vrot.lane.b32.xlu0 %v259, 56
    %v472 = vpop.permute.xlu0 %471
    %v473 = vsel %vm271, %v466, 0
    %v475 = vsel %vm271, %v468, 0
    %v477 = vsel %vm271, %v470, 0
    %v479 = vsel %vm271, %v472, 0
    %481 = vmatprep.subr.mxu0 0.0
    %482 = vmatpush1.xpose.msra.mxu0 %v477
    %483 = vmatprep.subr.mxu0 0.0
    %484 = vmatpush1.xpose.msra.mxu0 %v479
    %485 = vmatprep.subr.mxu0 0.0
    %486 = vmatpush1.xpose.msra.mxu0 0.0
    %487 = vmatprep.subr.mxu0 0.0
    %488 = vmatpush1.xpose.msra.mxu0 0.0
    %489 = vmatprep.subr.mxu0 0.0
    %490 = vmatpush1.xpose.msra.mxu0 0.0
    %491 = vmatprep.subr.mxu0 0.0
    %492 = vmatpush1.xpose.msra.mxu0 0.0
    %493 = vmatprep.subr.mxu0 0.0
    %494 = vmatpush1.xpose.msra.mxu0 0.0
    %495 = vmatprep.subr.mxu0 0.0
    %496 = vmatpush1.xpose.msra.mxu0 0.0
    %497 = vmatprep.subr.mxu0 0.0
    %498 = vmatpush1.xpose.msra.mxu0 0.0
    %499 = vmatprep.subr.mxu0 0.0
    %500 = vmatpush1.xpose.msra.mxu0 0.0
    %501 = vmatprep.subr.mxu0 0.0
    %502 = vmatpush1.xpose.msra.mxu0 0.0
    %503 = vmatprep.subr.mxu0 0.0
    %504 = vmatpush1.xpose.msra.mxu0 0.0
    %505 = vmatprep.subr.mxu0 0.0
    %506 = vmatpush1.xpose.msra.mxu0 0.0
    %507 = vmatprep.subr.mxu0 0.0
    %508 = vmatpush1.xpose.msra.mxu0 0.0
    %509 = vmatprep.subr.mxu0 0.0
    %510 = vmatpush1.xpose.msra.mxu0 0.0
    %511 = vmatprep.subr.mxu0 0.0
    %512 = vmatpush1.xpose.msra.mxu0 0.0
    %513 = vmatprep.subr.mxu0 0.0
    %514 = vmatpush1.xpose.msra.mxu0 0.0
    %515 = vmatprep.subr.mxu0 0.0
    %516 = vmatpush1.xpose.msra.mxu0 0.0
    %517 = vmatprep.subr.mxu0 0.0
    %518 = vmatpush1.xpose.msra.mxu0 0.0
    %519 = vmatprep.subr.mxu0 0.0
    %520 = vmatpush1.xpose.msra.mxu0 0.0
    %521 = vmatprep.subr.mxu0 0.0
    %522 = vmatpush1.xpose.msra.mxu0 0.0
    %523 = vmatprep.subr.mxu0 0.0
    %524 = vmatpush1.xpose.msra.mxu0 0.0
    %525 = vmatprep.subr.mxu0 0.0
    %526 = vmatpush1.xpose.msra.mxu0 0.0
    %527 = vmatprep.subr.mxu0 0.0
    %528 = vmatpush1.xpose.msra.mxu0 0.0
    %529 = vmatprep.subr.mxu0 0.0
    %530 = vmatpush1.xpose.msra.mxu0 0.0
    %531 = vmatprep.subr.mxu0 0.0
    %532 = vmatpush1.xpose.msra.mxu0 0.0
    %533 = vmatprep.subr.mxu0 0.0
    %534 = vmatpush1.xpose.msra.mxu0 0.0
    %535 = vmatprep.subr.mxu0 0.0
    %536 = vmatpush1.xpose.msra.mxu0 0.0
    %537 = vmatprep.subr.mxu0 0.0
    %538 = vmatpush1.xpose.msra.mxu0 0.0
    %539 = vmatprep.subr.mxu0 0.0
    %540 = vmatpush1.xpose.msra.mxu0 0.0
    %541 = vmatprep.subr.mxu0 0.0
    %542 = vmatpush1.xpose.msra.mxu0 0.0
    %543 = vmatprep.subr.mxu0 0.0
    %544 = vmatpush1.xpose.msra.mxu0 0.0
    %545 = vmatprep.mubr.f32.mxu0 0.0
    %546 = vmatmul.mubr.f32.gmra.mrb[0].mxu0 %v473
    %v547 = vpop.f32.mrb[0].mxu0
    %v548 = vadd.f32 0.0, %v547
    %v549 = vpop.f32.mrb[0].mxu0
    %550 = vmatprep.mubr.f32.mxu0 0.0
    %551 = vmatmul.mubr.f32.gmra.mrb[0].mxu0 %v475
    %v552 = vpop.f32.mrb[0].mxu0
    %v553 = vadd.f32 0.0, %v552
    %v554 = vpop.f32.mrb[0].mxu0
    %555 = vdwg.mxu0
    %v556 = vsel %vm263, %v548, -1e+30
    %v557 = vsel %vm264, %v553, -1e+30
    %v558 = vsel %vm357, %v556, -inf
    %559 = vmax.xlane.f32.xlu0 %v558
    %v560 = vpop.xlane.xlu0 %559
    %v561 = vsel %vm357, %v557, -inf
    %562 = vmax.xlane.f32.xlu0 %v561
    %v563 = vpop.xlane.xlu0 %562
    %v564 = vsub.f32 %v556, %v560
    %v565 = vsub.f32 %v557, %v563
    %v566 = vmul.f32 %v564, 1.442695
    %v567 = vpow.pop %v566
    %v568 = vmul.f32 %v565, 1.442695
    %v569 = vpow.pop %v568
    %v570 = vmul.f32 %v149, %v567
    %v571 = vmul.f32 %v150, %v569
    %v572 = vsel %vm357, %v570, 0.0
    %573 = vadd.xlane.f32.xlu0 %v572
    %v574 = vpop.xlane.xlu0 %573
    %v575 = vsel %vm357, %v571, 0.0
    %576 = vadd.xlane.f32.xlu0 %v575
    %v577 = vpop.xlane.xlu0 %576
    %v578 = vmul.f32 %v574, 8.0
    %v579 = vmul.f32 %v577, 8.0
    %v580 = vrcp.pop %v578
    %v581 = vrcp.pop %v579
    %v582 = vmul.f32 %v570, %v580
    %v583 = vmul.f32 %v571, %v581
    %586 = vrot.lane.b32.xlu0 %v255, 120
    %v587 = vpop.permute.xlu0 %586
    %588 = vrot.lane.b32.xlu0 %v261, 120
    %v589 = vpop.permute.xlu0 %588
    %v593 = vsel %vm357, %v582, 0
    %v596 = vsel %vm357, %v583, 0
    %598 = vmatprep.subr.mxu0 0.0
    %599 = vmatpush1.msra.mxu0 %v587
    %600 = vmatprep.subr.mxu0 0.0
    %601 = vmatpush1.msra.mxu0 %v589
    %602 = vmatprep.subr.mxu0 0.0
    %603 = vmatpush1.msra.mxu0 0.0
    %604 = vmatprep.subr.mxu0 0.0
    %605 = vmatpush1.msra.mxu0 0.0
    %606 = vmatprep.subr.mxu0 0.0
    %607 = vmatpush1.msra.mxu0 0.0
    %608 = vmatprep.subr.mxu0 0.0
    %609 = vmatpush1.msra.mxu0 0.0
    %610 = vmatprep.subr.mxu0 0.0
    %611 = vmatpush1.msra.mxu0 0.0
    %612 = vmatprep.subr.mxu0 0.0
    %613 = vmatpush1.msra.mxu0 0.0
    %614 = vmatprep.subr.mxu0 0.0
    %615 = vmatpush1.msra.mxu0 0.0
    %616 = vmatprep.subr.mxu0 0.0
    %617 = vmatpush1.msra.mxu0 0.0
    %618 = vmatprep.subr.mxu0 0.0
    %619 = vmatpush1.msra.mxu0 0.0
    %620 = vmatprep.subr.mxu0 0.0
    %621 = vmatpush1.msra.mxu0 0.0
    %622 = vmatprep.subr.mxu0 0.0
    %623 = vmatpush1.msra.mxu0 0.0
    %624 = vmatprep.subr.mxu0 0.0
    %625 = vmatpush1.msra.mxu0 0.0
    %626 = vmatprep.subr.mxu0 0.0
    %627 = vmatpush1.msra.mxu0 0.0
    %628 = vmatprep.subr.mxu0 0.0
    %629 = vmatpush1.msra.mxu0 0.0
    %630 = vmatprep.subr.mxu0 0.0
    %631 = vmatpush1.msra.mxu0 0.0
    %632 = vmatprep.subr.mxu0 0.0
    %633 = vmatpush1.msra.mxu0 0.0
    %634 = vmatprep.subr.mxu0 0.0
    %635 = vmatpush1.msra.mxu0 0.0
    %636 = vmatprep.subr.mxu0 0.0
    %637 = vmatpush1.msra.mxu0 0.0
    %638 = vmatprep.subr.mxu0 0.0
    %639 = vmatpush1.msra.mxu0 0.0
    %640 = vmatprep.subr.mxu0 0.0
    %641 = vmatpush1.msra.mxu0 0.0
    %642 = vmatprep.subr.mxu0 0.0
    %643 = vmatpush1.msra.mxu0 0.0
    %644 = vmatprep.subr.mxu0 0.0
    %645 = vmatpush1.msra.mxu0 0.0
    %646 = vmatprep.subr.mxu0 0.0
    %647 = vmatpush1.msra.mxu0 0.0
    %648 = vmatprep.subr.mxu0 0.0
    %649 = vmatpush1.msra.mxu0 0.0
    %650 = vmatprep.subr.mxu0 0.0
    %651 = vmatpush1.msra.mxu0 0.0
    %652 = vmatprep.subr.mxu0 0.0
    %653 = vmatpush1.msra.mxu0 0.0
    %654 = vmatprep.subr.mxu0 0.0
    %655 = vmatpush1.msra.mxu0 0.0
    %656 = vmatprep.subr.mxu0 0.0
    %657 = vmatpush1.msra.mxu0 0.0
    %658 = vmatprep.subr.mxu0 0.0
    %659 = vmatpush1.msra.mxu0 0.0
    %660 = vmatprep.subr.mxu0 0.0
    %661 = vmatpush1.msra.mxu0 0.0
    %662 = vmatprep.mubr.f32.mxu0 0.0
    %663 = vmatmul.mubr.f32.gmra.mrb[0].mxu0 %v593
    %v664 = vpop.f32.mrb[0].mxu0
    %v665 = vadd.f32 0.0, %v664
    %v666 = vpop.f32.mrb[0].mxu0
    %667 = vmatprep.mubr.f32.mxu0 0.0
    %668 = vmatmul.mubr.f32.gmra.mrb[0].mxu0 %v596
    %v669 = vpop.f32.mrb[0].mxu0
    %v670 = vadd.f32 0.0, %v669
    %v671 = vpop.f32.mrb[0].mxu0
    %672 = vdwg.mxu0
    %673 = vrot.lane.b32.xlu0 %v253, 112
    %v674 = vpop.permute.xlu0 %673
    %675 = vrot.lane.b32.xlu0 %v259, 112
    %v676 = vpop.permute.xlu0 %675
    %677 = vrot.lane.b32.xlu0 %v253, 48
    %v678 = vpop.permute.xlu0 %677
    %679 = vrot.lane.b32.xlu0 %v259, 48
    %v680 = vpop.permute.xlu0 %679
    %v681 = vsel %vm271, %v674, 0
    %v683 = vsel %vm271, %v676, 0
    %v685 = vsel %vm271, %v678, 0
    %v687 = vsel %vm271, %v680, 0
    %689 = vmatprep.subr.mxu0 0.0
    %690 = vmatpush1.xpose.msra.mxu0 %v685
    %691 = vmatprep.subr.mxu0 0.0
    %692 = vmatpush1.xpose.msra.mxu0 %v687
    %693 = vmatprep.subr.mxu0 0.0
    %694 = vmatpush1.xpose.msra.mxu0 0.0
    %695 = vmatprep.subr.mxu0 0.0
    %696 = vmatpush1.xpose.msra.mxu0 0.0
    %697 = vmatprep.subr.mxu0 0.0
    %698 = vmatpush1.xpose.msra.mxu0 0.0
    %699 = vmatprep.subr.mxu0 0.0
    %700 = vmatpush1.xpose.msra.mxu0 0.0
    %701 = vmatprep.subr.mxu0 0.0
    %702 = vmatpush1.xpose.msra.mxu0 0.0
    %703 = vmatprep.subr.mxu0 0.0
    %704 = vmatpush1.xpose.msra.mxu0 0.0
    %705 = vmatprep.subr.mxu0 0.0
    %706 = vmatpush1.xpose.msra.mxu0 0.0
    %707 = vmatprep.subr.mxu0 0.0
    %708 = vmatpush1.xpose.msra.mxu0 0.0
    %709 = vmatprep.subr.mxu0 0.0
    %710 = vmatpush1.xpose.msra.mxu0 0.0
    %711 = vmatprep.subr.mxu0 0.0
    %712 = vmatpush1.xpose.msra.mxu0 0.0
    %713 = vmatprep.subr.mxu0 0.0
    %714 = vmatpush1.xpose.msra.mxu0 0.0
    %715 = vmatprep.subr.mxu0 0.0
    %716 = vmatpush1.xpose.msra.mxu0 0.0
    %717 = vmatprep.subr.mxu0 0.0
    %718 = vmatpush1.xpose.msra.mxu0 0.0
    %719 = vmatprep.subr.mxu0 0.0
    %720 = vmatpush1.xpose.msra.mxu0 0.0
    %721 = vmatprep.subr.mxu0 0.0
    %722 = vmatpush1.xpose.msra.mxu0 0.0
    %723 = vmatprep.subr.mxu0 0.0
    %724 = vmatpush1.xpose.msra.mxu0 0.0
    %725 = vmatprep.subr.mxu0 0.0
    %726 = vmatpush1.xpose.msra.mxu0 0.0
    %727 = vmatprep.subr.mxu0 0.0
    %728 = vmatpush1.xpose.msra.mxu0 0.0
    %729 = vmatprep.subr.mxu0 0.0
    %730 = vmatpush1.xpose.msra.mxu0 0.0
    %731 = vmatprep.subr.mxu0 0.0
    %732 = vmatpush1.xpose.msra.mxu0 0.0
    %733 = vmatprep.subr.mxu0 0.0
    %734 = vmatpush1.xpose.msra.mxu0 0.0
    %735 = vmatprep.subr.mxu0 0.0
    %736 = vmatpush1.xpose.msra.mxu0 0.0
    %737 = vmatprep.subr.mxu0 0.0
    %738 = vmatpush1.xpose.msra.mxu0 0.0
    %739 = vmatprep.subr.mxu0 0.0
    %740 = vmatpush1.xpose.msra.mxu0 0.0
    %741 = vmatprep.subr.mxu0 0.0
    %742 = vmatpush1.xpose.msra.mxu0 0.0
    %743 = vmatprep.subr.mxu0 0.0
    %744 = vmatpush1.xpose.msra.mxu0 0.0
    %745 = vmatprep.subr.mxu0 0.0
    %746 = vmatpush1.xpose.msra.mxu0 0.0
    %747 = vmatprep.subr.mxu0 0.0
    %748 = vmatpush1.xpose.msra.mxu0 0.0
    %749 = vmatprep.subr.mxu0 0.0
    %750 = vmatpush1.xpose.msra.mxu0 0.0
    %751 = vmatprep.subr.mxu0 0.0
    %752 = vmatpush1.xpose.msra.mxu0 0.0
    %753 = vmatprep.mubr.f32.mxu0 0.0
    %754 = vmatmul.mubr.f32.gmra.mrb[0].mxu0 %v681
    %v755 = vpop.f32.mrb[0].mxu0
    %v756 = vadd.f32 0.0, %v755
    %v757 = vpop.f32.mrb[0].mxu0
    %758 = vmatprep.mubr.f32.mxu0 0.0
    %759 = vmatmul.mubr.f32.gmra.mrb[0].mxu0 %v683
    %v760 = vpop.f32.mrb[0].mxu0
    %v761 = vadd.f32 0.0, %v760
    %v762 = vpop.f32.mrb[0].mxu0
    %763 = vdwg.mxu0
    %v764 = vsel %vm263, %v756, -1e+30
    %v765 = vsel %vm264, %v761, -1e+30
    %v766 = vsel %vm357, %v764, -inf
    %767 = vmax.xlane.f32.xlu0 %v766
    %v768 = vpop.xlane.xlu0 %767
    %v769 = vsel %vm357, %v765, -inf
    %770 = vmax.xlane.f32.xlu0 %v769
    %v771 = vpop.xlane.xlu0 %770
    %v772 = vsub.f32 %v764, %v768
    %v773 = vsub.f32 %v765, %v771
    %v774 = vmul.f32 %v772, 1.442695
    %v775 = vpow.pop %v774
    %v776 = vmul.f32 %v773, 1.442695
    %v777 = vpow.pop %v776
    %v778 = vmul.f32 %v149, %v775
    %v779 = vmul.f32 %v150, %v777
    %v780 = vsel %vm357, %v778, 0.0
    %781 = vadd.xlane.f32.xlu0 %v780
    %v782 = vpop.xlane.xlu0 %781
    %v783 = vsel %vm357, %v779, 0.0
    %784 = vadd.xlane.f32.xlu0 %v783
    %v785 = vpop.xlane.xlu0 %784
    %v786 = vmul.f32 %v782, 8.0
    %v787 = vmul.f32 %v785, 8.0
    %v788 = vrcp.pop %v786
    %v789 = vrcp.pop %v787
    %v790 = vmul.f32 %v778, %v788
    %v791 = vmul.f32 %v779, %v789
    %792 = vrot.lane.b32.xlu0 %v255, 112
    %v793 = vpop.permute.xlu0 %792
    %794 = vrot.lane.b32.xlu0 %v261, 112
    %v795 = vpop.permute.xlu0 %794
    %v799 = vsel %vm357, %v790, 0
    %v802 = vsel %vm357, %v791, 0
    %804 = vmatprep.subr.mxu0 0.0
    %805 = vmatpush1.msra.mxu0 %v793
    %806 = vmatprep.subr.mxu0 0.0
    %807 = vmatpush1.msra.mxu0 %v795
    %808 = vmatprep.subr.mxu0 0.0
    %809 = vmatpush1.msra.mxu0 0.0
    %810 = vmatprep.subr.mxu0 0.0
    %811 = vmatpush1.msra.mxu0 0.0
    %812 = vmatprep.subr.mxu0 0.0
    %813 = vmatpush1.msra.mxu0 0.0
    %814 = vmatprep.subr.mxu0 0.0
    %815 = vmatpush1.msra.mxu0 0.0
    %816 = vmatprep.subr.mxu0 0.0
    %817 = vmatpush1.msra.mxu0 0.0
    %818 = vmatprep.subr.mxu0 0.0
    %819 = vmatpush1.msra.mxu0 0.0
    %820 = vmatprep.subr.mxu0 0.0
    %821 = vmatpush1.msra.mxu0 0.0
    %822 = vmatprep.subr.mxu0 0.0
    %823 = vmatpush1.msra.mxu0 0.0
    %824 = vmatprep.subr.mxu0 0.0
    %825 = vmatpush1.msra.mxu0 0.0
    %826 = vmatprep.subr.mxu0 0.0
    %827 = vmatpush1.msra.mxu0 0.0
    %828 = vmatprep.subr.mxu0 0.0
    %829 = vmatpush1.msra.mxu0 0.0
    %830 = vmatprep.subr.mxu0 0.0
    %831 = vmatpush1.msra.mxu0 0.0
    %832 = vmatprep.subr.mxu0 0.0
    %833 = vmatpush1.msra.mxu0 0.0
    %834 = vmatprep.subr.mxu0 0.0
    %835 = vmatpush1.msra.mxu0 0.0
    %836 = vmatprep.subr.mxu0 0.0
    %837 = vmatpush1.msra.mxu0 0.0
    %838 = vmatprep.subr.mxu0 0.0
    %839 = vmatpush1.msra.mxu0 0.0
    %840 = vmatprep.subr.mxu0 0.0
    %841 = vmatpush1.msra.mxu0 0.0
    %842 = vmatprep.subr.mxu0 0.0
    %843 = vmatpush1.msra.mxu0 0.0
    %844 = vmatprep.subr.mxu0 0.0
    %845 = vmatpush1.msra.mxu0 0.0
    %846 = vmatprep.subr.mxu0 0.0
    %847 = vmatpush1.msra.mxu0 0.0
    %848 = vmatprep.subr.mxu0 0.0
    %849 = vmatpush1.msra.mxu0 0.0
    %850 = vmatprep.subr.mxu0 0.0
    %851 = vmatpush1.msra.mxu0 0.0
    %852 = vmatprep.subr.mxu0 0.0
    %853 = vmatpush1.msra.mxu0 0.0
    %854 = vmatprep.subr.mxu0 0.0
    %855 = vmatpush1.msra.mxu0 0.0
    %856 = vmatprep.subr.mxu0 0.0
    %857 = vmatpush1.msra.mxu0 0.0
    %858 = vmatprep.subr.mxu0 0.0
    %859 = vmatpush1.msra.mxu0 0.0
    %860 = vmatprep.subr.mxu0 0.0
    %861 = vmatpush1.msra.mxu0 0.0
    %862 = vmatprep.subr.mxu0 0.0
    %863 = vmatpush1.msra.mxu0 0.0
    %864 = vmatprep.subr.mxu0 0.0
    %865 = vmatpush1.msra.mxu0 0.0
    %866 = vmatprep.subr.mxu0 0.0
    %867 = vmatpush1.msra.mxu0 0.0
    %868 = vmatprep.mubr.f32.mxu0 0.0
    %869 = vmatmul.mubr.f32.gmra.mrb[0].mxu0 %v799
    %v870 = vpop.f32.mrb[0].mxu0
    %v871 = vadd.f32 0.0, %v870
    %v872 = vpop.f32.mrb[0].mxu0
    %873 = vmatprep.mubr.f32.mxu0 0.0
    %874 = vmatmul.mubr.f32.gmra.mrb[0].mxu0 %v802
    %v875 = vpop.f32.mrb[0].mxu0
    %v876 = vadd.f32 0.0, %v875
    %v877 = vpop.f32.mrb[0].mxu0
    %878 = vdwg.mxu0
    %879 = vrot.lane.b32.xlu0 %v253, 104
    %v880 = vpop.permute.xlu0 %879
    %881 = vrot.lane.b32.xlu0 %v259, 104
    %v882 = vpop.permute.xlu0 %881
    %883 = vrot.lane.b32.xlu0 %v253, 40
    %v884 = vpop.permute.xlu0 %883
    %885 = vrot.lane.b32.xlu0 %v259, 40
    %v886 = vpop.permute.xlu0 %885
    %v887 = vsel %vm271, %v880, 0
    %v889 = vsel %vm271, %v882, 0
    %v891 = vsel %vm271, %v884, 0
    %v893 = vsel %vm271, %v886, 0
    %895 = vmatprep.subr.mxu0 0.0
    %896 = vmatpush1.xpose.msra.mxu0 %v891
    %897 = vmatprep.subr.mxu0 0.0
    %898 = vmatpush1.xpose.msra.mxu0 %v893
    %899 = vmatprep.subr.mxu0 0.0
    %900 = vmatpush1.xpose.msra.mxu0 0.0
    %901 = vmatprep.subr.mxu0 0.0
    %902 = vmatpush1.xpose.msra.mxu0 0.0
    %903 = vmatprep.subr.mxu0 0.0
    %904 = vmatpush1.xpose.msra.mxu0 0.0
    %905 = vmatprep.subr.mxu0 0.0
    %906 = vmatpush1.xpose.msra.mxu0 0.0
    %907 = vmatprep.subr.mxu0 0.0
    %908 = vmatpush1.xpose.msra.mxu0 0.0
    %909 = vmatprep.subr.mxu0 0.0
    %910 = vmatpush1.xpose.msra.mxu0 0.0
    %911 = vmatprep.subr.mxu0 0.0
    %912 = vmatpush1.xpose.msra.mxu0 0.0
    %913 = vmatprep.subr.mxu0 0.0
    %914 = vmatpush1.xpose.msra.mxu0 0.0
    %915 = vmatprep.subr.mxu0 0.0
    %916 = vmatpush1.xpose.msra.mxu0 0.0
    %917 = vmatprep.subr.mxu0 0.0
    %918 = vmatpush1.xpose.msra.mxu0 0.0
    %919 = vmatprep.subr.mxu0 0.0
    %920 = vmatpush1.xpose.msra.mxu0 0.0
    %921 = vmatprep.subr.mxu0 0.0
    %922 = vmatpush1.xpose.msra.mxu0 0.0
    %923 = vmatprep.subr.mxu0 0.0
    %924 = vmatpush1.xpose.msra.mxu0 0.0
    %925 = vmatprep.subr.mxu0 0.0
    %926 = vmatpush1.xpose.msra.mxu0 0.0
    %927 = vmatprep.subr.mxu0 0.0
    %928 = vmatpush1.xpose.msra.mxu0 0.0
    %929 = vmatprep.subr.mxu0 0.0
    %930 = vmatpush1.xpose.msra.mxu0 0.0
    %931 = vmatprep.subr.mxu0 0.0
    %932 = vmatpush1.xpose.msra.mxu0 0.0
    %933 = vmatprep.subr.mxu0 0.0
    %934 = vmatpush1.xpose.msra.mxu0 0.0
    %935 = vmatprep.subr.mxu0 0.0
    %936 = vmatpush1.xpose.msra.mxu0 0.0
    %937 = vmatprep.subr.mxu0 0.0
    %938 = vmatpush1.xpose.msra.mxu0 0.0
    %939 = vmatprep.subr.mxu0 0.0
    %940 = vmatpush1.xpose.msra.mxu0 0.0
    %941 = vmatprep.subr.mxu0 0.0
    %942 = vmatpush1.xpose.msra.mxu0 0.0
    %943 = vmatprep.subr.mxu0 0.0
    %944 = vmatpush1.xpose.msra.mxu0 0.0
    %945 = vmatprep.subr.mxu0 0.0
    %946 = vmatpush1.xpose.msra.mxu0 0.0
    %947 = vmatprep.subr.mxu0 0.0
    %948 = vmatpush1.xpose.msra.mxu0 0.0
    %949 = vmatprep.subr.mxu0 0.0
    %950 = vmatpush1.xpose.msra.mxu0 0.0
    %951 = vmatprep.subr.mxu0 0.0
    %952 = vmatpush1.xpose.msra.mxu0 0.0
    %953 = vmatprep.subr.mxu0 0.0
    %954 = vmatpush1.xpose.msra.mxu0 0.0
    %955 = vmatprep.subr.mxu0 0.0
    %956 = vmatpush1.xpose.msra.mxu0 0.0
    %957 = vmatprep.subr.mxu0 0.0
    %958 = vmatpush1.xpose.msra.mxu0 0.0
    %959 = vmatprep.mubr.f32.mxu0 0.0
    %960 = vmatmul.mubr.f32.gmra.mrb[0].mxu0 %v887
    %v961 = vpop.f32.mrb[0].mxu0
    %v962 = vadd.f32 0.0, %v961
    %v963 = vpop.f32.mrb[0].mxu0
    %964 = vmatprep.mubr.f32.mxu0 0.0
    %965 = vmatmul.mubr.f32.gmra.mrb[0].mxu0 %v889
    %v966 = vpop.f32.mrb[0].mxu0
    %v967 = vadd.f32 0.0, %v966
    %v968 = vpop.f32.mrb[0].mxu0
    %969 = vdwg.mxu0
    %v970 = vsel %vm263, %v962, -1e+30
    %v971 = vsel %vm264, %v967, -1e+30
    %v972 = vsel %vm357, %v970, -inf
    %973 = vmax.xlane.f32.xlu0 %v972
    %v974 = vpop.xlane.xlu0 %973
    %v975 = vsel %vm357, %v971, -inf
    %976 = vmax.xlane.f32.xlu0 %v975
    %v977 = vpop.xlane.xlu0 %976
    %v978 = vsub.f32 %v970, %v974
    %v979 = vsub.f32 %v971, %v977
    %v980 = vmul.f32 %v978, 1.442695
    %v981 = vpow.pop %v980
    %v982 = vmul.f32 %v979, 1.442695
    %v983 = vpow.pop %v982
    %v984 = vmul.f32 %v149, %v981
    %v985 = vmul.f32 %v150, %v983
    %v986 = vsel %vm357, %v984, 0.0
    %987 = vadd.xlane.f32.xlu0 %v986
    %v988 = vpop.xlane.xlu0 %987
    %v989 = vsel %vm357, %v985, 0.0
    %990 = vadd.xlane.f32.xlu0 %v989
    %v991 = vpop.xlane.xlu0 %990
    %v992 = vmul.f32 %v988, 8.0
    %v993 = vmul.f32 %v991, 8.0
    %v994 = vrcp.pop %v992
    %v995 = vrcp.pop %v993
    %v996 = vmul.f32 %v984, %v994
    %v997 = vmul.f32 %v985, %v995
    %998 = vrot.lane.b32.xlu0 %v255, 104
    %v999 = vpop.permute.xlu0 %998
    %1000 = vrot.lane.b32.xlu0 %v261, 104
    %v1001 = vpop.permute.xlu0 %1000
    %v1005 = vsel %vm357, %v996, 0
    %v1008 = vsel %vm357, %v997, 0
    %1010 = vmatprep.subr.mxu0 0.0
    %1011 = vmatpush1.msra.mxu0 %v999
    %1012 = vmatprep.subr.mxu0 0.0
    %1013 = vmatpush1.msra.mxu0 %v1001
    %1014 = vmatprep.subr.mxu0 0.0
    %1015 = vmatpush1.msra.mxu0 0.0
    %1016 = vmatprep.subr.mxu0 0.0
    %1017 = vmatpush1.msra.mxu0 0.0
    %1018 = vmatprep.subr.mxu0 0.0
    %1019 = vmatpush1.msra.mxu0 0.0
    %1020 = vmatprep.subr.mxu0 0.0
    %1021 = vmatpush1.msra.mxu0 0.0
    %1022 = vmatprep.subr.mxu0 0.0
    %1023 = vmatpush1.msra.mxu0 0.0
    %1024 = vmatprep.subr.mxu0 0.0
    %1025 = vmatpush1.msra.mxu0 0.0
    %1026 = vmatprep.subr.mxu0 0.0
    %1027 = vmatpush1.msra.mxu0 0.0
    %1028 = vmatprep.subr.mxu0 0.0
    %1029 = vmatpush1.msra.mxu0 0.0
    %1030 = vmatprep.subr.mxu0 0.0
    %1031 = vmatpush1.msra.mxu0 0.0
    %1032 = vmatprep.subr.mxu0 0.0
    %1033 = vmatpush1.msra.mxu0 0.0
    %1034 = vmatprep.subr.mxu0 0.0
    %1035 = vmatpush1.msra.mxu0 0.0
    %1036 = vmatprep.subr.mxu0 0.0
    %1037 = vmatpush1.msra.mxu0 0.0
    %1038 = vmatprep.subr.mxu0 0.0
    %1039 = vmatpush1.msra.mxu0 0.0
    %1040 = vmatprep.subr.mxu0 0.0
    %1041 = vmatpush1.msra.mxu0 0.0
    %1042 = vmatprep.subr.mxu0 0.0
    %1043 = vmatpush1.msra.mxu0 0.0
    %1044 = vmatprep.subr.mxu0 0.0
    %1045 = vmatpush1.msra.mxu0 0.0
    %1046 = vmatprep.subr.mxu0 0.0
    %1047 = vmatpush1.msra.mxu0 0.0
    %1048 = vmatprep.subr.mxu0 0.0
    %1049 = vmatpush1.msra.mxu0 0.0
    %1050 = vmatprep.subr.mxu0 0.0
    %1051 = vmatpush1.msra.mxu0 0.0
    %1052 = vmatprep.subr.mxu0 0.0
    %1053 = vmatpush1.msra.mxu0 0.0
    %1054 = vmatprep.subr.mxu0 0.0
    %1055 = vmatpush1.msra.mxu0 0.0
    %1056 = vmatprep.subr.mxu0 0.0
    %1057 = vmatpush1.msra.mxu0 0.0
    %1058 = vmatprep.subr.mxu0 0.0
    %1059 = vmatpush1.msra.mxu0 0.0
    %1060 = vmatprep.subr.mxu0 0.0
    %1061 = vmatpush1.msra.mxu0 0.0
    %1062 = vmatprep.subr.mxu0 0.0
    %1063 = vmatpush1.msra.mxu0 0.0
    %1064 = vmatprep.subr.mxu0 0.0
    %1065 = vmatpush1.msra.mxu0 0.0
    %1066 = vmatprep.subr.mxu0 0.0
    %1067 = vmatpush1.msra.mxu0 0.0
    %1068 = vmatprep.subr.mxu0 0.0
    %1069 = vmatpush1.msra.mxu0 0.0
    %1070 = vmatprep.subr.mxu0 0.0
    %1071 = vmatpush1.msra.mxu0 0.0
    %1072 = vmatprep.subr.mxu0 0.0
    %1073 = vmatpush1.msra.mxu0 0.0
    %1074 = vmatprep.mubr.f32.mxu0 0.0
    %1075 = vmatmul.mubr.f32.gmra.mrb[0].mxu0 %v1005
    %v1076 = vpop.f32.mrb[0].mxu0
    %v1077 = vadd.f32 0.0, %v1076
    %v1078 = vpop.f32.mrb[0].mxu0
    %1079 = vmatprep.mubr.f32.mxu0 0.0
    %1080 = vmatmul.mubr.f32.gmra.mrb[0].mxu0 %v1008
    %v1081 = vpop.f32.mrb[0].mxu0
    %v1082 = vadd.f32 0.0, %v1081
    %v1083 = vpop.f32.mrb[0].mxu0
    %1084 = vdwg.mxu0
    %1085 = vrot.lane.b32.xlu0 %v253, 96
    %v1086 = vpop.permute.xlu0 %1085
    %1087 = vrot.lane.b32.xlu0 %v259, 96
    %v1088 = vpop.permute.xlu0 %1087
    %1089 = vrot.lane.b32.xlu0 %v253, 32
    %v1090 = vpop.permute.xlu0 %1089
    %1091 = vrot.lane.b32.xlu0 %v259, 32
    %v1092 = vpop.permute.xlu0 %1091
    %v1093 = vsel %vm271, %v1086, 0
    %v1095 = vsel %vm271, %v1088, 0
    %v1097 = vsel %vm271, %v1090, 0
    %v1099 = vsel %vm271, %v1092, 0
    %1101 = vmatprep.subr.mxu0 0.0
    %1102 = vmatpush1.xpose.msra.mxu0 %v1097
    %1103 = vmatprep.subr.mxu0 0.0
    %1104 = vmatpush1.xpose.msra.mxu0 %v1099
    %1105 = vmatprep.subr.mxu0 0.0
    %1106 = vmatpush1.xpose.msra.mxu0 0.0
    %1107 = vmatprep.subr.mxu0 0.0
    %1108 = vmatpush1.xpose.msra.mxu0 0.0
    %1109 = vmatprep.subr.mxu0 0.0
    %1110 = vmatpush1.xpose.msra.mxu0 0.0
    %1111 = vmatprep.subr.mxu0 0.0
    %1112 = vmatpush1.xpose.msra.mxu0 0.0
    %1113 = vmatprep.subr.mxu0 0.0
    %1114 = vmatpush1.xpose.msra.mxu0 0.0
    %1115 = vmatprep.subr.mxu0 0.0
    %1116 = vmatpush1.xpose.msra.mxu0 0.0
    %1117 = vmatprep.subr.mxu0 0.0
    %1118 = vmatpush1.xpose.msra.mxu0 0.0
    %1119 = vmatprep.subr.mxu0 0.0
    %1120 = vmatpush1.xpose.msra.mxu0 0.0
    %1121 = vmatprep.subr.mxu0 0.0
    %1122 = vmatpush1.xpose.msra.mxu0 0.0
    %1123 = vmatprep.subr.mxu0 0.0
    %1124 = vmatpush1.xpose.msra.mxu0 0.0
    %1125 = vmatprep.subr.mxu0 0.0
    %1126 = vmatpush1.xpose.msra.mxu0 0.0
    %1127 = vmatprep.subr.mxu0 0.0
    %1128 = vmatpush1.xpose.msra.mxu0 0.0
    %1129 = vmatprep.subr.mxu0 0.0
    %1130 = vmatpush1.xpose.msra.mxu0 0.0
    %1131 = vmatprep.subr.mxu0 0.0
    %1132 = vmatpush1.xpose.msra.mxu0 0.0
    %1133 = vmatprep.subr.mxu0 0.0
    %1134 = vmatpush1.xpose.msra.mxu0 0.0
    %1135 = vmatprep.subr.mxu0 0.0
    %1136 = vmatpush1.xpose.msra.mxu0 0.0
    %1137 = vmatprep.subr.mxu0 0.0
    %1138 = vmatpush1.xpose.msra.mxu0 0.0
    %1139 = vmatprep.subr.mxu0 0.0
    %1140 = vmatpush1.xpose.msra.mxu0 0.0
    %1141 = vmatprep.subr.mxu0 0.0
    %1142 = vmatpush1.xpose.msra.mxu0 0.0
    %1143 = vmatprep.subr.mxu0 0.0
    %1144 = vmatpush1.xpose.msra.mxu0 0.0
    %1145 = vmatprep.subr.mxu0 0.0
    %1146 = vmatpush1.xpose.msra.mxu0 0.0
    %1147 = vmatprep.subr.mxu0 0.0
    %1148 = vmatpush1.xpose.msra.mxu0 0.0
    %1149 = vmatprep.subr.mxu0 0.0
    %1150 = vmatpush1.xpose.msra.mxu0 0.0
    %1151 = vmatprep.subr.mxu0 0.0
    %1152 = vmatpush1.xpose.msra.mxu0 0.0
    %1153 = vmatprep.subr.mxu0 0.0
    %1154 = vmatpush1.xpose.msra.mxu0 0.0
    %1155 = vmatprep.subr.mxu0 0.0
    %1156 = vmatpush1.xpose.msra.mxu0 0.0
    %1157 = vmatprep.subr.mxu0 0.0
    %1158 = vmatpush1.xpose.msra.mxu0 0.0
    %1159 = vmatprep.subr.mxu0 0.0
    %1160 = vmatpush1.xpose.msra.mxu0 0.0
    %1161 = vmatprep.subr.mxu0 0.0
    %1162 = vmatpush1.xpose.msra.mxu0 0.0
    %1163 = vmatprep.subr.mxu0 0.0
    %1164 = vmatpush1.xpose.msra.mxu0 0.0
    %1165 = vmatprep.mubr.f32.mxu0 0.0
    %1166 = vmatmul.mubr.f32.gmra.mrb[0].mxu0 %v1093
    %v1167 = vpop.f32.mrb[0].mxu0
    %v1168 = vadd.f32 0.0, %v1167
    %v1169 = vpop.f32.mrb[0].mxu0
    %1170 = vmatprep.mubr.f32.mxu0 0.0
    %1171 = vmatmul.mubr.f32.gmra.mrb[0].mxu0 %v1095
    %v1172 = vpop.f32.mrb[0].mxu0
    %v1173 = vadd.f32 0.0, %v1172
    %v1174 = vpop.f32.mrb[0].mxu0
    %1175 = vdwg.mxu0
    %v1176 = vsel %vm263, %v1168, -1e+30
    %v1177 = vsel %vm264, %v1173, -1e+30
    %v1178 = vsel %vm357, %v1176, -inf
    %1179 = vmax.xlane.f32.xlu0 %v1178
    %v1180 = vpop.xlane.xlu0 %1179
    %v1181 = vsel %vm357, %v1177, -inf
    %1182 = vmax.xlane.f32.xlu0 %v1181
    %v1183 = vpop.xlane.xlu0 %1182
    %v1184 = vsub.f32 %v1176, %v1180
    %v1185 = vsub.f32 %v1177, %v1183
    %v1186 = vmul.f32 %v1184, 1.442695
    %v1187 = vpow.pop %v1186
    %v1188 = vmul.f32 %v1185, 1.442695
    %v1189 = vpow.pop %v1188
    %v1190 = vmul.f32 %v149, %v1187
    %v1191 = vmul.f32 %v150, %v1189
    %v1192 = vsel %vm357, %v1190, 0.0
    %1193 = vadd.xlane.f32.xlu0 %v1192
    %v1194 = vpop.xlane.xlu0 %1193
    %v1195 = vsel %vm357, %v1191, 0.0
    %1196 = vadd.xlane.f32.xlu0 %v1195
    %v1197 = vpop.xlane.xlu0 %1196
    %v1198 = vmul.f32 %v1194, 8.0
    %v1199 = vmul.f32 %v1197, 8.0
    %v1200 = vrcp.pop %v1198
    %v1201 = vrcp.pop %v1199
    %v1202 = vmul.f32 %v1190, %v1200
    %v1203 = vmul.f32 %v1191, %v1201
    %1204 = vrot.lane.b32.xlu0 %v255, 96
    %v1205 = vpop.permute.xlu0 %1204
    %1206 = vrot.lane.b32.xlu0 %v261, 96
    %v1207 = vpop.permute.xlu0 %1206
    %v1211 = vsel %vm357, %v1202, 0
    %v1214 = vsel %vm357, %v1203, 0
    %1216 = vmatprep.subr.mxu0 0.0
    %1217 = vmatpush1.msra.mxu0 %v1205
    %1218 = vmatprep.subr.mxu0 0.0
    %1219 = vmatpush1.msra.mxu0 %v1207
    %1220 = vmatprep.subr.mxu0 0.0
    %1221 = vmatpush1.msra.mxu0 0.0
    %1222 = vmatprep.subr.mxu0 0.0
    %1223 = vmatpush1.msra.mxu0 0.0
    %1224 = vmatprep.subr.mxu0 0.0
    %1225 = vmatpush1.msra.mxu0 0.0
    %1226 = vmatprep.subr.mxu0 0.0
    %1227 = vmatpush1.msra.mxu0 0.0
    %1228 = vmatprep.subr.mxu0 0.0
    %1229 = vmatpush1.msra.mxu0 0.0
    %1230 = vmatprep.subr.mxu0 0.0
    %1231 = vmatpush1.msra.mxu0 0.0
    %1232 = vmatprep.subr.mxu0 0.0
    %1233 = vmatpush1.msra.mxu0 0.0
    %1234 = vmatprep.subr.mxu0 0.0
    %1235 = vmatpush1.msra.mxu0 0.0
    %1236 = vmatprep.subr.mxu0 0.0
    %1237 = vmatpush1.msra.mxu0 0.0
    %1238 = vmatprep.subr.mxu0 0.0
    %1239 = vmatpush1.msra.mxu0 0.0
    %1240 = vmatprep.subr.mxu0 0.0
    %1241 = vmatpush1.msra.mxu0 0.0
    %1242 = vmatprep.subr.mxu0 0.0
    %1243 = vmatpush1.msra.mxu0 0.0
    %1244 = vmatprep.subr.mxu0 0.0
    %1245 = vmatpush1.msra.mxu0 0.0
    %1246 = vmatprep.subr.mxu0 0.0
    %1247 = vmatpush1.msra.mxu0 0.0
    %1248 = vmatprep.subr.mxu0 0.0
    %1249 = vmatpush1.msra.mxu0 0.0
    %1250 = vmatprep.subr.mxu0 0.0
    %1251 = vmatpush1.msra.mxu0 0.0
    %1252 = vmatprep.subr.mxu0 0.0
    %1253 = vmatpush1.msra.mxu0 0.0
    %1254 = vmatprep.subr.mxu0 0.0
    %1255 = vmatpush1.msra.mxu0 0.0
    %1256 = vmatprep.subr.mxu0 0.0
    %1257 = vmatpush1.msra.mxu0 0.0
    %1258 = vmatprep.subr.mxu0 0.0
    %1259 = vmatpush1.msra.mxu0 0.0
    %1260 = vmatprep.subr.mxu0 0.0
    %1261 = vmatpush1.msra.mxu0 0.0
    %1262 = vmatprep.subr.mxu0 0.0
    %1263 = vmatpush1.msra.mxu0 0.0
    %1264 = vmatprep.subr.mxu0 0.0
    %1265 = vmatpush1.msra.mxu0 0.0
    %1266 = vmatprep.subr.mxu0 0.0
    %1267 = vmatpush1.msra.mxu0 0.0
    %1268 = vmatprep.subr.mxu0 0.0
    %1269 = vmatpush1.msra.mxu0 0.0
    %1270 = vmatprep.subr.mxu0 0.0
    %1271 = vmatpush1.msra.mxu0 0.0
    %1272 = vmatprep.subr.mxu0 0.0
    %1273 = vmatpush1.msra.mxu0 0.0
    %1274 = vmatprep.subr.mxu0 0.0
    %1275 = vmatpush1.msra.mxu0 0.0
    %1276 = vmatprep.subr.mxu0 0.0
    %1277 = vmatpush1.msra.mxu0 0.0
    %1278 = vmatprep.subr.mxu0 0.0
    %1279 = vmatpush1.msra.mxu0 0.0
    %1280 = vmatprep.mubr.f32.mxu0 0.0
    %1281 = vmatmul.mubr.f32.gmra.mrb[0].mxu0 %v1211
    %v1282 = vpop.f32.mrb[0].mxu0
    %v1283 = vadd.f32 0.0, %v1282
    %v1284 = vpop.f32.mrb[0].mxu0
    %1285 = vmatprep.mubr.f32.mxu0 0.0
    %1286 = vmatmul.mubr.f32.gmra.mrb[0].mxu0 %v1214
    %v1287 = vpop.f32.mrb[0].mxu0
    %v1288 = vadd.f32 0.0, %v1287
    %v1289 = vpop.f32.mrb[0].mxu0
    %1290 = vdwg.mxu0
    %1291 = vrot.lane.b32.xlu0 %v253, 88
    %v1292 = vpop.permute.xlu0 %1291
    %1293 = vrot.lane.b32.xlu0 %v259, 88
    %v1294 = vpop.permute.xlu0 %1293
    %1295 = vrot.lane.b32.xlu0 %v253, 24
    %v1296 = vpop.permute.xlu0 %1295
    %1297 = vrot.lane.b32.xlu0 %v259, 24
    %v1298 = vpop.permute.xlu0 %1297
    %v1299 = vsel %vm271, %v1292, 0
    %v1301 = vsel %vm271, %v1294, 0
    %v1303 = vsel %vm271, %v1296, 0
    %v1305 = vsel %vm271, %v1298, 0
    %1307 = vmatprep.subr.mxu0 0.0
    %1308 = vmatpush1.xpose.msra.mxu0 %v1303
    %1309 = vmatprep.subr.mxu0 0.0
    %1310 = vmatpush1.xpose.msra.mxu0 %v1305
    %1311 = vmatprep.subr.mxu0 0.0
    %1312 = vmatpush1.xpose.msra.mxu0 0.0
    %1313 = vmatprep.subr.mxu0 0.0
    %1314 = vmatpush1.xpose.msra.mxu0 0.0
    %1315 = vmatprep.subr.mxu0 0.0
    %1316 = vmatpush1.xpose.msra.mxu0 0.0
    %1317 = vmatprep.subr.mxu0 0.0
    %1318 = vmatpush1.xpose.msra.mxu0 0.0
    %1319 = vmatprep.subr.mxu0 0.0
    %1320 = vmatpush1.xpose.msra.mxu0 0.0
    %1321 = vmatprep.subr.mxu0 0.0
    %1322 = vmatpush1.xpose.msra.mxu0 0.0
    %1323 = vmatprep.subr.mxu0 0.0
    %1324 = vmatpush1.xpose.msra.mxu0 0.0
    %1325 = vmatprep.subr.mxu0 0.0
    %1326 = vmatpush1.xpose.msra.mxu0 0.0
    %1327 = vmatprep.subr.mxu0 0.0
    %1328 = vmatpush1.xpose.msra.mxu0 0.0
    %1329 = vmatprep.subr.mxu0 0.0
    %1330 = vmatpush1.xpose.msra.mxu0 0.0
    %1331 = vmatprep.subr.mxu0 0.0
    %1332 = vmatpush1.xpose.msra.mxu0 0.0
    %1333 = vmatprep.subr.mxu0 0.0
    %1334 = vmatpush1.xpose.msra.mxu0 0.0
    %1335 = vmatprep.subr.mxu0 0.0
    %1336 = vmatpush1.xpose.msra.mxu0 0.0
    %1337 = vmatprep.subr.mxu0 0.0
    %1338 = vmatpush1.xpose.msra.mxu0 0.0
    %1339 = vmatprep.subr.mxu0 0.0
    %1340 = vmatpush1.xpose.msra.mxu0 0.0
    %1341 = vmatprep.subr.mxu0 0.0
    %1342 = vmatpush1.xpose.msra.mxu0 0.0
    %1343 = vmatprep.subr.mxu0 0.0
    %1344 = vmatpush1.xpose.msra.mxu0 0.0
    %1345 = vmatprep.subr.mxu0 0.0
    %1346 = vmatpush1.xpose.msra.mxu0 0.0
    %1347 = vmatprep.subr.mxu0 0.0
    %1348 = vmatpush1.xpose.msra.mxu0 0.0
    %1349 = vmatprep.subr.mxu0 0.0
    %1350 = vmatpush1.xpose.msra.mxu0 0.0
    %1351 = vmatprep.subr.mxu0 0.0
    %1352 = vmatpush1.xpose.msra.mxu0 0.0
    %1353 = vmatprep.subr.mxu0 0.0
    %1354 = vmatpush1.xpose.msra.mxu0 0.0
    %1355 = vmatprep.subr.mxu0 0.0
    %1356 = vmatpush1.xpose.msra.mxu0 0.0
    %1357 = vmatprep.subr.mxu0 0.0
    %1358 = vmatpush1.xpose.msra.mxu0 0.0
    %1359 = vmatprep.subr.mxu0 0.0
    %1360 = vmatpush1.xpose.msra.mxu0 0.0
    %1361 = vmatprep.subr.mxu0 0.0
    %1362 = vmatpush1.xpose.msra.mxu0 0.0
    %1363 = vmatprep.subr.mxu0 0.0
    %1364 = vmatpush1.xpose.msra.mxu0 0.0
    %1365 = vmatprep.subr.mxu0 0.0
    %1366 = vmatpush1.xpose.msra.mxu0 0.0
    %1367 = vmatprep.subr.mxu0 0.0
    %1368 = vmatpush1.xpose.msra.mxu0 0.0
    %1369 = vmatprep.subr.mxu0 0.0
    %1370 = vmatpush1.xpose.msra.mxu0 0.0
    %1371 = vmatprep.mubr.f32.mxu0 0.0
    %1372 = vmatmul.mubr.f32.gmra.mrb[0].mxu0 %v1299
    %v1373 = vpop.f32.mrb[0].mxu0
    %v1374 = vadd.f32 0.0, %v1373
    %v1375 = vpop.f32.mrb[0].mxu0
    %1376 = vmatprep.mubr.f32.mxu0 0.0
    %1377 = vmatmul.mubr.f32.gmra.mrb[0].mxu0 %v1301
    %v1378 = vpop.f32.mrb[0].mxu0
    %v1379 = vadd.f32 0.0, %v1378
    %v1380 = vpop.f32.mrb[0].mxu0
    %1381 = vdwg.mxu0
    %v1382 = vsel %vm263, %v1374, -1e+30
    %v1383 = vsel %vm264, %v1379, -1e+30
    %v1384 = vsel %vm357, %v1382, -inf
    %1385 = vmax.xlane.f32.xlu0 %v1384
    %v1386 = vpop.xlane.xlu0 %1385
    %v1387 = vsel %vm357, %v1383, -inf
    %1388 = vmax.xlane.f32.xlu0 %v1387
    %v1389 = vpop.xlane.xlu0 %1388
    %v1390 = vsub.f32 %v1382, %v1386
    %v1391 = vsub.f32 %v1383, %v1389
    %v1392 = vmul.f32 %v1390, 1.442695
    %v1393 = vpow.pop %v1392
    %v1394 = vmul.f32 %v1391, 1.442695
    %v1395 = vpow.pop %v1394
    %v1396 = vmul.f32 %v149, %v1393
    %v1397 = vmul.f32 %v150, %v1395
    %v1398 = vsel %vm357, %v1396, 0.0
    %1399 = vadd.xlane.f32.xlu0 %v1398
    %v1400 = vpop.xlane.xlu0 %1399
    %v1401 = vsel %vm357, %v1397, 0.0
    %1402 = vadd.xlane.f32.xlu0 %v1401
    %v1403 = vpop.xlane.xlu0 %1402
    %v1404 = vmul.f32 %v1400, 8.0
    %v1405 = vmul.f32 %v1403, 8.0
    %v1406 = vrcp.pop %v1404
    %v1407 = vrcp.pop %v1405
    %v1408 = vmul.f32 %v1396, %v1406
    %v1409 = vmul.f32 %v1397, %v1407
    %1410 = vrot.lane.b32.xlu0 %v255, 88
    %v1411 = vpop.permute.xlu0 %1410
    %1412 = vrot.lane.b32.xlu0 %v261, 88
    %v1413 = vpop.permute.xlu0 %1412
    %v1417 = vsel %vm357, %v1408, 0
    %v1420 = vsel %vm357, %v1409, 0
    %1422 = vmatprep.subr.mxu0 0.0
    %1423 = vmatpush1.msra.mxu0 %v1411
    %1424 = vmatprep.subr.mxu0 0.0
    %1425 = vmatpush1.msra.mxu0 %v1413
    %1426 = vmatprep.subr.mxu0 0.0
    %1427 = vmatpush1.msra.mxu0 0.0
    %1428 = vmatprep.subr.mxu0 0.0
    %1429 = vmatpush1.msra.mxu0 0.0
    %1430 = vmatprep.subr.mxu0 0.0
    %1431 = vmatpush1.msra.mxu0 0.0
    %1432 = vmatprep.subr.mxu0 0.0
    %1433 = vmatpush1.msra.mxu0 0.0
    %1434 = vmatprep.subr.mxu0 0.0
    %1435 = vmatpush1.msra.mxu0 0.0
    %1436 = vmatprep.subr.mxu0 0.0
    %1437 = vmatpush1.msra.mxu0 0.0
    %1438 = vmatprep.subr.mxu0 0.0
    %1439 = vmatpush1.msra.mxu0 0.0
    %1440 = vmatprep.subr.mxu0 0.0
    %1441 = vmatpush1.msra.mxu0 0.0
    %1442 = vmatprep.subr.mxu0 0.0
    %1443 = vmatpush1.msra.mxu0 0.0
    %1444 = vmatprep.subr.mxu0 0.0
    %1445 = vmatpush1.msra.mxu0 0.0
    %1446 = vmatprep.subr.mxu0 0.0
    %1447 = vmatpush1.msra.mxu0 0.0
    %1448 = vmatprep.subr.mxu0 0.0
    %1449 = vmatpush1.msra.mxu0 0.0
    %1450 = vmatprep.subr.mxu0 0.0
    %1451 = vmatpush1.msra.mxu0 0.0
    %1452 = vmatprep.subr.mxu0 0.0
    %1453 = vmatpush1.msra.mxu0 0.0
    %1454 = vmatprep.subr.mxu0 0.0
    %1455 = vmatpush1.msra.mxu0 0.0
    %1456 = vmatprep.subr.mxu0 0.0
    %1457 = vmatpush1.msra.mxu0 0.0
    %1458 = vmatprep.subr.mxu0 0.0
    %1459 = vmatpush1.msra.mxu0 0.0
    %1460 = vmatprep.subr.mxu0 0.0
    %1461 = vmatpush1.msra.mxu0 0.0
    %1462 = vmatprep.subr.mxu0 0.0
    %1463 = vmatpush1.msra.mxu0 0.0
    %1464 = vmatprep.subr.mxu0 0.0
    %1465 = vmatpush1.msra.mxu0 0.0
    %1466 = vmatprep.subr.mxu0 0.0
    %1467 = vmatpush1.msra.mxu0 0.0
    %1468 = vmatprep.subr.mxu0 0.0
    %1469 = vmatpush1.msra.mxu0 0.0
    %1470 = vmatprep.subr.mxu0 0.0
    %1471 = vmatpush1.msra.mxu0 0.0
    %1472 = vmatprep.subr.mxu0 0.0
    %1473 = vmatpush1.msra.mxu0 0.0
    %1474 = vmatprep.subr.mxu0 0.0
    %1475 = vmatpush1.msra.mxu0 0.0
    %1476 = vmatprep.subr.mxu0 0.0
    %1477 = vmatpush1.msra.mxu0 0.0
    %1478 = vmatprep.subr.mxu0 0.0
    %1479 = vmatpush1.msra.mxu0 0.0
    %1480 = vmatprep.subr.mxu0 0.0
    %1481 = vmatpush1.msra.mxu0 0.0
    %1482 = vmatprep.subr.mxu0 0.0
    %1483 = vmatpush1.msra.mxu0 0.0
    %1484 = vmatprep.subr.mxu0 0.0
    %1485 = vmatpush1.msra.mxu0 0.0
    %1486 = vmatprep.mubr.f32.mxu0 0.0
    %1487 = vmatmul.mubr.f32.gmra.mrb[0].mxu0 %v1417
    %v1488 = vpop.f32.mrb[0].mxu0
    %v1489 = vadd.f32 0.0, %v1488
    %v1490 = vpop.f32.mrb[0].mxu0
    %1491 = vmatprep.mubr.f32.mxu0 0.0
    %1492 = vmatmul.mubr.f32.gmra.mrb[0].mxu0 %v1420
    %v1493 = vpop.f32.mrb[0].mxu0
    %v1494 = vadd.f32 0.0, %v1493
    %v1495 = vpop.f32.mrb[0].mxu0
    %1496 = vdwg.mxu0
    %1497 = vrot.lane.b32.xlu0 %v253, 80
    %v1498 = vpop.permute.xlu0 %1497
    %1499 = vrot.lane.b32.xlu0 %v259, 80
    %v1500 = vpop.permute.xlu0 %1499
    %1501 = vrot.lane.b32.xlu0 %v253, 16
    %v1502 = vpop.permute.xlu0 %1501
    %1503 = vrot.lane.b32.xlu0 %v259, 16
    %v1504 = vpop.permute.xlu0 %1503
    %v1505 = vsel %vm271, %v1498, 0
    %v1507 = vsel %vm271, %v1500, 0
    %v1509 = vsel %vm271, %v1502, 0
    %v1511 = vsel %vm271, %v1504, 0
    %1513 = vmatprep.subr.mxu0 0.0
    %1514 = vmatpush1.xpose.msra.mxu0 %v1509
    %1515 = vmatprep.subr.mxu0 0.0
    %1516 = vmatpush1.xpose.msra.mxu0 %v1511
    %1517 = vmatprep.subr.mxu0 0.0
    %1518 = vmatpush1.xpose.msra.mxu0 0.0
    %1519 = vmatprep.subr.mxu0 0.0
    %1520 = vmatpush1.xpose.msra.mxu0 0.0
    %1521 = vmatprep.subr.mxu0 0.0
    %1522 = vmatpush1.xpose.msra.mxu0 0.0
    %1523 = vmatprep.subr.mxu0 0.0
    %1524 = vmatpush1.xpose.msra.mxu0 0.0
    %1525 = vmatprep.subr.mxu0 0.0
    %1526 = vmatpush1.xpose.msra.mxu0 0.0
    %1527 = vmatprep.subr.mxu0 0.0
    %1528 = vmatpush1.xpose.msra.mxu0 0.0
    %1529 = vmatprep.subr.mxu0 0.0
    %1530 = vmatpush1.xpose.msra.mxu0 0.0
    %1531 = vmatprep.subr.mxu0 0.0
    %1532 = vmatpush1.xpose.msra.mxu0 0.0
    %1533 = vmatprep.subr.mxu0 0.0
    %1534 = vmatpush1.xpose.msra.mxu0 0.0
    %1535 = vmatprep.subr.mxu0 0.0
    %1536 = vmatpush1.xpose.msra.mxu0 0.0
    %1537 = vmatprep.subr.mxu0 0.0
    %1538 = vmatpush1.xpose.msra.mxu0 0.0
    %1539 = vmatprep.subr.mxu0 0.0
    %1540 = vmatpush1.xpose.msra.mxu0 0.0
    %1541 = vmatprep.subr.mxu0 0.0
    %1542 = vmatpush1.xpose.msra.mxu0 0.0
    %1543 = vmatprep.subr.mxu0 0.0
    %1544 = vmatpush1.xpose.msra.mxu0 0.0
    %1545 = vmatprep.subr.mxu0 0.0
    %1546 = vmatpush1.xpose.msra.mxu0 0.0
    %1547 = vmatprep.subr.mxu0 0.0
    %1548 = vmatpush1.xpose.msra.mxu0 0.0
    %1549 = vmatprep.subr.mxu0 0.0
    %1550 = vmatpush1.xpose.msra.mxu0 0.0
    %1551 = vmatprep.subr.mxu0 0.0
    %1552 = vmatpush1.xpose.msra.mxu0 0.0
    %1553 = vmatprep.subr.mxu0 0.0
    %1554 = vmatpush1.xpose.msra.mxu0 0.0
    %1555 = vmatprep.subr.mxu0 0.0
    %1556 = vmatpush1.xpose.msra.mxu0 0.0
    %1557 = vmatprep.subr.mxu0 0.0
    %1558 = vmatpush1.xpose.msra.mxu0 0.0
    %1559 = vmatprep.subr.mxu0 0.0
    %1560 = vmatpush1.xpose.msra.mxu0 0.0
    %1561 = vmatprep.subr.mxu0 0.0
    %1562 = vmatpush1.xpose.msra.mxu0 0.0
    %1563 = vmatprep.subr.mxu0 0.0
    %1564 = vmatpush1.xpose.msra.mxu0 0.0
    %1565 = vmatprep.subr.mxu0 0.0
    %1566 = vmatpush1.xpose.msra.mxu0 0.0
    %1567 = vmatprep.subr.mxu0 0.0
    %1568 = vmatpush1.xpose.msra.mxu0 0.0
    %1569 = vmatprep.subr.mxu0 0.0
    %1570 = vmatpush1.xpose.msra.mxu0 0.0
    %1571 = vmatprep.subr.mxu0 0.0
    %1572 = vmatpush1.xpose.msra.mxu0 0.0
    %1573 = vmatprep.subr.mxu0 0.0
    %1574 = vmatpush1.xpose.msra.mxu0 0.0
    %1575 = vmatprep.subr.mxu0 0.0
    %1576 = vmatpush1.xpose.msra.mxu0 0.0
    %1577 = vmatprep.mubr.f32.mxu0 0.0
    %1578 = vmatmul.mubr.f32.gmra.mrb[0].mxu0 %v1505
    %v1579 = vpop.f32.mrb[0].mxu0
    %v1580 = vadd.f32 0.0, %v1579
    %v1581 = vpop.f32.mrb[0].mxu0
    %1582 = vmatprep.mubr.f32.mxu0 0.0
    %1583 = vmatmul.mubr.f32.gmra.mrb[0].mxu0 %v1507
    %v1584 = vpop.f32.mrb[0].mxu0
    %v1585 = vadd.f32 0.0, %v1584
    %v1586 = vpop.f32.mrb[0].mxu0
    %1587 = vdwg.mxu0
    %v1588 = vsel %vm263, %v1580, -1e+30
    %v1589 = vsel %vm264, %v1585, -1e+30
    %v1590 = vsel %vm357, %v1588, -inf
    %1591 = vmax.xlane.f32.xlu0 %v1590
    %v1592 = vpop.xlane.xlu0 %1591
    %v1593 = vsel %vm357, %v1589, -inf
    %1594 = vmax.xlane.f32.xlu0 %v1593
    %v1595 = vpop.xlane.xlu0 %1594
    %v1596 = vsub.f32 %v1588, %v1592
    %v1597 = vsub.f32 %v1589, %v1595
    %v1598 = vmul.f32 %v1596, 1.442695
    %v1599 = vpow.pop %v1598
    %v1600 = vmul.f32 %v1597, 1.442695
    %v1601 = vpow.pop %v1600
    %v1602 = vmul.f32 %v149, %v1599
    %v1603 = vmul.f32 %v150, %v1601
    %v1604 = vsel %vm357, %v1602, 0.0
    %1605 = vadd.xlane.f32.xlu0 %v1604
    %v1606 = vpop.xlane.xlu0 %1605
    %v1607 = vsel %vm357, %v1603, 0.0
    %1608 = vadd.xlane.f32.xlu0 %v1607
    %v1609 = vpop.xlane.xlu0 %1608
    %v1610 = vmul.f32 %v1606, 8.0
    %v1611 = vmul.f32 %v1609, 8.0
    %v1612 = vrcp.pop %v1610
    %v1613 = vrcp.pop %v1611
    %v1614 = vmul.f32 %v1602, %v1612
    %v1615 = vmul.f32 %v1603, %v1613
    %1616 = vrot.lane.b32.xlu0 %v255, 80
    %v1617 = vpop.permute.xlu0 %1616
    %1618 = vrot.lane.b32.xlu0 %v261, 80
    %v1619 = vpop.permute.xlu0 %1618
    %v1623 = vsel %vm357, %v1614, 0
    %v1626 = vsel %vm357, %v1615, 0
    %1628 = vmatprep.subr.mxu0 0.0
    %1629 = vmatpush1.msra.mxu0 %v1617
    %1630 = vmatprep.subr.mxu0 0.0
    %1631 = vmatpush1.msra.mxu0 %v1619
    %1632 = vmatprep.subr.mxu0 0.0
    %1633 = vmatpush1.msra.mxu0 0.0
    %1634 = vmatprep.subr.mxu0 0.0
    %1635 = vmatpush1.msra.mxu0 0.0
    %1636 = vmatprep.subr.mxu0 0.0
    %1637 = vmatpush1.msra.mxu0 0.0
    %1638 = vmatprep.subr.mxu0 0.0
    %1639 = vmatpush1.msra.mxu0 0.0
    %1640 = vmatprep.subr.mxu0 0.0
    %1641 = vmatpush1.msra.mxu0 0.0
    %1642 = vmatprep.subr.mxu0 0.0
    %1643 = vmatpush1.msra.mxu0 0.0
    %1644 = vmatprep.subr.mxu0 0.0
    %1645 = vmatpush1.msra.mxu0 0.0
    %1646 = vmatprep.subr.mxu0 0.0
    %1647 = vmatpush1.msra.mxu0 0.0
    %1648 = vmatprep.subr.mxu0 0.0
    %1649 = vmatpush1.msra.mxu0 0.0
    %1650 = vmatprep.subr.mxu0 0.0
    %1651 = vmatpush1.msra.mxu0 0.0
    %1652 = vmatprep.subr.mxu0 0.0
    %1653 = vmatpush1.msra.mxu0 0.0
    %1654 = vmatprep.subr.mxu0 0.0
    %1655 = vmatpush1.msra.mxu0 0.0
    %1656 = vmatprep.subr.mxu0 0.0
    %1657 = vmatpush1.msra.mxu0 0.0
    %1658 = vmatprep.subr.mxu0 0.0
    %1659 = vmatpush1.msra.mxu0 0.0
    %1660 = vmatprep.subr.mxu0 0.0
    %1661 = vmatpush1.msra.mxu0 0.0
    %1662 = vmatprep.subr.mxu0 0.0
    %1663 = vmatpush1.msra.mxu0 0.0
    %1664 = vmatprep.subr.mxu0 0.0
    %1665 = vmatpush1.msra.mxu0 0.0
    %1666 = vmatprep.subr.mxu0 0.0
    %1667 = vmatpush1.msra.mxu0 0.0
    %1668 = vmatprep.subr.mxu0 0.0
    %1669 = vmatpush1.msra.mxu0 0.0
    %1670 = vmatprep.subr.mxu0 0.0
    %1671 = vmatpush1.msra.mxu0 0.0
    %1672 = vmatprep.subr.mxu0 0.0
    %1673 = vmatpush1.msra.mxu0 0.0
    %1674 = vmatprep.subr.mxu0 0.0
    %1675 = vmatpush1.msra.mxu0 0.0
    %1676 = vmatprep.subr.mxu0 0.0
    %1677 = vmatpush1.msra.mxu0 0.0
    %1678 = vmatprep.subr.mxu0 0.0
    %1679 = vmatpush1.msra.mxu0 0.0
    %1680 = vmatprep.subr.mxu0 0.0
    %1681 = vmatpush1.msra.mxu0 0.0
    %1682 = vmatprep.subr.mxu0 0.0
    %1683 = vmatpush1.msra.mxu0 0.0
    %1684 = vmatprep.subr.mxu0 0.0
    %1685 = vmatpush1.msra.mxu0 0.0
    %1686 = vmatprep.subr.mxu0 0.0
    %1687 = vmatpush1.msra.mxu0 0.0
    %1688 = vmatprep.subr.mxu0 0.0
    %1689 = vmatpush1.msra.mxu0 0.0
    %1690 = vmatprep.subr.mxu0 0.0
    %1691 = vmatpush1.msra.mxu0 0.0
    %1692 = vmatprep.mubr.f32.mxu0 0.0
    %1693 = vmatmul.mubr.f32.gmra.mrb[0].mxu0 %v1623
    %v1694 = vpop.f32.mrb[0].mxu0
    %v1695 = vadd.f32 0.0, %v1694
    %v1696 = vpop.f32.mrb[0].mxu0
    %1697 = vmatprep.mubr.f32.mxu0 0.0
    %1698 = vmatmul.mubr.f32.gmra.mrb[0].mxu0 %v1626
    %v1699 = vpop.f32.mrb[0].mxu0
    %v1700 = vadd.f32 0.0, %v1699
    %v1701 = vpop.f32.mrb[0].mxu0
    %1702 = vdwg.mxu0
    %1703 = vrot.lane.b32.xlu0 %v253, 72
    %v1704 = vpop.permute.xlu0 %1703
    %1705 = vrot.lane.b32.xlu0 %v259, 72
    %v1706 = vpop.permute.xlu0 %1705
    %1707 = vrot.lane.b32.xlu0 %v253, 8
    %v1708 = vpop.permute.xlu0 %1707
    %1709 = vrot.lane.b32.xlu0 %v259, 8
    %v1710 = vpop.permute.xlu0 %1709
    %v1711 = vsel %vm271, %v1704, 0
    %v1713 = vsel %vm271, %v1706, 0
    %v1715 = vsel %vm271, %v1708, 0
    %v1717 = vsel %vm271, %v1710, 0
    %1719 = vmatprep.subr.mxu0 0.0
    %1720 = vmatpush1.xpose.msra.mxu0 %v1715
    %1721 = vmatprep.subr.mxu0 0.0
    %1722 = vmatpush1.xpose.msra.mxu0 %v1717
    %1723 = vmatprep.subr.mxu0 0.0
    %1724 = vmatpush1.xpose.msra.mxu0 0.0
    %1725 = vmatprep.subr.mxu0 0.0
    %1726 = vmatpush1.xpose.msra.mxu0 0.0
    %1727 = vmatprep.subr.mxu0 0.0
    %1728 = vmatpush1.xpose.msra.mxu0 0.0
    %1729 = vmatprep.subr.mxu0 0.0
    %1730 = vmatpush1.xpose.msra.mxu0 0.0
    %1731 = vmatprep.subr.mxu0 0.0
    %1732 = vmatpush1.xpose.msra.mxu0 0.0
    %1733 = vmatprep.subr.mxu0 0.0
    %1734 = vmatpush1.xpose.msra.mxu0 0.0
    %1735 = vmatprep.subr.mxu0 0.0
    %1736 = vmatpush1.xpose.msra.mxu0 0.0
    %1737 = vmatprep.subr.mxu0 0.0
    %1738 = vmatpush1.xpose.msra.mxu0 0.0
    %1739 = vmatprep.subr.mxu0 0.0
    %1740 = vmatpush1.xpose.msra.mxu0 0.0
    %1741 = vmatprep.subr.mxu0 0.0
    %1742 = vmatpush1.xpose.msra.mxu0 0.0
    %1743 = vmatprep.subr.mxu0 0.0
    %1744 = vmatpush1.xpose.msra.mxu0 0.0
    %1745 = vmatprep.subr.mxu0 0.0
    %1746 = vmatpush1.xpose.msra.mxu0 0.0
    %1747 = vmatprep.subr.mxu0 0.0
    %1748 = vmatpush1.xpose.msra.mxu0 0.0
    %1749 = vmatprep.subr.mxu0 0.0
    %1750 = vmatpush1.xpose.msra.mxu0 0.0
    %1751 = vmatprep.subr.mxu0 0.0
    %1752 = vmatpush1.xpose.msra.mxu0 0.0
    %1753 = vmatprep.subr.mxu0 0.0
    %1754 = vmatpush1.xpose.msra.mxu0 0.0
    %1755 = vmatprep.subr.mxu0 0.0
    %1756 = vmatpush1.xpose.msra.mxu0 0.0
    %1757 = vmatprep.subr.mxu0 0.0
    %1758 = vmatpush1.xpose.msra.mxu0 0.0
    %1759 = vmatprep.subr.mxu0 0.0
    %1760 = vmatpush1.xpose.msra.mxu0 0.0
    %1761 = vmatprep.subr.mxu0 0.0
    %1762 = vmatpush1.xpose.msra.mxu0 0.0
    %1763 = vmatprep.subr.mxu0 0.0
    %1764 = vmatpush1.xpose.msra.mxu0 0.0
    %1765 = vmatprep.subr.mxu0 0.0
    %1766 = vmatpush1.xpose.msra.mxu0 0.0
    %1767 = vmatprep.subr.mxu0 0.0
    %1768 = vmatpush1.xpose.msra.mxu0 0.0
    %1769 = vmatprep.subr.mxu0 0.0
    %1770 = vmatpush1.xpose.msra.mxu0 0.0
    %1771 = vmatprep.subr.mxu0 0.0
    %1772 = vmatpush1.xpose.msra.mxu0 0.0
    %1773 = vmatprep.subr.mxu0 0.0
    %1774 = vmatpush1.xpose.msra.mxu0 0.0
    %1775 = vmatprep.subr.mxu0 0.0
    %1776 = vmatpush1.xpose.msra.mxu0 0.0
    %1777 = vmatprep.subr.mxu0 0.0
    %1778 = vmatpush1.xpose.msra.mxu0 0.0
    %1779 = vmatprep.subr.mxu0 0.0
    %1780 = vmatpush1.xpose.msra.mxu0 0.0
    %1781 = vmatprep.subr.mxu0 0.0
    %1782 = vmatpush1.xpose.msra.mxu0 0.0
    %1783 = vmatprep.mubr.f32.mxu0 0.0
    %1784 = vmatmul.mubr.f32.gmra.mrb[0].mxu0 %v1711
    %v1785 = vpop.f32.mrb[0].mxu0
    %v1786 = vadd.f32 0.0, %v1785
    %v1787 = vpop.f32.mrb[0].mxu0
    %1788 = vmatprep.mubr.f32.mxu0 0.0
    %1789 = vmatmul.mubr.f32.gmra.mrb[0].mxu0 %v1713
    %v1790 = vpop.f32.mrb[0].mxu0
    %v1791 = vadd.f32 0.0, %v1790
    %v1792 = vpop.f32.mrb[0].mxu0
    %1793 = vdwg.mxu0
    %v1794 = vsel %vm263, %v1786, -1e+30
    %v1795 = vsel %vm264, %v1791, -1e+30
    %v1796 = vsel %vm357, %v1794, -inf
    %1797 = vmax.xlane.f32.xlu0 %v1796
    %v1798 = vpop.xlane.xlu0 %1797
    %v1799 = vsel %vm357, %v1795, -inf
    %1800 = vmax.xlane.f32.xlu0 %v1799
    %v1801 = vpop.xlane.xlu0 %1800
    %v1802 = vsub.f32 %v1794, %v1798
    %v1803 = vsub.f32 %v1795, %v1801
    %v1804 = vmul.f32 %v1802, 1.442695
    %v1805 = vpow.pop %v1804
    %v1806 = vmul.f32 %v1803, 1.442695
    %v1807 = vpow.pop %v1806
    %v1808 = vmul.f32 %v149, %v1805
    %v1809 = vmul.f32 %v150, %v1807
    %v1810 = vsel %vm357, %v1808, 0.0
    %1811 = vadd.xlane.f32.xlu0 %v1810
    %v1812 = vpop.xlane.xlu0 %1811
    %v1813 = vsel %vm357, %v1809, 0.0
    %1814 = vadd.xlane.f32.xlu0 %v1813
    %v1815 = vpop.xlane.xlu0 %1814
    %v1816 = vmul.f32 %v1812, 8.0
    %v1817 = vmul.f32 %v1815, 8.0
    %v1818 = vrcp.pop %v1816
    %v1819 = vrcp.pop %v1817
    %v1820 = vmul.f32 %v1808, %v1818
    %v1821 = vmul.f32 %v1809, %v1819
    %1822 = vrot.lane.b32.xlu0 %v255, 72
    %v1823 = vpop.permute.xlu0 %1822
    %1824 = vrot.lane.b32.xlu0 %v261, 72
    %v1825 = vpop.permute.xlu0 %1824
    %v1829 = vsel %vm357, %v1820, 0
    %v1832 = vsel %vm357, %v1821, 0
    %1834 = vmatprep.subr.mxu0 0.0
    %1835 = vmatpush1.msra.mxu0 %v1823
    %1836 = vmatprep.subr.mxu0 0.0
    %1837 = vmatpush1.msra.mxu0 %v1825
    %1838 = vmatprep.subr.mxu0 0.0
    %1839 = vmatpush1.msra.mxu0 0.0
    %1840 = vmatprep.subr.mxu0 0.0
    %1841 = vmatpush1.msra.mxu0 0.0
    %1842 = vmatprep.subr.mxu0 0.0
    %1843 = vmatpush1.msra.mxu0 0.0
    %1844 = vmatprep.subr.mxu0 0.0
    %1845 = vmatpush1.msra.mxu0 0.0
    %1846 = vmatprep.subr.mxu0 0.0
    %1847 = vmatpush1.msra.mxu0 0.0
    %1848 = vmatprep.subr.mxu0 0.0
    %1849 = vmatpush1.msra.mxu0 0.0
    %1850 = vmatprep.subr.mxu0 0.0
    %1851 = vmatpush1.msra.mxu0 0.0
    %1852 = vmatprep.subr.mxu0 0.0
    %1853 = vmatpush1.msra.mxu0 0.0
    %1854 = vmatprep.subr.mxu0 0.0
    %1855 = vmatpush1.msra.mxu0 0.0
    %1856 = vmatprep.subr.mxu0 0.0
    %1857 = vmatpush1.msra.mxu0 0.0
    %1858 = vmatprep.subr.mxu0 0.0
    %1859 = vmatpush1.msra.mxu0 0.0
    %1860 = vmatprep.subr.mxu0 0.0
    %1861 = vmatpush1.msra.mxu0 0.0
    %1862 = vmatprep.subr.mxu0 0.0
    %1863 = vmatpush1.msra.mxu0 0.0
    %1864 = vmatprep.subr.mxu0 0.0
    %1865 = vmatpush1.msra.mxu0 0.0
    %1866 = vmatprep.subr.mxu0 0.0
    %1867 = vmatpush1.msra.mxu0 0.0
    %1868 = vmatprep.subr.mxu0 0.0
    %1869 = vmatpush1.msra.mxu0 0.0
    %1870 = vmatprep.subr.mxu0 0.0
    %1871 = vmatpush1.msra.mxu0 0.0
    %1872 = vmatprep.subr.mxu0 0.0
    %1873 = vmatpush1.msra.mxu0 0.0
    %1874 = vmatprep.subr.mxu0 0.0
    %1875 = vmatpush1.msra.mxu0 0.0
    %1876 = vmatprep.subr.mxu0 0.0
    %1877 = vmatpush1.msra.mxu0 0.0
    %1878 = vmatprep.subr.mxu0 0.0
    %1879 = vmatpush1.msra.mxu0 0.0
    %1880 = vmatprep.subr.mxu0 0.0
    %1881 = vmatpush1.msra.mxu0 0.0
    %1882 = vmatprep.subr.mxu0 0.0
    %1883 = vmatpush1.msra.mxu0 0.0
    %1884 = vmatprep.subr.mxu0 0.0
    %1885 = vmatpush1.msra.mxu0 0.0
    %1886 = vmatprep.subr.mxu0 0.0
    %1887 = vmatpush1.msra.mxu0 0.0
    %1888 = vmatprep.subr.mxu0 0.0
    %1889 = vmatpush1.msra.mxu0 0.0
    %1890 = vmatprep.subr.mxu0 0.0
    %1891 = vmatpush1.msra.mxu0 0.0
    %1892 = vmatprep.subr.mxu0 0.0
    %1893 = vmatpush1.msra.mxu0 0.0
    %1894 = vmatprep.subr.mxu0 0.0
    %1895 = vmatpush1.msra.mxu0 0.0
    %1896 = vmatprep.subr.mxu0 0.0
    %1897 = vmatpush1.msra.mxu0 0.0
    %1898 = vmatprep.mubr.f32.mxu0 0.0
    %1899 = vmatmul.mubr.f32.gmra.mrb[0].mxu0 %v1829
    %v1900 = vpop.f32.mrb[0].mxu0
    %v1901 = vadd.f32 0.0, %v1900
    %v1902 = vpop.f32.mrb[0].mxu0
    %1903 = vmatprep.mubr.f32.mxu0 0.0
    %1904 = vmatmul.mubr.f32.gmra.mrb[0].mxu0 %v1832
    %v1905 = vpop.f32.mrb[0].mxu0
    %v1906 = vadd.f32 0.0, %v1905
    %v1907 = vpop.f32.mrb[0].mxu0
    %1908 = vdwg.mxu0
    %1911 = vrot.lane.b32.xlu0 %v665, 8
    %v1912 = vpop.permute.xlu0 %1911
    %1913 = vrot.lane.b32.xlu0 %v670, 8
    %v1914 = vpop.permute.xlu0 %1913
    %1919 = vrot.lane.b32.xlu0 %v871, 16
    %v1920 = vpop.permute.xlu0 %1919
    %1921 = vrot.lane.b32.xlu0 %v876, 16
    %v1922 = vpop.permute.xlu0 %1921
    %1927 = vrot.lane.b32.xlu0 %v1077, 24
    %v1928 = vpop.permute.xlu0 %1927
    %1929 = vrot.lane.b32.xlu0 %v1082, 24
    %v1930 = vpop.permute.xlu0 %1929
    %1935 = vrot.lane.b32.xlu0 %v1283, 32
    %v1936 = vpop.permute.xlu0 %1935
    %1937 = vrot.lane.b32.xlu0 %v1288, 32
    %v1938 = vpop.permute.xlu0 %1937
    %1943 = vrot.lane.b32.xlu0 %v1489, 40
    %v1944 = vpop.permute.xlu0 %1943
    %1945 = vrot.lane.b32.xlu0 %v1494, 40
    %v1946 = vpop.permute.xlu0 %1945
    %1951 = vrot.lane.b32.xlu0 %v1695, 48
    %v1952 = vpop.permute.xlu0 %1951
    %1953 = vrot.lane.b32.xlu0 %v1700, 48
    %v1954 = vpop.permute.xlu0 %1953
    %1959 = vrot.lane.b32.xlu0 %v1901, 56
    %v1960 = vpop.permute.xlu0 %1959
    %1961 = vrot.lane.b32.xlu0 %v1906, 56
    %v1962 = vpop.permute.xlu0 %1961
    %v1965 = vsel %vm271, %v457, %v1912
    %v1966 = vsel %vm271, %v462, %v1914
    %v1967 = vsel %vm357, %v1965, %v1920
    %v1968 = vsel %vm357, %v1966, %v1922
    %vm1969 = vcmask 195584
    %v1970 = vsel %vm1969, %v1967, %v1928
    %v1971 = vsel %vm1969, %v1968, %v1930
    %vm1972 = vcmask 261120
    %v1973 = vsel %vm1972, %v1970, %v1936
    %v1974 = vsel %vm1972, %v1971, %v1938
    %vm1975 = vcmask 326656
    %v1976 = vsel %vm1975, %v1973, %v1944
    %v1977 = vsel %vm1975, %v1974, %v1946
    %vm1978 = vcmask 392192
    %v1979 = vsel %vm1978, %v1976, %v1952
    %v1980 = vsel %vm1978, %v1977, %v1954
    %vm1981 = vcmask 457728
    %v1982 = vsel %vm1981, %v1979, %v1960
    %v1983 = vsel %vm1981, %v1980, %v1962
    %v1984 = vld [vmem:[%s7] sm:$0x1]
    %v1985 = vld [vmem:[%s8] sm:$0x1]
    %v1986 = vadd.f32 %v1982, %v147
    %v1987 = vadd.f32 %v1983, %v148
    %v1988 = vsel %vm179, %v1986, 0.0
    %1989 = vadd.xlane.f32.xlu0 %v1988
    %v1990 = vpop.xlane.xlu0 %1989
    %v1991 = vsel %vm179, %v1987, 0.0
    %1992 = vadd.xlane.f32.xlu0 %v1991
    %v1993 = vpop.xlane.xlu0 %1992
    %v1994 = vrcp.pop 64.0
    %v1995 = vmul.f32 %v1990, %v1994
    %v1996 = vmul.f32 %v1993, %v1994
    %v1997 = vsub.f32 %v1986, %v1995
    %v1998 = vsub.f32 %v1987, %v1996
    %v1999 = vmul.f32 %v1997, %v1997
    %v2000 = vmul.f32 %v1998, %v1998
    %v2001 = vsel %vm179, %v1999, 0.0
    %2002 = vadd.xlane.f32.xlu0 %v2001
    %v2003 = vpop.xlane.xlu0 %2002
    %v2004 = vsel %vm179, %v2000, 0.0
    %2005 = vadd.xlane.f32.xlu0 %v2004
    %v2006 = vpop.xlane.xlu0 %2005
    %v2007 = vmul.f32 %v2003, %v1994
    %v2008 = vmul.f32 %v2006, %v1994
    %v2009 = vadd.f32 %v2007, 1e-05
    %v2010 = vadd.f32 %v2008, 1e-05
    %v2011 = vrsqrt.pop %v2009
    %v2012 = vrsqrt.pop %v2010
    %v2013 = vmul.f32 %v1997, %v2011
    %v2014 = vmul.f32 %v1998, %v2012
    %v2016 = vlaneseq
    %v2017 = vshrl.u32 %v2016, 7
    %v2018 = vsub.s32 0, %v2017
    %v2019 = vrot.slane %v1984, %v2018
    %v2021 = vmul.f32 %v2013, %v2019
    %v2022 = vmul.f32 %v2014, %v2019
    %v2024 = vlaneseq
    %v2025 = vshrl.u32 %v2024, 7
    %v2026 = vsub.s32 0, %v2025
    %v2027 = vrot.slane %v1985, %v2026
    %v2029 = vadd.f32 %v2021, %v2027
    %v2030 = vadd.f32 %v2022, %v2027
    %v2031 = vld [vmem:[%s2] sm:$0xff]
    %v2032 = vld [vmem:[%s2 + $0x8] sm:$0xff]
    %v2033 = vld [vmem:[%s9] sm:$0xff]
    %v2034 = vld [vmem:[%s9 + $0x8] sm:$0xff]
    %v2035 = vld [vmem:[%s9 + $0x10] sm:$0xff]
    %v2036 = vld [vmem:[%s9 + $0x18] sm:$0xff]
    %v2037 = vld [vmem:[%s9 + $0x20] sm:$0xff]
    %v2038 = vld [vmem:[%s9 + $0x28] sm:$0xff]
    %v2039 = vld [vmem:[%s9 + $0x30] sm:$0xff]
    %v2040 = vld [vmem:[%s9 + $0x38] sm:$0xff]
    %v2041 = vld [vmem:[%s9 + $0x40] sm:$0xff]
    %v2042 = vld [vmem:[%s9 + $0x48] sm:$0xff]
    %v2043 = vld [vmem:[%s9 + $0x50] sm:$0xff]
    %v2044 = vld [vmem:[%s9 + $0x58] sm:$0xff]
    %v2045 = vld [vmem:[%s9 + $0x60] sm:$0xff]
    %v2046 = vld [vmem:[%s9 + $0x68] sm:$0xff]
    %v2047 = vld [vmem:[%s9 + $0x70] sm:$0xff]
    %v2048 = vld [vmem:[%s9 + $0x78] sm:$0xff]
    %v2049 = vld [vmem:[%s10] sm:$0x3]
    %v2051 = vlaneseq
    %v2052 = vshrl.u32 %v2051, 7
    %v2053 = vsub.s32 0, %v2052
    %v2054 = vrot.slane %v2049, %v2053
    %v2055 = vlaneseq
    %v2056 = vshrl.u32 %v2055, 7
    %v2057 = vsub.s32 1, %v2056
    %v2058 = vrot.slane %v2049, %v2057
    %v2062 = vsel %vm179, %v2029, 0
    %v2065 = vsel %vm179, %v2030, 0
    %2067 = vmatprep.subr.mxu0 %v2034
    %2068 = vmatpush1.msra.mxu0 %v2033
    %2069 = vmatprep.subr.mxu0 %v2036
    %2070 = vmatpush1.msra.mxu0 %v2035
    %2071 = vmatprep.subr.mxu0 %v2038
    %2072 = vmatpush1.msra.mxu0 %v2037
    %2073 = vmatprep.subr.mxu0 %v2040
    %2074 = vmatpush1.msra.mxu0 %v2039
    %2075 = vmatprep.subr.mxu0 %v2042
    %2076 = vmatpush1.msra.mxu0 %v2041
    %2077 = vmatprep.subr.mxu0 %v2044
    %2078 = vmatpush1.msra.mxu0 %v2043
    %2079 = vmatprep.subr.mxu0 %v2046
    %2080 = vmatpush1.msra.mxu0 %v2045
    %2081 = vmatprep.subr.mxu0 %v2048
    %2082 = vmatpush1.msra.mxu0 %v2047
    %2083 = vmatprep.subr.mxu0 0.0
    %2084 = vmatpush1.msra.mxu0 0.0
    %2085 = vmatprep.subr.mxu0 0.0
    %2086 = vmatpush1.msra.mxu0 0.0
    %2087 = vmatprep.subr.mxu0 0.0
    %2088 = vmatpush1.msra.mxu0 0.0
    %2089 = vmatprep.subr.mxu0 0.0
    %2090 = vmatpush1.msra.mxu0 0.0
    %2091 = vmatprep.subr.mxu0 0.0
    %2092 = vmatpush1.msra.mxu0 0.0
    %2093 = vmatprep.subr.mxu0 0.0
    %2094 = vmatpush1.msra.mxu0 0.0
    %2095 = vmatprep.subr.mxu0 0.0
    %2096 = vmatpush1.msra.mxu0 0.0
    %2097 = vmatprep.subr.mxu0 0.0
    %2098 = vmatpush1.msra.mxu0 0.0
    %2099 = vmatprep.subr.mxu0 0.0
    %2100 = vmatpush1.msra.mxu0 0.0
    %2101 = vmatprep.subr.mxu0 0.0
    %2102 = vmatpush1.msra.mxu0 0.0
    %2103 = vmatprep.subr.mxu0 0.0
    %2104 = vmatpush1.msra.mxu0 0.0
    %2105 = vmatprep.subr.mxu0 0.0
    %2106 = vmatpush1.msra.mxu0 0.0
    %2107 = vmatprep.subr.mxu0 0.0
    %2108 = vmatpush1.msra.mxu0 0.0
    %2109 = vmatprep.subr.mxu0 0.0
    %2110 = vmatpush1.msra.mxu0 0.0
    %2111 = vmatprep.subr.mxu0 0.0
    %2112 = vmatpush1.msra.mxu0 0.0
    %2113 = vmatprep.subr.mxu0 0.0
    %2114 = vmatpush1.msra.mxu0 0.0
    %2115 = vmatprep.subr.mxu0 0.0
    %2116 = vmatpush1.msra.mxu0 0.0
    %2117 = vmatprep.subr.mxu0 0.0
    %2118 = vmatpush1.msra.mxu0 0.0
    %2119 = vmatprep.subr.mxu0 0.0
    %2120 = vmatpush1.msra.mxu0 0.0
    %2121 = vmatprep.subr.mxu0 0.0
    %2122 = vmatpush1.msra.mxu0 0.0
    %2123 = vmatprep.subr.mxu0 0.0
    %2124 = vmatpush1.msra.mxu0 0.0
    %2125 = vmatprep.subr.mxu0 0.0
    %2126 = vmatpush1.msra.mxu0 0.0
    %2127 = vmatprep.subr.mxu0 0.0
    %2128 = vmatpush1.msra.mxu0 0.0
    %2129 = vmatprep.subr.mxu0 0.0
    %2130 = vmatpush1.msra.mxu0 0.0
    %2131 = vmatprep.mubr.f32.mxu0 0.0
    %2132 = vmatmul.mubr.f32.gmra.mrb[0].mxu0 %v2062
    %v2133 = vpop.f32.mrb[0].mxu0
    %v2134 = vadd.f32 %v2054, %v2133
    %v2135 = vpop.f32.mrb[0].mxu0
    %v2136 = vadd.f32 %v2058, %v2135
    %2137 = vmatprep.mubr.f32.mxu0 0.0
    %2138 = vmatmul.mubr.f32.gmra.mrb[0].mxu0 %v2065
    %v2139 = vpop.f32.mrb[0].mxu0
    %v2140 = vadd.f32 %v2054, %v2139
    %v2141 = vpop.f32.mrb[0].mxu0
    %v2142 = vadd.f32 %v2058, %v2141
    %2143 = vdwg.mxu0
    %vm2144 = vcmp.gt.f32.partialorder %v2031, 0.0
    %vm2145 = vcmp.gt.f32.partialorder %v2032, 0.0
    %2148 = vrot.lane.b32.xlu0 %v2134, 64
    %v2149 = vpop.permute.xlu0 %2148
    %2150 = vrot.lane.b32.xlu0 %v2140, 64
    %v2151 = vpop.permute.xlu0 %2150
    %v2152 = vsel %vm271, %v2134, 0
    %v2154 = vsel %vm271, %v2140, 0
    %v2156 = vsel %vm271, %v2149, 0
    %v2158 = vsel %vm271, %v2151, 0
    %2160 = vmatprep.subr.mxu0 0.0
    %2161 = vmatpush1.xpose.msra.mxu0 %v2156
    %2162 = vmatprep.subr.mxu0 0.0
    %2163 = vmatpush1.xpose.msra.mxu0 %v2158
    %2164 = vmatprep.subr.mxu0 0.0
    %2165 = vmatpush1.xpose.msra.mxu0 0.0
    %2166 = vmatprep.subr.mxu0 0.0
    %2167 = vmatpush1.xpose.msra.mxu0 0.0
    %2168 = vmatprep.subr.mxu0 0.0
    %2169 = vmatpush1.xpose.msra.mxu0 0.0
    %2170 = vmatprep.subr.mxu0 0.0
    %2171 = vmatpush1.xpose.msra.mxu0 0.0
    %2172 = vmatprep.subr.mxu0 0.0
    %2173 = vmatpush1.xpose.msra.mxu0 0.0
    %2174 = vmatprep.subr.mxu0 0.0
    %2175 = vmatpush1.xpose.msra.mxu0 0.0
    %2176 = vmatprep.subr.mxu0 0.0
    %2177 = vmatpush1.xpose.msra.mxu0 0.0
    %2178 = vmatprep.subr.mxu0 0.0
    %2179 = vmatpush1.xpose.msra.mxu0 0.0
    %2180 = vmatprep.subr.mxu0 0.0
    %2181 = vmatpush1.xpose.msra.mxu0 0.0
    %2182 = vmatprep.subr.mxu0 0.0
    %2183 = vmatpush1.xpose.msra.mxu0 0.0
    %2184 = vmatprep.subr.mxu0 0.0
    %2185 = vmatpush1.xpose.msra.mxu0 0.0
    %2186 = vmatprep.subr.mxu0 0.0
    %2187 = vmatpush1.xpose.msra.mxu0 0.0
    %2188 = vmatprep.subr.mxu0 0.0
    %2189 = vmatpush1.xpose.msra.mxu0 0.0
    %2190 = vmatprep.subr.mxu0 0.0
    %2191 = vmatpush1.xpose.msra.mxu0 0.0
    %2192 = vmatprep.subr.mxu0 0.0
    %2193 = vmatpush1.xpose.msra.mxu0 0.0
    %2194 = vmatprep.subr.mxu0 0.0
    %2195 = vmatpush1.xpose.msra.mxu0 0.0
    %2196 = vmatprep.subr.mxu0 0.0
    %2197 = vmatpush1.xpose.msra.mxu0 0.0
    %2198 = vmatprep.subr.mxu0 0.0
    %2199 = vmatpush1.xpose.msra.mxu0 0.0
    %2200 = vmatprep.subr.mxu0 0.0
    %2201 = vmatpush1.xpose.msra.mxu0 0.0
    %2202 = vmatprep.subr.mxu0 0.0
    %2203 = vmatpush1.xpose.msra.mxu0 0.0
    %2204 = vmatprep.subr.mxu0 0.0
    %2205 = vmatpush1.xpose.msra.mxu0 0.0
    %2206 = vmatprep.subr.mxu0 0.0
    %2207 = vmatpush1.xpose.msra.mxu0 0.0
    %2208 = vmatprep.subr.mxu0 0.0
    %2209 = vmatpush1.xpose.msra.mxu0 0.0
    %2210 = vmatprep.subr.mxu0 0.0
    %2211 = vmatpush1.xpose.msra.mxu0 0.0
    %2212 = vmatprep.subr.mxu0 0.0
    %2213 = vmatpush1.xpose.msra.mxu0 0.0
    %2214 = vmatprep.subr.mxu0 0.0
    %2215 = vmatpush1.xpose.msra.mxu0 0.0
    %2216 = vmatprep.subr.mxu0 0.0
    %2217 = vmatpush1.xpose.msra.mxu0 0.0
    %2218 = vmatprep.subr.mxu0 0.0
    %2219 = vmatpush1.xpose.msra.mxu0 0.0
    %2220 = vmatprep.subr.mxu0 0.0
    %2221 = vmatpush1.xpose.msra.mxu0 0.0
    %2222 = vmatprep.subr.mxu0 0.0
    %2223 = vmatpush1.xpose.msra.mxu0 0.0
    %2224 = vmatprep.mubr.f32.mxu0 0.0
    %2225 = vmatmul.mubr.f32.gmra.mrb[0].mxu0 %v2152
    %v2226 = vpop.f32.mrb[0].mxu0
    %v2227 = vadd.f32 0.0, %v2226
    %v2228 = vpop.f32.mrb[0].mxu0
    %2229 = vmatprep.mubr.f32.mxu0 0.0
    %2230 = vmatmul.mubr.f32.gmra.mrb[0].mxu0 %v2154
    %v2231 = vpop.f32.mrb[0].mxu0
    %v2232 = vadd.f32 0.0, %v2231
    %v2233 = vpop.f32.mrb[0].mxu0
    %2234 = vdwg.mxu0
    %v2235 = vsel %vm2144, %v2227, -1e+30
    %v2236 = vsel %vm2145, %v2232, -1e+30
    %v2237 = vsel %vm357, %v2235, -inf
    %2238 = vmax.xlane.f32.xlu0 %v2237
    %v2239 = vpop.xlane.xlu0 %2238
    %v2240 = vsel %vm357, %v2236, -inf
    %2241 = vmax.xlane.f32.xlu0 %v2240
    %v2242 = vpop.xlane.xlu0 %2241
    %v2243 = vsub.f32 %v2235, %v2239
    %v2244 = vsub.f32 %v2236, %v2242
    %v2245 = vmul.f32 %v2243, 1.442695
    %v2246 = vpow.pop %v2245
    %v2247 = vmul.f32 %v2244, 1.442695
    %v2248 = vpow.pop %v2247
    %v2249 = vmul.f32 %v2031, %v2246
    %v2250 = vmul.f32 %v2032, %v2248
    %v2251 = vsel %vm357, %v2249, 0.0
    %2252 = vadd.xlane.f32.xlu0 %v2251
    %v2253 = vpop.xlane.xlu0 %2252
    %v2254 = vsel %vm357, %v2250, 0.0
    %2255 = vadd.xlane.f32.xlu0 %v2254
    %v2256 = vpop.xlane.xlu0 %2255
    %v2257 = vmul.f32 %v2253, 8.0
    %v2258 = vmul.f32 %v2256, 8.0
    %v2259 = vrcp.pop %v2257
    %v2260 = vrcp.pop %v2258
    %v2261 = vmul.f32 %v2249, %v2259
    %v2262 = vmul.f32 %v2250, %v2260
    %v2264 = vsel %vm357, %v2261, 0
    %v2267 = vsel %vm357, %v2262, 0
    %2269 = vmatprep.subr.mxu0 0.0
    %2270 = vmatpush1.msra.mxu0 %v2136
    %2271 = vmatprep.subr.mxu0 0.0
    %2272 = vmatpush1.msra.mxu0 %v2142
    %2273 = vmatprep.subr.mxu0 0.0
    %2274 = vmatpush1.msra.mxu0 0.0
    %2275 = vmatprep.subr.mxu0 0.0
    %2276 = vmatpush1.msra.mxu0 0.0
    %2277 = vmatprep.subr.mxu0 0.0
    %2278 = vmatpush1.msra.mxu0 0.0
    %2279 = vmatprep.subr.mxu0 0.0
    %2280 = vmatpush1.msra.mxu0 0.0
    %2281 = vmatprep.subr.mxu0 0.0
    %2282 = vmatpush1.msra.mxu0 0.0
    %2283 = vmatprep.subr.mxu0 0.0
    %2284 = vmatpush1.msra.mxu0 0.0
    %2285 = vmatprep.subr.mxu0 0.0
    %2286 = vmatpush1.msra.mxu0 0.0
    %2287 = vmatprep.subr.mxu0 0.0
    %2288 = vmatpush1.msra.mxu0 0.0
    %2289 = vmatprep.subr.mxu0 0.0
    %2290 = vmatpush1.msra.mxu0 0.0
    %2291 = vmatprep.subr.mxu0 0.0
    %2292 = vmatpush1.msra.mxu0 0.0
    %2293 = vmatprep.subr.mxu0 0.0
    %2294 = vmatpush1.msra.mxu0 0.0
    %2295 = vmatprep.subr.mxu0 0.0
    %2296 = vmatpush1.msra.mxu0 0.0
    %2297 = vmatprep.subr.mxu0 0.0
    %2298 = vmatpush1.msra.mxu0 0.0
    %2299 = vmatprep.subr.mxu0 0.0
    %2300 = vmatpush1.msra.mxu0 0.0
    %2301 = vmatprep.subr.mxu0 0.0
    %2302 = vmatpush1.msra.mxu0 0.0
    %2303 = vmatprep.subr.mxu0 0.0
    %2304 = vmatpush1.msra.mxu0 0.0
    %2305 = vmatprep.subr.mxu0 0.0
    %2306 = vmatpush1.msra.mxu0 0.0
    %2307 = vmatprep.subr.mxu0 0.0
    %2308 = vmatpush1.msra.mxu0 0.0
    %2309 = vmatprep.subr.mxu0 0.0
    %2310 = vmatpush1.msra.mxu0 0.0
    %2311 = vmatprep.subr.mxu0 0.0
    %2312 = vmatpush1.msra.mxu0 0.0
    %2313 = vmatprep.subr.mxu0 0.0
    %2314 = vmatpush1.msra.mxu0 0.0
    %2315 = vmatprep.subr.mxu0 0.0
    %2316 = vmatpush1.msra.mxu0 0.0
    %2317 = vmatprep.subr.mxu0 0.0
    %2318 = vmatpush1.msra.mxu0 0.0
    %2319 = vmatprep.subr.mxu0 0.0
    %2320 = vmatpush1.msra.mxu0 0.0
    %2321 = vmatprep.subr.mxu0 0.0
    %2322 = vmatpush1.msra.mxu0 0.0
    %2323 = vmatprep.subr.mxu0 0.0
    %2324 = vmatpush1.msra.mxu0 0.0
    %2325 = vmatprep.subr.mxu0 0.0
    %2326 = vmatpush1.msra.mxu0 0.0
    %2327 = vmatprep.subr.mxu0 0.0
    %2328 = vmatpush1.msra.mxu0 0.0
    %2329 = vmatprep.subr.mxu0 0.0
    %2330 = vmatpush1.msra.mxu0 0.0
    %2331 = vmatprep.subr.mxu0 0.0
    %2332 = vmatpush1.msra.mxu0 0.0
    %2333 = vmatprep.mubr.f32.mxu0 0.0
    %2334 = vmatmul.mubr.f32.gmra.mrb[0].mxu0 %v2264
    %v2335 = vpop.f32.mrb[0].mxu0
    %v2336 = vadd.f32 0.0, %v2335
    %v2337 = vpop.f32.mrb[0].mxu0
    %2338 = vmatprep.mubr.f32.mxu0 0.0
    %2339 = vmatmul.mubr.f32.gmra.mrb[0].mxu0 %v2267
    %v2340 = vpop.f32.mrb[0].mxu0
    %v2341 = vadd.f32 0.0, %v2340
    %v2342 = vpop.f32.mrb[0].mxu0
    %2343 = vdwg.mxu0
    %v2344 = vmul.f32 %v2253, %v2259
    %v2345 = vmul.f32 %v2256, %v2260
    %v2346 = vadd.f32 %v2344, 0.0
    %v2347 = vadd.f32 %v2345, 0.0
    %2348 = vrot.lane.b32.xlu0 %v2134, 120
    %v2349 = vpop.permute.xlu0 %2348
    %2350 = vrot.lane.b32.xlu0 %v2140, 120
    %v2351 = vpop.permute.xlu0 %2350
    %2352 = vrot.lane.b32.xlu0 %v2134, 56
    %v2353 = vpop.permute.xlu0 %2352
    %2354 = vrot.lane.b32.xlu0 %v2140, 56
    %v2355 = vpop.permute.xlu0 %2354
    %v2356 = vsel %vm271, %v2349, 0
    %v2358 = vsel %vm271, %v2351, 0
    %v2360 = vsel %vm271, %v2353, 0
    %v2362 = vsel %vm271, %v2355, 0
    %2364 = vmatprep.subr.mxu0 0.0
    %2365 = vmatpush1.xpose.msra.mxu0 %v2360
    %2366 = vmatprep.subr.mxu0 0.0
    %2367 = vmatpush1.xpose.msra.mxu0 %v2362
    %2368 = vmatprep.subr.mxu0 0.0
    %2369 = vmatpush1.xpose.msra.mxu0 0.0
    %2370 = vmatprep.subr.mxu0 0.0
    %2371 = vmatpush1.xpose.msra.mxu0 0.0
    %2372 = vmatprep.subr.mxu0 0.0
    %2373 = vmatpush1.xpose.msra.mxu0 0.0
    %2374 = vmatprep.subr.mxu0 0.0
    %2375 = vmatpush1.xpose.msra.mxu0 0.0
    %2376 = vmatprep.subr.mxu0 0.0
    %2377 = vmatpush1.xpose.msra.mxu0 0.0
    %2378 = vmatprep.subr.mxu0 0.0
    %2379 = vmatpush1.xpose.msra.mxu0 0.0
    %2380 = vmatprep.subr.mxu0 0.0
    %2381 = vmatpush1.xpose.msra.mxu0 0.0
    %2382 = vmatprep.subr.mxu0 0.0
    %2383 = vmatpush1.xpose.msra.mxu0 0.0
    %2384 = vmatprep.subr.mxu0 0.0
    %2385 = vmatpush1.xpose.msra.mxu0 0.0
    %2386 = vmatprep.subr.mxu0 0.0
    %2387 = vmatpush1.xpose.msra.mxu0 0.0
    %2388 = vmatprep.subr.mxu0 0.0
    %2389 = vmatpush1.xpose.msra.mxu0 0.0
    %2390 = vmatprep.subr.mxu0 0.0
    %2391 = vmatpush1.xpose.msra.mxu0 0.0
    %2392 = vmatprep.subr.mxu0 0.0
    %2393 = vmatpush1.xpose.msra.mxu0 0.0
    %2394 = vmatprep.subr.mxu0 0.0
    %2395 = vmatpush1.xpose.msra.mxu0 0.0
    %2396 = vmatprep.subr.mxu0 0.0
    %2397 = vmatpush1.xpose.msra.mxu0 0.0
    %2398 = vmatprep.subr.mxu0 0.0
    %2399 = vmatpush1.xpose.msra.mxu0 0.0
    %2400 = vmatprep.subr.mxu0 0.0
    %2401 = vmatpush1.xpose.msra.mxu0 0.0
    %2402 = vmatprep.subr.mxu0 0.0
    %2403 = vmatpush1.xpose.msra.mxu0 0.0
    %2404 = vmatprep.subr.mxu0 0.0
    %2405 = vmatpush1.xpose.msra.mxu0 0.0
    %2406 = vmatprep.subr.mxu0 0.0
    %2407 = vmatpush1.xpose.msra.mxu0 0.0
    %2408 = vmatprep.subr.mxu0 0.0
    %2409 = vmatpush1.xpose.msra.mxu0 0.0
    %2410 = vmatprep.subr.mxu0 0.0
    %2411 = vmatpush1.xpose.msra.mxu0 0.0
    %2412 = vmatprep.subr.mxu0 0.0
    %2413 = vmatpush1.xpose.msra.mxu0 0.0
    %2414 = vmatprep.subr.mxu0 0.0
    %2415 = vmatpush1.xpose.msra.mxu0 0.0
    %2416 = vmatprep.subr.mxu0 0.0
    %2417 = vmatpush1.xpose.msra.mxu0 0.0
    %2418 = vmatprep.subr.mxu0 0.0
    %2419 = vmatpush1.xpose.msra.mxu0 0.0
    %2420 = vmatprep.subr.mxu0 0.0
    %2421 = vmatpush1.xpose.msra.mxu0 0.0
    %2422 = vmatprep.subr.mxu0 0.0
    %2423 = vmatpush1.xpose.msra.mxu0 0.0
    %2424 = vmatprep.subr.mxu0 0.0
    %2425 = vmatpush1.xpose.msra.mxu0 0.0
    %2426 = vmatprep.subr.mxu0 0.0
    %2427 = vmatpush1.xpose.msra.mxu0 0.0
    %2428 = vmatprep.mubr.f32.mxu0 0.0
    %2429 = vmatmul.mubr.f32.gmra.mrb[0].mxu0 %v2356
    %v2430 = vpop.f32.mrb[0].mxu0
    %v2431 = vadd.f32 0.0, %v2430
    %v2432 = vpop.f32.mrb[0].mxu0
    %2433 = vmatprep.mubr.f32.mxu0 0.0
    %2434 = vmatmul.mubr.f32.gmra.mrb[0].mxu0 %v2358
    %v2435 = vpop.f32.mrb[0].mxu0
    %v2436 = vadd.f32 0.0, %v2435
    %v2437 = vpop.f32.mrb[0].mxu0
    %2438 = vdwg.mxu0
    %v2439 = vsel %vm2144, %v2431, -1e+30
    %v2440 = vsel %vm2145, %v2436, -1e+30
    %v2441 = vsel %vm357, %v2439, -inf
    %2442 = vmax.xlane.f32.xlu0 %v2441
    %v2443 = vpop.xlane.xlu0 %2442
    %v2444 = vsel %vm357, %v2440, -inf
    %2445 = vmax.xlane.f32.xlu0 %v2444
    %v2446 = vpop.xlane.xlu0 %2445
    %v2447 = vsub.f32 %v2439, %v2443
    %v2448 = vsub.f32 %v2440, %v2446
    %v2449 = vmul.f32 %v2447, 1.442695
    %v2450 = vpow.pop %v2449
    %v2451 = vmul.f32 %v2448, 1.442695
    %v2452 = vpow.pop %v2451
    %v2453 = vmul.f32 %v2031, %v2450
    %v2454 = vmul.f32 %v2032, %v2452
    %v2455 = vsel %vm357, %v2453, 0.0
    %2456 = vadd.xlane.f32.xlu0 %v2455
    %v2457 = vpop.xlane.xlu0 %2456
    %v2458 = vsel %vm357, %v2454, 0.0
    %2459 = vadd.xlane.f32.xlu0 %v2458
    %v2460 = vpop.xlane.xlu0 %2459
    %v2461 = vmul.f32 %v2457, 8.0
    %v2462 = vmul.f32 %v2460, 8.0
    %v2463 = vrcp.pop %v2461
    %v2464 = vrcp.pop %v2462
    %v2465 = vmul.f32 %v2453, %v2463
    %v2466 = vmul.f32 %v2454, %v2464
    %2469 = vrot.lane.b32.xlu0 %v2136, 120
    %v2470 = vpop.permute.xlu0 %2469
    %2471 = vrot.lane.b32.xlu0 %v2142, 120
    %v2472 = vpop.permute.xlu0 %2471
    %v2476 = vsel %vm357, %v2465, 0
    %v2479 = vsel %vm357, %v2466, 0
    %2481 = vmatprep.subr.mxu0 0.0
    %2482 = vmatpush1.msra.mxu0 %v2470
    %2483 = vmatprep.subr.mxu0 0.0
    %2484 = vmatpush1.msra.mxu0 %v2472
    %2485 = vmatprep.subr.mxu0 0.0
    %2486 = vmatpush1.msra.mxu0 0.0
    %2487 = vmatprep.subr.mxu0 0.0
    %2488 = vmatpush1.msra.mxu0 0.0
    %2489 = vmatprep.subr.mxu0 0.0
    %2490 = vmatpush1.msra.mxu0 0.0
    %2491 = vmatprep.subr.mxu0 0.0
    %2492 = vmatpush1.msra.mxu0 0.0
    %2493 = vmatprep.subr.mxu0 0.0
    %2494 = vmatpush1.msra.mxu0 0.0
    %2495 = vmatprep.subr.mxu0 0.0
    %2496 = vmatpush1.msra.mxu0 0.0
    %2497 = vmatprep.subr.mxu0 0.0
    %2498 = vmatpush1.msra.mxu0 0.0
    %2499 = vmatprep.subr.mxu0 0.0
    %2500 = vmatpush1.msra.mxu0 0.0
    %2501 = vmatprep.subr.mxu0 0.0
    %2502 = vmatpush1.msra.mxu0 0.0
    %2503 = vmatprep.subr.mxu0 0.0
    %2504 = vmatpush1.msra.mxu0 0.0
    %2505 = vmatprep.subr.mxu0 0.0
    %2506 = vmatpush1.msra.mxu0 0.0
    %2507 = vmatprep.subr.mxu0 0.0
    %2508 = vmatpush1.msra.mxu0 0.0
    %2509 = vmatprep.subr.mxu0 0.0
    %2510 = vmatpush1.msra.mxu0 0.0
    %2511 = vmatprep.subr.mxu0 0.0
    %2512 = vmatpush1.msra.mxu0 0.0
    %2513 = vmatprep.subr.mxu0 0.0
    %2514 = vmatpush1.msra.mxu0 0.0
    %2515 = vmatprep.subr.mxu0 0.0
    %2516 = vmatpush1.msra.mxu0 0.0
    %2517 = vmatprep.subr.mxu0 0.0
    %2518 = vmatpush1.msra.mxu0 0.0
    %2519 = vmatprep.subr.mxu0 0.0
    %2520 = vmatpush1.msra.mxu0 0.0
    %2521 = vmatprep.subr.mxu0 0.0
    %2522 = vmatpush1.msra.mxu0 0.0
    %2523 = vmatprep.subr.mxu0 0.0
    %2524 = vmatpush1.msra.mxu0 0.0
    %2525 = vmatprep.subr.mxu0 0.0
    %2526 = vmatpush1.msra.mxu0 0.0
    %2527 = vmatprep.subr.mxu0 0.0
    %2528 = vmatpush1.msra.mxu0 0.0
    %2529 = vmatprep.subr.mxu0 0.0
    %2530 = vmatpush1.msra.mxu0 0.0
    %2531 = vmatprep.subr.mxu0 0.0
    %2532 = vmatpush1.msra.mxu0 0.0
    %2533 = vmatprep.subr.mxu0 0.0
    %2534 = vmatpush1.msra.mxu0 0.0
    %2535 = vmatprep.subr.mxu0 0.0
    %2536 = vmatpush1.msra.mxu0 0.0
    %2537 = vmatprep.subr.mxu0 0.0
    %2538 = vmatpush1.msra.mxu0 0.0
    %2539 = vmatprep.subr.mxu0 0.0
    %2540 = vmatpush1.msra.mxu0 0.0
    %2541 = vmatprep.subr.mxu0 0.0
    %2542 = vmatpush1.msra.mxu0 0.0
    %2543 = vmatprep.subr.mxu0 0.0
    %2544 = vmatpush1.msra.mxu0 0.0
    %2545 = vmatprep.mubr.f32.mxu0 0.0
    %2546 = vmatmul.mubr.f32.gmra.mrb[0].mxu0 %v2476
    %v2547 = vpop.f32.mrb[0].mxu0
    %v2548 = vadd.f32 0.0, %v2547
    %v2549 = vpop.f32.mrb[0].mxu0
    %2550 = vmatprep.mubr.f32.mxu0 0.0
    %2551 = vmatmul.mubr.f32.gmra.mrb[0].mxu0 %v2479
    %v2552 = vpop.f32.mrb[0].mxu0
    %v2553 = vadd.f32 0.0, %v2552
    %v2554 = vpop.f32.mrb[0].mxu0
    %2555 = vdwg.mxu0
    %v2556 = vmul.f32 %v2457, %v2463
    %v2557 = vmul.f32 %v2460, %v2464
    %v2558 = vadd.f32 %v2346, %v2556
    %v2559 = vadd.f32 %v2347, %v2557
    %2560 = vrot.lane.b32.xlu0 %v2134, 112
    %v2561 = vpop.permute.xlu0 %2560
    %2562 = vrot.lane.b32.xlu0 %v2140, 112
    %v2563 = vpop.permute.xlu0 %2562
    %2564 = vrot.lane.b32.xlu0 %v2134, 48
    %v2565 = vpop.permute.xlu0 %2564
    %2566 = vrot.lane.b32.xlu0 %v2140, 48
    %v2567 = vpop.permute.xlu0 %2566
    %v2568 = vsel %vm271, %v2561, 0
    %v2570 = vsel %vm271, %v2563, 0
    %v2572 = vsel %vm271, %v2565, 0
    %v2574 = vsel %vm271, %v2567, 0
    %2576 = vmatprep.subr.mxu0 0.0
    %2577 = vmatpush1.xpose.msra.mxu0 %v2572
    %2578 = vmatprep.subr.mxu0 0.0
    %2579 = vmatpush1.xpose.msra.mxu0 %v2574
    %2580 = vmatprep.subr.mxu0 0.0
    %2581 = vmatpush1.xpose.msra.mxu0 0.0
    %2582 = vmatprep.subr.mxu0 0.0
    %2583 = vmatpush1.xpose.msra.mxu0 0.0
    %2584 = vmatprep.subr.mxu0 0.0
    %2585 = vmatpush1.xpose.msra.mxu0 0.0
    %2586 = vmatprep.subr.mxu0 0.0
    %2587 = vmatpush1.xpose.msra.mxu0 0.0
    %2588 = vmatprep.subr.mxu0 0.0
    %2589 = vmatpush1.xpose.msra.mxu0 0.0
    %2590 = vmatprep.subr.mxu0 0.0
    %2591 = vmatpush1.xpose.msra.mxu0 0.0
    %2592 = vmatprep.subr.mxu0 0.0
    %2593 = vmatpush1.xpose.msra.mxu0 0.0
    %2594 = vmatprep.subr.mxu0 0.0
    %2595 = vmatpush1.xpose.msra.mxu0 0.0
    %2596 = vmatprep.subr.mxu0 0.0
    %2597 = vmatpush1.xpose.msra.mxu0 0.0
    %2598 = vmatprep.subr.mxu0 0.0
    %2599 = vmatpush1.xpose.msra.mxu0 0.0
    %2600 = vmatprep.subr.mxu0 0.0
    %2601 = vmatpush1.xpose.msra.mxu0 0.0
    %2602 = vmatprep.subr.mxu0 0.0
    %2603 = vmatpush1.xpose.msra.mxu0 0.0
    %2604 = vmatprep.subr.mxu0 0.0
    %2605 = vmatpush1.xpose.msra.mxu0 0.0
    %2606 = vmatprep.subr.mxu0 0.0
    %2607 = vmatpush1.xpose.msra.mxu0 0.0
    %2608 = vmatprep.subr.mxu0 0.0
    %2609 = vmatpush1.xpose.msra.mxu0 0.0
    %2610 = vmatprep.subr.mxu0 0.0
    %2611 = vmatpush1.xpose.msra.mxu0 0.0
    %2612 = vmatprep.subr.mxu0 0.0
    %2613 = vmatpush1.xpose.msra.mxu0 0.0
    %2614 = vmatprep.subr.mxu0 0.0
    %2615 = vmatpush1.xpose.msra.mxu0 0.0
    %2616 = vmatprep.subr.mxu0 0.0
    %2617 = vmatpush1.xpose.msra.mxu0 0.0
    %2618 = vmatprep.subr.mxu0 0.0
    %2619 = vmatpush1.xpose.msra.mxu0 0.0
    %2620 = vmatprep.subr.mxu0 0.0
    %2621 = vmatpush1.xpose.msra.mxu0 0.0
    %2622 = vmatprep.subr.mxu0 0.0
    %2623 = vmatpush1.xpose.msra.mxu0 0.0
    %2624 = vmatprep.subr.mxu0 0.0
    %2625 = vmatpush1.xpose.msra.mxu0 0.0
    %2626 = vmatprep.subr.mxu0 0.0
    %2627 = vmatpush1.xpose.msra.mxu0 0.0
    %2628 = vmatprep.subr.mxu0 0.0
    %2629 = vmatpush1.xpose.msra.mxu0 0.0
    %2630 = vmatprep.subr.mxu0 0.0
    %2631 = vmatpush1.xpose.msra.mxu0 0.0
    %2632 = vmatprep.subr.mxu0 0.0
    %2633 = vmatpush1.xpose.msra.mxu0 0.0
    %2634 = vmatprep.subr.mxu0 0.0
    %2635 = vmatpush1.xpose.msra.mxu0 0.0
    %2636 = vmatprep.subr.mxu0 0.0
    %2637 = vmatpush1.xpose.msra.mxu0 0.0
    %2638 = vmatprep.subr.mxu0 0.0
    %2639 = vmatpush1.xpose.msra.mxu0 0.0
    %2640 = vmatprep.mubr.f32.mxu0 0.0
    %2641 = vmatmul.mubr.f32.gmra.mrb[0].mxu0 %v2568
    %v2642 = vpop.f32.mrb[0].mxu0
    %v2643 = vadd.f32 0.0, %v2642
    %v2644 = vpop.f32.mrb[0].mxu0
    %2645 = vmatprep.mubr.f32.mxu0 0.0
    %2646 = vmatmul.mubr.f32.gmra.mrb[0].mxu0 %v2570
    %v2647 = vpop.f32.mrb[0].mxu0
    %v2648 = vadd.f32 0.0, %v2647
    %v2649 = vpop.f32.mrb[0].mxu0
    %2650 = vdwg.mxu0
    %v2651 = vsel %vm2144, %v2643, -1e+30
    %v2652 = vsel %vm2145, %v2648, -1e+30
    %v2653 = vsel %vm357, %v2651, -inf
    %2654 = vmax.xlane.f32.xlu0 %v2653
    %v2655 = vpop.xlane.xlu0 %2654
    %v2656 = vsel %vm357, %v2652, -inf
    %2657 = vmax.xlane.f32.xlu0 %v2656
    %v2658 = vpop.xlane.xlu0 %2657
    %v2659 = vsub.f32 %v2651, %v2655
    %v2660 = vsub.f32 %v2652, %v2658
    %v2661 = vmul.f32 %v2659, 1.442695
    %v2662 = vpow.pop %v2661
    %v2663 = vmul.f32 %v2660, 1.442695
    %v2664 = vpow.pop %v2663
    %v2665 = vmul.f32 %v2031, %v2662
    %v2666 = vmul.f32 %v2032, %v2664
    %v2667 = vsel %vm357, %v2665, 0.0
    %2668 = vadd.xlane.f32.xlu0 %v2667
    %v2669 = vpop.xlane.xlu0 %2668
    %v2670 = vsel %vm357, %v2666, 0.0
    %2671 = vadd.xlane.f32.xlu0 %v2670
    %v2672 = vpop.xlane.xlu0 %2671
    %v2673 = vmul.f32 %v2669, 8.0
    %v2674 = vmul.f32 %v2672, 8.0
    %v2675 = vrcp.pop %v2673
    %v2676 = vrcp.pop %v2674
    %v2677 = vmul.f32 %v2665, %v2675
    %v2678 = vmul.f32 %v2666, %v2676
    %2679 = vrot.lane.b32.xlu0 %v2136, 112
    %v2680 = vpop.permute.xlu0 %2679
    %2681 = vrot.lane.b32.xlu0 %v2142, 112
    %v2682 = vpop.permute.xlu0 %2681
    %v2686 = vsel %vm357, %v2677, 0
    %v2689 = vsel %vm357, %v2678, 0
    %2691 = vmatprep.subr.mxu0 0.0
    %2692 = vmatpush1.msra.mxu0 %v2680
    %2693 = vmatprep.subr.mxu0 0.0
    %2694 = vmatpush1.msra.mxu0 %v2682
    %2695 = vmatprep.subr.mxu0 0.0
    %2696 = vmatpush1.msra.mxu0 0.0
    %2697 = vmatprep.subr.mxu0 0.0
    %2698 = vmatpush1.msra.mxu0 0.0
    %2699 = vmatprep.subr.mxu0 0.0
    %2700 = vmatpush1.msra.mxu0 0.0
    %2701 = vmatprep.subr.mxu0 0.0
    %2702 = vmatpush1.msra.mxu0 0.0
    %2703 = vmatprep.subr.mxu0 0.0
    %2704 = vmatpush1.msra.mxu0 0.0
    %2705 = vmatprep.subr.mxu0 0.0
    %2706 = vmatpush1.msra.mxu0 0.0
    %2707 = vmatprep.subr.mxu0 0.0
    %2708 = vmatpush1.msra.mxu0 0.0
    %2709 = vmatprep.subr.mxu0 0.0
    %2710 = vmatpush1.msra.mxu0 0.0
    %2711 = vmatprep.subr.mxu0 0.0
    %2712 = vmatpush1.msra.mxu0 0.0
    %2713 = vmatprep.subr.mxu0 0.0
    %2714 = vmatpush1.msra.mxu0 0.0
    %2715 = vmatprep.subr.mxu0 0.0
    %2716 = vmatpush1.msra.mxu0 0.0
    %2717 = vmatprep.subr.mxu0 0.0
    %2718 = vmatpush1.msra.mxu0 0.0
    %2719 = vmatprep.subr.mxu0 0.0
    %2720 = vmatpush1.msra.mxu0 0.0
    %2721 = vmatprep.subr.mxu0 0.0
    %2722 = vmatpush1.msra.mxu0 0.0
    %2723 = vmatprep.subr.mxu0 0.0
    %2724 = vmatpush1.msra.mxu0 0.0
    %2725 = vmatprep.subr.mxu0 0.0
    %2726 = vmatpush1.msra.mxu0 0.0
    %2727 = vmatprep.subr.mxu0 0.0
    %2728 = vmatpush1.msra.mxu0 0.0
    %2729 = vmatprep.subr.mxu0 0.0
    %2730 = vmatpush1.msra.mxu0 0.0
    %2731 = vmatprep.subr.mxu0 0.0
    %2732 = vmatpush1.msra.mxu0 0.0
    %2733 = vmatprep.subr.mxu0 0.0
    %2734 = vmatpush1.msra.mxu0 0.0
    %2735 = vmatprep.subr.mxu0 0.0
    %2736 = vmatpush1.msra.mxu0 0.0
    %2737 = vmatprep.subr.mxu0 0.0
    %2738 = vmatpush1.msra.mxu0 0.0
    %2739 = vmatprep.subr.mxu0 0.0
    %2740 = vmatpush1.msra.mxu0 0.0
    %2741 = vmatprep.subr.mxu0 0.0
    %2742 = vmatpush1.msra.mxu0 0.0
    %2743 = vmatprep.subr.mxu0 0.0
    %2744 = vmatpush1.msra.mxu0 0.0
    %2745 = vmatprep.subr.mxu0 0.0
    %2746 = vmatpush1.msra.mxu0 0.0
    %2747 = vmatprep.subr.mxu0 0.0
    %2748 = vmatpush1.msra.mxu0 0.0
    %2749 = vmatprep.subr.mxu0 0.0
    %2750 = vmatpush1.msra.mxu0 0.0
    %2751 = vmatprep.subr.mxu0 0.0
    %2752 = vmatpush1.msra.mxu0 0.0
    %2753 = vmatprep.subr.mxu0 0.0
    %2754 = vmatpush1.msra.mxu0 0.0
    %2755 = vmatprep.mubr.f32.mxu0 0.0
    %2756 = vmatmul.mubr.f32.gmra.mrb[0].mxu0 %v2686
    %v2757 = vpop.f32.mrb[0].mxu0
    %v2758 = vadd.f32 0.0, %v2757
    %v2759 = vpop.f32.mrb[0].mxu0
    %2760 = vmatprep.mubr.f32.mxu0 0.0
    %2761 = vmatmul.mubr.f32.gmra.mrb[0].mxu0 %v2689
    %v2762 = vpop.f32.mrb[0].mxu0
    %v2763 = vadd.f32 0.0, %v2762
    %v2764 = vpop.f32.mrb[0].mxu0
    %2765 = vdwg.mxu0
    %v2766 = vmul.f32 %v2669, %v2675
    %v2767 = vmul.f32 %v2672, %v2676
    %v2768 = vadd.f32 %v2558, %v2766
    %v2769 = vadd.f32 %v2559, %v2767
    %2770 = vrot.lane.b32.xlu0 %v2134, 104
    %v2771 = vpop.permute.xlu0 %2770
    %2772 = vrot.lane.b32.xlu0 %v2140, 104
    %v2773 = vpop.permute.xlu0 %2772
    %2774 = vrot.lane.b32.xlu0 %v2134, 40
    %v2775 = vpop.permute.xlu0 %2774
    %2776 = vrot.lane.b32.xlu0 %v2140, 40
    %v2777 = vpop.permute.xlu0 %2776
    %v2778 = vsel %vm271, %v2771, 0
    %v2780 = vsel %vm271, %v2773, 0
    %v2782 = vsel %vm271, %v2775, 0
    %v2784 = vsel %vm271, %v2777, 0
    %2786 = vmatprep.subr.mxu0 0.0
    %2787 = vmatpush1.xpose.msra.mxu0 %v2782
    %2788 = vmatprep.subr.mxu0 0.0
    %2789 = vmatpush1.xpose.msra.mxu0 %v2784
    %2790 = vmatprep.subr.mxu0 0.0
    %2791 = vmatpush1.xpose.msra.mxu0 0.0
    %2792 = vmatprep.subr.mxu0 0.0
    %2793 = vmatpush1.xpose.msra.mxu0 0.0
    %2794 = vmatprep.subr.mxu0 0.0
    %2795 = vmatpush1.xpose.msra.mxu0 0.0
    %2796 = vmatprep.subr.mxu0 0.0
    %2797 = vmatpush1.xpose.msra.mxu0 0.0
    %2798 = vmatprep.subr.mxu0 0.0
    %2799 = vmatpush1.xpose.msra.mxu0 0.0
    %2800 = vmatprep.subr.mxu0 0.0
    %2801 = vmatpush1.xpose.msra.mxu0 0.0
    %2802 = vmatprep.subr.mxu0 0.0
    %2803 = vmatpush1.xpose.msra.mxu0 0.0
    %2804 = vmatprep.subr.mxu0 0.0
    %2805 = vmatpush1.xpose.msra.mxu0 0.0
    %2806 = vmatprep.subr.mxu0 0.0
    %2807 = vmatpush1.xpose.msra.mxu0 0.0
    %2808 = vmatprep.subr.mxu0 0.0
    %2809 = vmatpush1.xpose.msra.mxu0 0.0
    %2810 = vmatprep.subr.mxu0 0.0
    %2811 = vmatpush1.xpose.msra.mxu0 0.0
    %2812 = vmatprep.subr.mxu0 0.0
    %2813 = vmatpush1.xpose.msra.mxu0 0.0
    %2814 = vmatprep.subr.mxu0 0.0
    %2815 = vmatpush1.xpose.msra.mxu0 0.0
    %2816 = vmatprep.subr.mxu0 0.0
    %2817 = vmatpush1.xpose.msra.mxu0 0.0
    %2818 = vmatprep.subr.mxu0 0.0
    %2819 = vmatpush1.xpose.msra.mxu0 0.0
    %2820 = vmatprep.subr.mxu0 0.0
    %2821 = vmatpush1.xpose.msra.mxu0 0.0
    %2822 = vmatprep.subr.mxu0 0.0
    %2823 = vmatpush1.xpose.msra.mxu0 0.0
    %2824 = vmatprep.subr.mxu0 0.0
    %2825 = vmatpush1.xpose.msra.mxu0 0.0
    %2826 = vmatprep.subr.mxu0 0.0
    %2827 = vmatpush1.xpose.msra.mxu0 0.0
    %2828 = vmatprep.subr.mxu0 0.0
    %2829 = vmatpush1.xpose.msra.mxu0 0.0
    %2830 = vmatprep.subr.mxu0 0.0
    %2831 = vmatpush1.xpose.msra.mxu0 0.0
    %2832 = vmatprep.subr.mxu0 0.0
    %2833 = vmatpush1.xpose.msra.mxu0 0.0
    %2834 = vmatprep.subr.mxu0 0.0
    %2835 = vmatpush1.xpose.msra.mxu0 0.0
    %2836 = vmatprep.subr.mxu0 0.0
    %2837 = vmatpush1.xpose.msra.mxu0 0.0
    %2838 = vmatprep.subr.mxu0 0.0
    %2839 = vmatpush1.xpose.msra.mxu0 0.0
    %2840 = vmatprep.subr.mxu0 0.0
    %2841 = vmatpush1.xpose.msra.mxu0 0.0
    %2842 = vmatprep.subr.mxu0 0.0
    %2843 = vmatpush1.xpose.msra.mxu0 0.0
    %2844 = vmatprep.subr.mxu0 0.0
    %2845 = vmatpush1.xpose.msra.mxu0 0.0
    %2846 = vmatprep.subr.mxu0 0.0
    %2847 = vmatpush1.xpose.msra.mxu0 0.0
    %2848 = vmatprep.subr.mxu0 0.0
    %2849 = vmatpush1.xpose.msra.mxu0 0.0
    %2850 = vmatprep.mubr.f32.mxu0 0.0
    %2851 = vmatmul.mubr.f32.gmra.mrb[0].mxu0 %v2778
    %v2852 = vpop.f32.mrb[0].mxu0
    %v2853 = vadd.f32 0.0, %v2852
    %v2854 = vpop.f32.mrb[0].mxu0
    %2855 = vmatprep.mubr.f32.mxu0 0.0
    %2856 = vmatmul.mubr.f32.gmra.mrb[0].mxu0 %v2780
    %v2857 = vpop.f32.mrb[0].mxu0
    %v2858 = vadd.f32 0.0, %v2857
    %v2859 = vpop.f32.mrb[0].mxu0
    %2860 = vdwg.mxu0
    %v2861 = vsel %vm2144, %v2853, -1e+30
    %v2862 = vsel %vm2145, %v2858, -1e+30
    %v2863 = vsel %vm357, %v2861, -inf
    %2864 = vmax.xlane.f32.xlu0 %v2863
    %v2865 = vpop.xlane.xlu0 %2864
    %v2866 = vsel %vm357, %v2862, -inf
    %2867 = vmax.xlane.f32.xlu0 %v2866
    %v2868 = vpop.xlane.xlu0 %2867
    %v2869 = vsub.f32 %v2861, %v2865
    %v2870 = vsub.f32 %v2862, %v2868
    %v2871 = vmul.f32 %v2869, 1.442695
    %v2872 = vpow.pop %v2871
    %v2873 = vmul.f32 %v2870, 1.442695
    %v2874 = vpow.pop %v2873
    %v2875 = vmul.f32 %v2031, %v2872
    %v2876 = vmul.f32 %v2032, %v2874
    %v2877 = vsel %vm357, %v2875, 0.0
    %2878 = vadd.xlane.f32.xlu0 %v2877
    %v2879 = vpop.xlane.xlu0 %2878
    %v2880 = vsel %vm357, %v2876, 0.0
    %2881 = vadd.xlane.f32.xlu0 %v2880
    %v2882 = vpop.xlane.xlu0 %2881
    %v2883 = vmul.f32 %v2879, 8.0
    %v2884 = vmul.f32 %v2882, 8.0
    %v2885 = vrcp.pop %v2883
    %v2886 = vrcp.pop %v2884
    %v2887 = vmul.f32 %v2875, %v2885
    %v2888 = vmul.f32 %v2876, %v2886
    %2889 = vrot.lane.b32.xlu0 %v2136, 104
    %v2890 = vpop.permute.xlu0 %2889
    %2891 = vrot.lane.b32.xlu0 %v2142, 104
    %v2892 = vpop.permute.xlu0 %2891
    %v2896 = vsel %vm357, %v2887, 0
    %v2899 = vsel %vm357, %v2888, 0
    %2901 = vmatprep.subr.mxu0 0.0
    %2902 = vmatpush1.msra.mxu0 %v2890
    %2903 = vmatprep.subr.mxu0 0.0
    %2904 = vmatpush1.msra.mxu0 %v2892
    %2905 = vmatprep.subr.mxu0 0.0
    %2906 = vmatpush1.msra.mxu0 0.0
    %2907 = vmatprep.subr.mxu0 0.0
    %2908 = vmatpush1.msra.mxu0 0.0
    %2909 = vmatprep.subr.mxu0 0.0
    %2910 = vmatpush1.msra.mxu0 0.0
    %2911 = vmatprep.subr.mxu0 0.0
    %2912 = vmatpush1.msra.mxu0 0.0
    %2913 = vmatprep.subr.mxu0 0.0
    %2914 = vmatpush1.msra.mxu0 0.0
    %2915 = vmatprep.subr.mxu0 0.0
    %2916 = vmatpush1.msra.mxu0 0.0
    %2917 = vmatprep.subr.mxu0 0.0
    %2918 = vmatpush1.msra.mxu0 0.0
    %2919 = vmatprep.subr.mxu0 0.0
    %2920 = vmatpush1.msra.mxu0 0.0
    %2921 = vmatprep.subr.mxu0 0.0
    %2922 = vmatpush1.msra.mxu0 0.0
    %2923 = vmatprep.subr.mxu0 0.0
    %2924 = vmatpush1.msra.mxu0 0.0
    %2925 = vmatprep.subr.mxu0 0.0
    %2926 = vmatpush1.msra.mxu0 0.0
    %2927 = vmatprep.subr.mxu0 0.0
    %2928 = vmatpush1.msra.mxu0 0.0
    %2929 = vmatprep.subr.mxu0 0.0
    %2930 = vmatpush1.msra.mxu0 0.0
    %2931 = vmatprep.subr.mxu0 0.0
    %2932 = vmatpush1.msra.mxu0 0.0
    %2933 = vmatprep.subr.mxu0 0.0
    %2934 = vmatpush1.msra.mxu0 0.0
    %2935 = vmatprep.subr.mxu0 0.0
    %2936 = vmatpush1.msra.mxu0 0.0
    %2937 = vmatprep.subr.mxu0 0.0
    %2938 = vmatpush1.msra.mxu0 0.0
    %2939 = vmatprep.subr.mxu0 0.0
    %2940 = vmatpush1.msra.mxu0 0.0
    %2941 = vmatprep.subr.mxu0 0.0
    %2942 = vmatpush1.msra.mxu0 0.0
    %2943 = vmatprep.subr.mxu0 0.0
    %2944 = vmatpush1.msra.mxu0 0.0
    %2945 = vmatprep.subr.mxu0 0.0
    %2946 = vmatpush1.msra.mxu0 0.0
    %2947 = vmatprep.subr.mxu0 0.0
    %2948 = vmatpush1.msra.mxu0 0.0
    %2949 = vmatprep.subr.mxu0 0.0
    %2950 = vmatpush1.msra.mxu0 0.0
    %2951 = vmatprep.subr.mxu0 0.0
    %2952 = vmatpush1.msra.mxu0 0.0
    %2953 = vmatprep.subr.mxu0 0.0
    %2954 = vmatpush1.msra.mxu0 0.0
    %2955 = vmatprep.subr.mxu0 0.0
    %2956 = vmatpush1.msra.mxu0 0.0
    %2957 = vmatprep.subr.mxu0 0.0
    %2958 = vmatpush1.msra.mxu0 0.0
    %2959 = vmatprep.subr.mxu0 0.0
    %2960 = vmatpush1.msra.mxu0 0.0
    %2961 = vmatprep.subr.mxu0 0.0
    %2962 = vmatpush1.msra.mxu0 0.0
    %2963 = vmatprep.subr.mxu0 0.0
    %2964 = vmatpush1.msra.mxu0 0.0
    %2965 = vmatprep.mubr.f32.mxu0 0.0
    %2966 = vmatmul.mubr.f32.gmra.mrb[0].mxu0 %v2896
    %v2967 = vpop.f32.mrb[0].mxu0
    %v2968 = vadd.f32 0.0, %v2967
    %v2969 = vpop.f32.mrb[0].mxu0
    %2970 = vmatprep.mubr.f32.mxu0 0.0
    %2971 = vmatmul.mubr.f32.gmra.mrb[0].mxu0 %v2899
    %v2972 = vpop.f32.mrb[0].mxu0
    %v2973 = vadd.f32 0.0, %v2972
    %v2974 = vpop.f32.mrb[0].mxu0
    %2975 = vdwg.mxu0
    %v2976 = vmul.f32 %v2879, %v2885
    %v2977 = vmul.f32 %v2882, %v2886
    %v2978 = vadd.f32 %v2768, %v2976
    %v2979 = vadd.f32 %v2769, %v2977
    %2980 = vrot.lane.b32.xlu0 %v2134, 96
    %v2981 = vpop.permute.xlu0 %2980
    %2982 = vrot.lane.b32.xlu0 %v2140, 96
    %v2983 = vpop.permute.xlu0 %2982
    %2984 = vrot.lane.b32.xlu0 %v2134, 32
    %v2985 = vpop.permute.xlu0 %2984
    %2986 = vrot.lane.b32.xlu0 %v2140, 32
    %v2987 = vpop.permute.xlu0 %2986
    %v2988 = vsel %vm271, %v2981, 0
    %v2990 = vsel %vm271, %v2983, 0
    %v2992 = vsel %vm271, %v2985, 0
    %v2994 = vsel %vm271, %v2987, 0
    %2996 = vmatprep.subr.mxu0 0.0
    %2997 = vmatpush1.xpose.msra.mxu0 %v2992
    %2998 = vmatprep.subr.mxu0 0.0
    %2999 = vmatpush1.xpose.msra.mxu0 %v2994
    %3000 = vmatprep.subr.mxu0 0.0
    %3001 = vmatpush1.xpose.msra.mxu0 0.0
    %3002 = vmatprep.subr.mxu0 0.0
    %3003 = vmatpush1.xpose.msra.mxu0 0.0
    %3004 = vmatprep.subr.mxu0 0.0
    %3005 = vmatpush1.xpose.msra.mxu0 0.0
    %3006 = vmatprep.subr.mxu0 0.0
    %3007 = vmatpush1.xpose.msra.mxu0 0.0
    %3008 = vmatprep.subr.mxu0 0.0
    %3009 = vmatpush1.xpose.msra.mxu0 0.0
    %3010 = vmatprep.subr.mxu0 0.0
    %3011 = vmatpush1.xpose.msra.mxu0 0.0
    %3012 = vmatprep.subr.mxu0 0.0
    %3013 = vmatpush1.xpose.msra.mxu0 0.0
    %3014 = vmatprep.subr.mxu0 0.0
    %3015 = vmatpush1.xpose.msra.mxu0 0.0
    %3016 = vmatprep.subr.mxu0 0.0
    %3017 = vmatpush1.xpose.msra.mxu0 0.0
    %3018 = vmatprep.subr.mxu0 0.0
    %3019 = vmatpush1.xpose.msra.mxu0 0.0
    %3020 = vmatprep.subr.mxu0 0.0
    %3021 = vmatpush1.xpose.msra.mxu0 0.0
    %3022 = vmatprep.subr.mxu0 0.0
    %3023 = vmatpush1.xpose.msra.mxu0 0.0
    %3024 = vmatprep.subr.mxu0 0.0
    %3025 = vmatpush1.xpose.msra.mxu0 0.0
    %3026 = vmatprep.subr.mxu0 0.0
    %3027 = vmatpush1.xpose.msra.mxu0 0.0
    %3028 = vmatprep.subr.mxu0 0.0
    %3029 = vmatpush1.xpose.msra.mxu0 0.0
    %3030 = vmatprep.subr.mxu0 0.0
    %3031 = vmatpush1.xpose.msra.mxu0 0.0
    %3032 = vmatprep.subr.mxu0 0.0
    %3033 = vmatpush1.xpose.msra.mxu0 0.0
    %3034 = vmatprep.subr.mxu0 0.0
    %3035 = vmatpush1.xpose.msra.mxu0 0.0
    %3036 = vmatprep.subr.mxu0 0.0
    %3037 = vmatpush1.xpose.msra.mxu0 0.0
    %3038 = vmatprep.subr.mxu0 0.0
    %3039 = vmatpush1.xpose.msra.mxu0 0.0
    %3040 = vmatprep.subr.mxu0 0.0
    %3041 = vmatpush1.xpose.msra.mxu0 0.0
    %3042 = vmatprep.subr.mxu0 0.0
    %3043 = vmatpush1.xpose.msra.mxu0 0.0
    %3044 = vmatprep.subr.mxu0 0.0
    %3045 = vmatpush1.xpose.msra.mxu0 0.0
    %3046 = vmatprep.subr.mxu0 0.0
    %3047 = vmatpush1.xpose.msra.mxu0 0.0
    %3048 = vmatprep.subr.mxu0 0.0
    %3049 = vmatpush1.xpose.msra.mxu0 0.0
    %3050 = vmatprep.subr.mxu0 0.0
    %3051 = vmatpush1.xpose.msra.mxu0 0.0
    %3052 = vmatprep.subr.mxu0 0.0
    %3053 = vmatpush1.xpose.msra.mxu0 0.0
    %3054 = vmatprep.subr.mxu0 0.0
    %3055 = vmatpush1.xpose.msra.mxu0 0.0
    %3056 = vmatprep.subr.mxu0 0.0
    %3057 = vmatpush1.xpose.msra.mxu0 0.0
    %3058 = vmatprep.subr.mxu0 0.0
    %3059 = vmatpush1.xpose.msra.mxu0 0.0
    %3060 = vmatprep.mubr.f32.mxu0 0.0
    %3061 = vmatmul.mubr.f32.gmra.mrb[0].mxu0 %v2988
    %v3062 = vpop.f32.mrb[0].mxu0
    %v3063 = vadd.f32 0.0, %v3062
    %v3064 = vpop.f32.mrb[0].mxu0
    %3065 = vmatprep.mubr.f32.mxu0 0.0
    %3066 = vmatmul.mubr.f32.gmra.mrb[0].mxu0 %v2990
    %v3067 = vpop.f32.mrb[0].mxu0
    %v3068 = vadd.f32 0.0, %v3067
    %v3069 = vpop.f32.mrb[0].mxu0
    %3070 = vdwg.mxu0
    %v3071 = vsel %vm2144, %v3063, -1e+30
    %v3072 = vsel %vm2145, %v3068, -1e+30
    %v3073 = vsel %vm357, %v3071, -inf
    %3074 = vmax.xlane.f32.xlu0 %v3073
    %v3075 = vpop.xlane.xlu0 %3074
    %v3076 = vsel %vm357, %v3072, -inf
    %3077 = vmax.xlane.f32.xlu0 %v3076
    %v3078 = vpop.xlane.xlu0 %3077
    %v3079 = vsub.f32 %v3071, %v3075
    %v3080 = vsub.f32 %v3072, %v3078
    %v3081 = vmul.f32 %v3079, 1.442695
    %v3082 = vpow.pop %v3081
    %v3083 = vmul.f32 %v3080, 1.442695
    %v3084 = vpow.pop %v3083
    %v3085 = vmul.f32 %v2031, %v3082
    %v3086 = vmul.f32 %v2032, %v3084
    %v3087 = vsel %vm357, %v3085, 0.0
    %3088 = vadd.xlane.f32.xlu0 %v3087
    %v3089 = vpop.xlane.xlu0 %3088
    %v3090 = vsel %vm357, %v3086, 0.0
    %3091 = vadd.xlane.f32.xlu0 %v3090
    %v3092 = vpop.xlane.xlu0 %3091
    %v3093 = vmul.f32 %v3089, 8.0
    %v3094 = vmul.f32 %v3092, 8.0
    %v3095 = vrcp.pop %v3093
    %v3096 = vrcp.pop %v3094
    %v3097 = vmul.f32 %v3085, %v3095
    %v3098 = vmul.f32 %v3086, %v3096
    %3099 = vrot.lane.b32.xlu0 %v2136, 96
    %v3100 = vpop.permute.xlu0 %3099
    %3101 = vrot.lane.b32.xlu0 %v2142, 96
    %v3102 = vpop.permute.xlu0 %3101
    %v3106 = vsel %vm357, %v3097, 0
    %v3109 = vsel %vm357, %v3098, 0
    %3111 = vmatprep.subr.mxu0 0.0
    %3112 = vmatpush1.msra.mxu0 %v3100
    %3113 = vmatprep.subr.mxu0 0.0
    %3114 = vmatpush1.msra.mxu0 %v3102
    %3115 = vmatprep.subr.mxu0 0.0
    %3116 = vmatpush1.msra.mxu0 0.0
    %3117 = vmatprep.subr.mxu0 0.0
    %3118 = vmatpush1.msra.mxu0 0.0
    %3119 = vmatprep.subr.mxu0 0.0
    %3120 = vmatpush1.msra.mxu0 0.0
    %3121 = vmatprep.subr.mxu0 0.0
    %3122 = vmatpush1.msra.mxu0 0.0
    %3123 = vmatprep.subr.mxu0 0.0
    %3124 = vmatpush1.msra.mxu0 0.0
    %3125 = vmatprep.subr.mxu0 0.0
    %3126 = vmatpush1.msra.mxu0 0.0
    %3127 = vmatprep.subr.mxu0 0.0
    %3128 = vmatpush1.msra.mxu0 0.0
    %3129 = vmatprep.subr.mxu0 0.0
    %3130 = vmatpush1.msra.mxu0 0.0
    %3131 = vmatprep.subr.mxu0 0.0
    %3132 = vmatpush1.msra.mxu0 0.0
    %3133 = vmatprep.subr.mxu0 0.0
    %3134 = vmatpush1.msra.mxu0 0.0
    %3135 = vmatprep.subr.mxu0 0.0
    %3136 = vmatpush1.msra.mxu0 0.0
    %3137 = vmatprep.subr.mxu0 0.0
    %3138 = vmatpush1.msra.mxu0 0.0
    %3139 = vmatprep.subr.mxu0 0.0
    %3140 = vmatpush1.msra.mxu0 0.0
    %3141 = vmatprep.subr.mxu0 0.0
    %3142 = vmatpush1.msra.mxu0 0.0
    %3143 = vmatprep.subr.mxu0 0.0
    %3144 = vmatpush1.msra.mxu0 0.0
    %3145 = vmatprep.subr.mxu0 0.0
    %3146 = vmatpush1.msra.mxu0 0.0
    %3147 = vmatprep.subr.mxu0 0.0
    %3148 = vmatpush1.msra.mxu0 0.0
    %3149 = vmatprep.subr.mxu0 0.0
    %3150 = vmatpush1.msra.mxu0 0.0
    %3151 = vmatprep.subr.mxu0 0.0
    %3152 = vmatpush1.msra.mxu0 0.0
    %3153 = vmatprep.subr.mxu0 0.0
    %3154 = vmatpush1.msra.mxu0 0.0
    %3155 = vmatprep.subr.mxu0 0.0
    %3156 = vmatpush1.msra.mxu0 0.0
    %3157 = vmatprep.subr.mxu0 0.0
    %3158 = vmatpush1.msra.mxu0 0.0
    %3159 = vmatprep.subr.mxu0 0.0
    %3160 = vmatpush1.msra.mxu0 0.0
    %3161 = vmatprep.subr.mxu0 0.0
    %3162 = vmatpush1.msra.mxu0 0.0
    %3163 = vmatprep.subr.mxu0 0.0
    %3164 = vmatpush1.msra.mxu0 0.0
    %3165 = vmatprep.subr.mxu0 0.0
    %3166 = vmatpush1.msra.mxu0 0.0
    %3167 = vmatprep.subr.mxu0 0.0
    %3168 = vmatpush1.msra.mxu0 0.0
    %3169 = vmatprep.subr.mxu0 0.0
    %3170 = vmatpush1.msra.mxu0 0.0
    %3171 = vmatprep.subr.mxu0 0.0
    %3172 = vmatpush1.msra.mxu0 0.0
    %3173 = vmatprep.subr.mxu0 0.0
    %3174 = vmatpush1.msra.mxu0 0.0
    %3175 = vmatprep.mubr.f32.mxu0 0.0
    %3176 = vmatmul.mubr.f32.gmra.mrb[0].mxu0 %v3106
    %v3177 = vpop.f32.mrb[0].mxu0
    %v3178 = vadd.f32 0.0, %v3177
    %v3179 = vpop.f32.mrb[0].mxu0
    %3180 = vmatprep.mubr.f32.mxu0 0.0
    %3181 = vmatmul.mubr.f32.gmra.mrb[0].mxu0 %v3109
    %v3182 = vpop.f32.mrb[0].mxu0
    %v3183 = vadd.f32 0.0, %v3182
    %v3184 = vpop.f32.mrb[0].mxu0
    %3185 = vdwg.mxu0
    %v3186 = vmul.f32 %v3089, %v3095
    %v3187 = vmul.f32 %v3092, %v3096
    %v3188 = vadd.f32 %v2978, %v3186
    %v3189 = vadd.f32 %v2979, %v3187
    %3190 = vrot.lane.b32.xlu0 %v2134, 88
    %v3191 = vpop.permute.xlu0 %3190
    %3192 = vrot.lane.b32.xlu0 %v2140, 88
    %v3193 = vpop.permute.xlu0 %3192
    %3194 = vrot.lane.b32.xlu0 %v2134, 24
    %v3195 = vpop.permute.xlu0 %3194
    %3196 = vrot.lane.b32.xlu0 %v2140, 24
    %v3197 = vpop.permute.xlu0 %3196
    %v3198 = vsel %vm271, %v3191, 0
    %v3200 = vsel %vm271, %v3193, 0
    %v3202 = vsel %vm271, %v3195, 0
    %v3204 = vsel %vm271, %v3197, 0
    %3206 = vmatprep.subr.mxu0 0.0
    %3207 = vmatpush1.xpose.msra.mxu0 %v3202
    %3208 = vmatprep.subr.mxu0 0.0
    %3209 = vmatpush1.xpose.msra.mxu0 %v3204
    %3210 = vmatprep.subr.mxu0 0.0
    %3211 = vmatpush1.xpose.msra.mxu0 0.0
    %3212 = vmatprep.subr.mxu0 0.0
    %3213 = vmatpush1.xpose.msra.mxu0 0.0
    %3214 = vmatprep.subr.mxu0 0.0
    %3215 = vmatpush1.xpose.msra.mxu0 0.0
    %3216 = vmatprep.subr.mxu0 0.0
    %3217 = vmatpush1.xpose.msra.mxu0 0.0
    %3218 = vmatprep.subr.mxu0 0.0
    %3219 = vmatpush1.xpose.msra.mxu0 0.0
    %3220 = vmatprep.subr.mxu0 0.0
    %3221 = vmatpush1.xpose.msra.mxu0 0.0
    %3222 = vmatprep.subr.mxu0 0.0
    %3223 = vmatpush1.xpose.msra.mxu0 0.0
    %3224 = vmatprep.subr.mxu0 0.0
    %3225 = vmatpush1.xpose.msra.mxu0 0.0
    %3226 = vmatprep.subr.mxu0 0.0
    %3227 = vmatpush1.xpose.msra.mxu0 0.0
    %3228 = vmatprep.subr.mxu0 0.0
    %3229 = vmatpush1.xpose.msra.mxu0 0.0
    %3230 = vmatprep.subr.mxu0 0.0
    %3231 = vmatpush1.xpose.msra.mxu0 0.0
    %3232 = vmatprep.subr.mxu0 0.0
    %3233 = vmatpush1.xpose.msra.mxu0 0.0
    %3234 = vmatprep.subr.mxu0 0.0
    %3235 = vmatpush1.xpose.msra.mxu0 0.0
    %3236 = vmatprep.subr.mxu0 0.0
    %3237 = vmatpush1.xpose.msra.mxu0 0.0
    %3238 = vmatprep.subr.mxu0 0.0
    %3239 = vmatpush1.xpose.msra.mxu0 0.0
    %3240 = vmatprep.subr.mxu0 0.0
    %3241 = vmatpush1.xpose.msra.mxu0 0.0
    %3242 = vmatprep.subr.mxu0 0.0
    %3243 = vmatpush1.xpose.msra.mxu0 0.0
    %3244 = vmatprep.subr.mxu0 0.0
    %3245 = vmatpush1.xpose.msra.mxu0 0.0
    %3246 = vmatprep.subr.mxu0 0.0
    %3247 = vmatpush1.xpose.msra.mxu0 0.0
    %3248 = vmatprep.subr.mxu0 0.0
    %3249 = vmatpush1.xpose.msra.mxu0 0.0
    %3250 = vmatprep.subr.mxu0 0.0
    %3251 = vmatpush1.xpose.msra.mxu0 0.0
    %3252 = vmatprep.subr.mxu0 0.0
    %3253 = vmatpush1.xpose.msra.mxu0 0.0
    %3254 = vmatprep.subr.mxu0 0.0
    %3255 = vmatpush1.xpose.msra.mxu0 0.0
    %3256 = vmatprep.subr.mxu0 0.0
    %3257 = vmatpush1.xpose.msra.mxu0 0.0
    %3258 = vmatprep.subr.mxu0 0.0
    %3259 = vmatpush1.xpose.msra.mxu0 0.0
    %3260 = vmatprep.subr.mxu0 0.0
    %3261 = vmatpush1.xpose.msra.mxu0 0.0
    %3262 = vmatprep.subr.mxu0 0.0
    %3263 = vmatpush1.xpose.msra.mxu0 0.0
    %3264 = vmatprep.subr.mxu0 0.0
    %3265 = vmatpush1.xpose.msra.mxu0 0.0
    %3266 = vmatprep.subr.mxu0 0.0
    %3267 = vmatpush1.xpose.msra.mxu0 0.0
    %3268 = vmatprep.subr.mxu0 0.0
    %3269 = vmatpush1.xpose.msra.mxu0 0.0
    %3270 = vmatprep.mubr.f32.mxu0 0.0
    %3271 = vmatmul.mubr.f32.gmra.mrb[0].mxu0 %v3198
    %v3272 = vpop.f32.mrb[0].mxu0
    %v3273 = vadd.f32 0.0, %v3272
    %v3274 = vpop.f32.mrb[0].mxu0
    %3275 = vmatprep.mubr.f32.mxu0 0.0
    %3276 = vmatmul.mubr.f32.gmra.mrb[0].mxu0 %v3200
    %v3277 = vpop.f32.mrb[0].mxu0
    %v3278 = vadd.f32 0.0, %v3277
    %v3279 = vpop.f32.mrb[0].mxu0
    %3280 = vdwg.mxu0
    %v3281 = vsel %vm2144, %v3273, -1e+30
    %v3282 = vsel %vm2145, %v3278, -1e+30
    %v3283 = vsel %vm357, %v3281, -inf
    %3284 = vmax.xlane.f32.xlu0 %v3283
    %v3285 = vpop.xlane.xlu0 %3284
    %v3286 = vsel %vm357, %v3282, -inf
    %3287 = vmax.xlane.f32.xlu0 %v3286
    %v3288 = vpop.xlane.xlu0 %3287
    %v3289 = vsub.f32 %v3281, %v3285
    %v3290 = vsub.f32 %v3282, %v3288
    %v3291 = vmul.f32 %v3289, 1.442695
    %v3292 = vpow.pop %v3291
    %v3293 = vmul.f32 %v3290, 1.442695
    %v3294 = vpow.pop %v3293
    %v3295 = vmul.f32 %v2031, %v3292
    %v3296 = vmul.f32 %v2032, %v3294
    %v3297 = vsel %vm357, %v3295, 0.0
    %3298 = vadd.xlane.f32.xlu0 %v3297
    %v3299 = vpop.xlane.xlu0 %3298
    %v3300 = vsel %vm357, %v3296, 0.0
    %3301 = vadd.xlane.f32.xlu0 %v3300
    %v3302 = vpop.xlane.xlu0 %3301
    %v3303 = vmul.f32 %v3299, 8.0
    %v3304 = vmul.f32 %v3302, 8.0
    %v3305 = vrcp.pop %v3303
    %v3306 = vrcp.pop %v3304
    %v3307 = vmul.f32 %v3295, %v3305
    %v3308 = vmul.f32 %v3296, %v3306
    %3309 = vrot.lane.b32.xlu0 %v2136, 88
    %v3310 = vpop.permute.xlu0 %3309
    %3311 = vrot.lane.b32.xlu0 %v2142, 88
    %v3312 = vpop.permute.xlu0 %3311
    %v3316 = vsel %vm357, %v3307, 0
    %v3319 = vsel %vm357, %v3308, 0
    %3321 = vmatprep.subr.mxu0 0.0
    %3322 = vmatpush1.msra.mxu0 %v3310
    %3323 = vmatprep.subr.mxu0 0.0
    %3324 = vmatpush1.msra.mxu0 %v3312
    %3325 = vmatprep.subr.mxu0 0.0
    %3326 = vmatpush1.msra.mxu0 0.0
    %3327 = vmatprep.subr.mxu0 0.0
    %3328 = vmatpush1.msra.mxu0 0.0
    %3329 = vmatprep.subr.mxu0 0.0
    %3330 = vmatpush1.msra.mxu0 0.0
    %3331 = vmatprep.subr.mxu0 0.0
    %3332 = vmatpush1.msra.mxu0 0.0
    %3333 = vmatprep.subr.mxu0 0.0
    %3334 = vmatpush1.msra.mxu0 0.0
    %3335 = vmatprep.subr.mxu0 0.0
    %3336 = vmatpush1.msra.mxu0 0.0
    %3337 = vmatprep.subr.mxu0 0.0
    %3338 = vmatpush1.msra.mxu0 0.0
    %3339 = vmatprep.subr.mxu0 0.0
    %3340 = vmatpush1.msra.mxu0 0.0
    %3341 = vmatprep.subr.mxu0 0.0
    %3342 = vmatpush1.msra.mxu0 0.0
    %3343 = vmatprep.subr.mxu0 0.0
    %3344 = vmatpush1.msra.mxu0 0.0
    %3345 = vmatprep.subr.mxu0 0.0
    %3346 = vmatpush1.msra.mxu0 0.0
    %3347 = vmatprep.subr.mxu0 0.0
    %3348 = vmatpush1.msra.mxu0 0.0
    %3349 = vmatprep.subr.mxu0 0.0
    %3350 = vmatpush1.msra.mxu0 0.0
    %3351 = vmatprep.subr.mxu0 0.0
    %3352 = vmatpush1.msra.mxu0 0.0
    %3353 = vmatprep.subr.mxu0 0.0
    %3354 = vmatpush1.msra.mxu0 0.0
    %3355 = vmatprep.subr.mxu0 0.0
    %3356 = vmatpush1.msra.mxu0 0.0
    %3357 = vmatprep.subr.mxu0 0.0
    %3358 = vmatpush1.msra.mxu0 0.0
    %3359 = vmatprep.subr.mxu0 0.0
    %3360 = vmatpush1.msra.mxu0 0.0
    %3361 = vmatprep.subr.mxu0 0.0
    %3362 = vmatpush1.msra.mxu0 0.0
    %3363 = vmatprep.subr.mxu0 0.0
    %3364 = vmatpush1.msra.mxu0 0.0
    %3365 = vmatprep.subr.mxu0 0.0
    %3366 = vmatpush1.msra.mxu0 0.0
    %3367 = vmatprep.subr.mxu0 0.0
    %3368 = vmatpush1.msra.mxu0 0.0
    %3369 = vmatprep.subr.mxu0 0.0
    %3370 = vmatpush1.msra.mxu0 0.0
    %3371 = vmatprep.subr.mxu0 0.0
    %3372 = vmatpush1.msra.mxu0 0.0
    %3373 = vmatprep.subr.mxu0 0.0
    %3374 = vmatpush1.msra.mxu0 0.0
    %3375 = vmatprep.subr.mxu0 0.0
    %3376 = vmatpush1.msra.mxu0 0.0
    %3377 = vmatprep.subr.mxu0 0.0
    %3378 = vmatpush1.msra.mxu0 0.0
    %3379 = vmatprep.subr.mxu0 0.0
    %3380 = vmatpush1.msra.mxu0 0.0
    %3381 = vmatprep.subr.mxu0 0.0
    %3382 = vmatpush1.msra.mxu0 0.0
    %3383 = vmatprep.subr.mxu0 0.0
    %3384 = vmatpush1.msra.mxu0 0.0
    %3385 = vmatprep.mubr.f32.mxu0 0.0
    %3386 = vmatmul.mubr.f32.gmra.mrb[0].mxu0 %v3316
    %v3387 = vpop.f32.mrb[0].mxu0
    %v3388 = vadd.f32 0.0, %v3387
    %v3389 = vpop.f32.mrb[0].mxu0
    %3390 = vmatprep.mubr.f32.mxu0 0.0
    %3391 = vmatmul.mubr.f32.gmra.mrb[0].mxu0 %v3319
    %v3392 = vpop.f32.mrb[0].mxu0
    %v3393 = vadd.f32 0.0, %v3392
    %v3394 = vpop.f32.mrb[0].mxu0
    %3395 = vdwg.mxu0
    %v3396 = vmul.f32 %v3299, %v3305
    %v3397 = vmul.f32 %v3302, %v3306
    %v3398 = vadd.f32 %v3188, %v3396
    %v3399 = vadd.f32 %v3189, %v3397
    %3400 = vrot.lane.b32.xlu0 %v2134, 80
    %v3401 = vpop.permute.xlu0 %3400
    %3402 = vrot.lane.b32.xlu0 %v2140, 80
    %v3403 = vpop.permute.xlu0 %3402
    %3404 = vrot.lane.b32.xlu0 %v2134, 16
    %v3405 = vpop.permute.xlu0 %3404
    %3406 = vrot.lane.b32.xlu0 %v2140, 16
    %v3407 = vpop.permute.xlu0 %3406
    %v3408 = vsel %vm271, %v3401, 0
    %v3410 = vsel %vm271, %v3403, 0
    %v3412 = vsel %vm271, %v3405, 0
    %v3414 = vsel %vm271, %v3407, 0
    %3416 = vmatprep.subr.mxu0 0.0
    %3417 = vmatpush1.xpose.msra.mxu0 %v3412
    %3418 = vmatprep.subr.mxu0 0.0
    %3419 = vmatpush1.xpose.msra.mxu0 %v3414
    %3420 = vmatprep.subr.mxu0 0.0
    %3421 = vmatpush1.xpose.msra.mxu0 0.0
    %3422 = vmatprep.subr.mxu0 0.0
    %3423 = vmatpush1.xpose.msra.mxu0 0.0
    %3424 = vmatprep.subr.mxu0 0.0
    %3425 = vmatpush1.xpose.msra.mxu0 0.0
    %3426 = vmatprep.subr.mxu0 0.0
    %3427 = vmatpush1.xpose.msra.mxu0 0.0
    %3428 = vmatprep.subr.mxu0 0.0
    %3429 = vmatpush1.xpose.msra.mxu0 0.0
    %3430 = vmatprep.subr.mxu0 0.0
    %3431 = vmatpush1.xpose.msra.mxu0 0.0
    %3432 = vmatprep.subr.mxu0 0.0
    %3433 = vmatpush1.xpose.msra.mxu0 0.0
    %3434 = vmatprep.subr.mxu0 0.0
    %3435 = vmatpush1.xpose.msra.mxu0 0.0
    %3436 = vmatprep.subr.mxu0 0.0
    %3437 = vmatpush1.xpose.msra.mxu0 0.0
    %3438 = vmatprep.subr.mxu0 0.0
    %3439 = vmatpush1.xpose.msra.mxu0 0.0
    %3440 = vmatprep.subr.mxu0 0.0
    %3441 = vmatpush1.xpose.msra.mxu0 0.0
    %3442 = vmatprep.subr.mxu0 0.0
    %3443 = vmatpush1.xpose.msra.mxu0 0.0
    %3444 = vmatprep.subr.mxu0 0.0
    %3445 = vmatpush1.xpose.msra.mxu0 0.0
    %3446 = vmatprep.subr.mxu0 0.0
    %3447 = vmatpush1.xpose.msra.mxu0 0.0
    %3448 = vmatprep.subr.mxu0 0.0
    %3449 = vmatpush1.xpose.msra.mxu0 0.0
    %3450 = vmatprep.subr.mxu0 0.0
    %3451 = vmatpush1.xpose.msra.mxu0 0.0
    %3452 = vmatprep.subr.mxu0 0.0
    %3453 = vmatpush1.xpose.msra.mxu0 0.0
    %3454 = vmatprep.subr.mxu0 0.0
    %3455 = vmatpush1.xpose.msra.mxu0 0.0
    %3456 = vmatprep.subr.mxu0 0.0
    %3457 = vmatpush1.xpose.msra.mxu0 0.0
    %3458 = vmatprep.subr.mxu0 0.0
    %3459 = vmatpush1.xpose.msra.mxu0 0.0
    %3460 = vmatprep.subr.mxu0 0.0
    %3461 = vmatpush1.xpose.msra.mxu0 0.0
    %3462 = vmatprep.subr.mxu0 0.0
    %3463 = vmatpush1.xpose.msra.mxu0 0.0
    %3464 = vmatprep.subr.mxu0 0.0
    %3465 = vmatpush1.xpose.msra.mxu0 0.0
    %3466 = vmatprep.subr.mxu0 0.0
    %3467 = vmatpush1.xpose.msra.mxu0 0.0
    %3468 = vmatprep.subr.mxu0 0.0
    %3469 = vmatpush1.xpose.msra.mxu0 0.0
    %3470 = vmatprep.subr.mxu0 0.0
    %3471 = vmatpush1.xpose.msra.mxu0 0.0
    %3472 = vmatprep.subr.mxu0 0.0
    %3473 = vmatpush1.xpose.msra.mxu0 0.0
    %3474 = vmatprep.subr.mxu0 0.0
    %3475 = vmatpush1.xpose.msra.mxu0 0.0
    %3476 = vmatprep.subr.mxu0 0.0
    %3477 = vmatpush1.xpose.msra.mxu0 0.0
    %3478 = vmatprep.subr.mxu0 0.0
    %3479 = vmatpush1.xpose.msra.mxu0 0.0
    %3480 = vmatprep.mubr.f32.mxu0 0.0
    %3481 = vmatmul.mubr.f32.gmra.mrb[0].mxu0 %v3408
    %v3482 = vpop.f32.mrb[0].mxu0
    %v3483 = vadd.f32 0.0, %v3482
    %v3484 = vpop.f32.mrb[0].mxu0
    %3485 = vmatprep.mubr.f32.mxu0 0.0
    %3486 = vmatmul.mubr.f32.gmra.mrb[0].mxu0 %v3410
    %v3487 = vpop.f32.mrb[0].mxu0
    %v3488 = vadd.f32 0.0, %v3487
    %v3489 = vpop.f32.mrb[0].mxu0
    %3490 = vdwg.mxu0
    %v3491 = vsel %vm2144, %v3483, -1e+30
    %v3492 = vsel %vm2145, %v3488, -1e+30
    %v3493 = vsel %vm357, %v3491, -inf
    %3494 = vmax.xlane.f32.xlu0 %v3493
    %v3495 = vpop.xlane.xlu0 %3494
    %v3496 = vsel %vm357, %v3492, -inf
    %3497 = vmax.xlane.f32.xlu0 %v3496
    %v3498 = vpop.xlane.xlu0 %3497
    %v3499 = vsub.f32 %v3491, %v3495
    %v3500 = vsub.f32 %v3492, %v3498
    %v3501 = vmul.f32 %v3499, 1.442695
    %v3502 = vpow.pop %v3501
    %v3503 = vmul.f32 %v3500, 1.442695
    %v3504 = vpow.pop %v3503
    %v3505 = vmul.f32 %v2031, %v3502
    %v3506 = vmul.f32 %v2032, %v3504
    %v3507 = vsel %vm357, %v3505, 0.0
    %3508 = vadd.xlane.f32.xlu0 %v3507
    %v3509 = vpop.xlane.xlu0 %3508
    %v3510 = vsel %vm357, %v3506, 0.0
    %3511 = vadd.xlane.f32.xlu0 %v3510
    %v3512 = vpop.xlane.xlu0 %3511
    %v3513 = vmul.f32 %v3509, 8.0
    %v3514 = vmul.f32 %v3512, 8.0
    %v3515 = vrcp.pop %v3513
    %v3516 = vrcp.pop %v3514
    %v3517 = vmul.f32 %v3505, %v3515
    %v3518 = vmul.f32 %v3506, %v3516
    %3519 = vrot.lane.b32.xlu0 %v2136, 80
    %v3520 = vpop.permute.xlu0 %3519
    %3521 = vrot.lane.b32.xlu0 %v2142, 80
    %v3522 = vpop.permute.xlu0 %3521
    %v3526 = vsel %vm357, %v3517, 0
    %v3529 = vsel %vm357, %v3518, 0
    %3531 = vmatprep.subr.mxu0 0.0
    %3532 = vmatpush1.msra.mxu0 %v3520
    %3533 = vmatprep.subr.mxu0 0.0
    %3534 = vmatpush1.msra.mxu0 %v3522
    %3535 = vmatprep.subr.mxu0 0.0
    %3536 = vmatpush1.msra.mxu0 0.0
    %3537 = vmatprep.subr.mxu0 0.0
    %3538 = vmatpush1.msra.mxu0 0.0
    %3539 = vmatprep.subr.mxu0 0.0
    %3540 = vmatpush1.msra.mxu0 0.0
    %3541 = vmatprep.subr.mxu0 0.0
    %3542 = vmatpush1.msra.mxu0 0.0
    %3543 = vmatprep.subr.mxu0 0.0
    %3544 = vmatpush1.msra.mxu0 0.0
    %3545 = vmatprep.subr.mxu0 0.0
    %3546 = vmatpush1.msra.mxu0 0.0
    %3547 = vmatprep.subr.mxu0 0.0
    %3548 = vmatpush1.msra.mxu0 0.0
    %3549 = vmatprep.subr.mxu0 0.0
    %3550 = vmatpush1.msra.mxu0 0.0
    %3551 = vmatprep.subr.mxu0 0.0
    %3552 = vmatpush1.msra.mxu0 0.0
    %3553 = vmatprep.subr.mxu0 0.0
    %3554 = vmatpush1.msra.mxu0 0.0
    %3555 = vmatprep.subr.mxu0 0.0
    %3556 = vmatpush1.msra.mxu0 0.0
    %3557 = vmatprep.subr.mxu0 0.0
    %3558 = vmatpush1.msra.mxu0 0.0
    %3559 = vmatprep.subr.mxu0 0.0
    %3560 = vmatpush1.msra.mxu0 0.0
    %3561 = vmatprep.subr.mxu0 0.0
    %3562 = vmatpush1.msra.mxu0 0.0
    %3563 = vmatprep.subr.mxu0 0.0
    %3564 = vmatpush1.msra.mxu0 0.0
    %3565 = vmatprep.subr.mxu0 0.0
    %3566 = vmatpush1.msra.mxu0 0.0
    %3567 = vmatprep.subr.mxu0 0.0
    %3568 = vmatpush1.msra.mxu0 0.0
    %3569 = vmatprep.subr.mxu0 0.0
    %3570 = vmatpush1.msra.mxu0 0.0
    %3571 = vmatprep.subr.mxu0 0.0
    %3572 = vmatpush1.msra.mxu0 0.0
    %3573 = vmatprep.subr.mxu0 0.0
    %3574 = vmatpush1.msra.mxu0 0.0
    %3575 = vmatprep.subr.mxu0 0.0
    %3576 = vmatpush1.msra.mxu0 0.0
    %3577 = vmatprep.subr.mxu0 0.0
    %3578 = vmatpush1.msra.mxu0 0.0
    %3579 = vmatprep.subr.mxu0 0.0
    %3580 = vmatpush1.msra.mxu0 0.0
    %3581 = vmatprep.subr.mxu0 0.0
    %3582 = vmatpush1.msra.mxu0 0.0
    %3583 = vmatprep.subr.mxu0 0.0
    %3584 = vmatpush1.msra.mxu0 0.0
    %3585 = vmatprep.subr.mxu0 0.0
    %3586 = vmatpush1.msra.mxu0 0.0
    %3587 = vmatprep.subr.mxu0 0.0
    %3588 = vmatpush1.msra.mxu0 0.0
    %3589 = vmatprep.subr.mxu0 0.0
    %3590 = vmatpush1.msra.mxu0 0.0
    %3591 = vmatprep.subr.mxu0 0.0
    %3592 = vmatpush1.msra.mxu0 0.0
    %3593 = vmatprep.subr.mxu0 0.0
    %3594 = vmatpush1.msra.mxu0 0.0
    %3595 = vmatprep.mubr.f32.mxu0 0.0
    %3596 = vmatmul.mubr.f32.gmra.mrb[0].mxu0 %v3526
    %v3597 = vpop.f32.mrb[0].mxu0
    %v3598 = vadd.f32 0.0, %v3597
    %v3599 = vpop.f32.mrb[0].mxu0
    %3600 = vmatprep.mubr.f32.mxu0 0.0
    %3601 = vmatmul.mubr.f32.gmra.mrb[0].mxu0 %v3529
    %v3602 = vpop.f32.mrb[0].mxu0
    %v3603 = vadd.f32 0.0, %v3602
    %v3604 = vpop.f32.mrb[0].mxu0
    %3605 = vdwg.mxu0
    %v3606 = vmul.f32 %v3509, %v3515
    %v3607 = vmul.f32 %v3512, %v3516
    %v3608 = vadd.f32 %v3398, %v3606
    %v3609 = vadd.f32 %v3399, %v3607
    %3610 = vrot.lane.b32.xlu0 %v2134, 72
    %v3611 = vpop.permute.xlu0 %3610
    %3612 = vrot.lane.b32.xlu0 %v2140, 72
    %v3613 = vpop.permute.xlu0 %3612
    %3614 = vrot.lane.b32.xlu0 %v2134, 8
    %v3615 = vpop.permute.xlu0 %3614
    %3616 = vrot.lane.b32.xlu0 %v2140, 8
    %v3617 = vpop.permute.xlu0 %3616
    %v3618 = vsel %vm271, %v3611, 0
    %v3620 = vsel %vm271, %v3613, 0
    %v3622 = vsel %vm271, %v3615, 0
    %v3624 = vsel %vm271, %v3617, 0
    %3626 = vmatprep.subr.mxu0 0.0
    %3627 = vmatpush1.xpose.msra.mxu0 %v3622
    %3628 = vmatprep.subr.mxu0 0.0
    %3629 = vmatpush1.xpose.msra.mxu0 %v3624
    %3630 = vmatprep.subr.mxu0 0.0
    %3631 = vmatpush1.xpose.msra.mxu0 0.0
    %3632 = vmatprep.subr.mxu0 0.0
    %3633 = vmatpush1.xpose.msra.mxu0 0.0
    %3634 = vmatprep.subr.mxu0 0.0
    %3635 = vmatpush1.xpose.msra.mxu0 0.0
    %3636 = vmatprep.subr.mxu0 0.0
    %3637 = vmatpush1.xpose.msra.mxu0 0.0
    %3638 = vmatprep.subr.mxu0 0.0
    %3639 = vmatpush1.xpose.msra.mxu0 0.0
    %3640 = vmatprep.subr.mxu0 0.0
    %3641 = vmatpush1.xpose.msra.mxu0 0.0
    %3642 = vmatprep.subr.mxu0 0.0
    %3643 = vmatpush1.xpose.msra.mxu0 0.0
    %3644 = vmatprep.subr.mxu0 0.0
    %3645 = vmatpush1.xpose.msra.mxu0 0.0
    %3646 = vmatprep.subr.mxu0 0.0
    %3647 = vmatpush1.xpose.msra.mxu0 0.0
    %3648 = vmatprep.subr.mxu0 0.0
    %3649 = vmatpush1.xpose.msra.mxu0 0.0
    %3650 = vmatprep.subr.mxu0 0.0
    %3651 = vmatpush1.xpose.msra.mxu0 0.0
    %3652 = vmatprep.subr.mxu0 0.0
    %3653 = vmatpush1.xpose.msra.mxu0 0.0
    %3654 = vmatprep.subr.mxu0 0.0
    %3655 = vmatpush1.xpose.msra.mxu0 0.0
    %3656 = vmatprep.subr.mxu0 0.0
    %3657 = vmatpush1.xpose.msra.mxu0 0.0
    %3658 = vmatprep.subr.mxu0 0.0
    %3659 = vmatpush1.xpose.msra.mxu0 0.0
    %3660 = vmatprep.subr.mxu0 0.0
    %3661 = vmatpush1.xpose.msra.mxu0 0.0
    %3662 = vmatprep.subr.mxu0 0.0
    %3663 = vmatpush1.xpose.msra.mxu0 0.0
    %3664 = vmatprep.subr.mxu0 0.0
    %3665 = vmatpush1.xpose.msra.mxu0 0.0
    %3666 = vmatprep.subr.mxu0 0.0
    %3667 = vmatpush1.xpose.msra.mxu0 0.0
    %3668 = vmatprep.subr.mxu0 0.0
    %3669 = vmatpush1.xpose.msra.mxu0 0.0
    %3670 = vmatprep.subr.mxu0 0.0
    %3671 = vmatpush1.xpose.msra.mxu0 0.0
    %3672 = vmatprep.subr.mxu0 0.0
    %3673 = vmatpush1.xpose.msra.mxu0 0.0
    %3674 = vmatprep.subr.mxu0 0.0
    %3675 = vmatpush1.xpose.msra.mxu0 0.0
    %3676 = vmatprep.subr.mxu0 0.0
    %3677 = vmatpush1.xpose.msra.mxu0 0.0
    %3678 = vmatprep.subr.mxu0 0.0
    %3679 = vmatpush1.xpose.msra.mxu0 0.0
    %3680 = vmatprep.subr.mxu0 0.0
    %3681 = vmatpush1.xpose.msra.mxu0 0.0
    %3682 = vmatprep.subr.mxu0 0.0
    %3683 = vmatpush1.xpose.msra.mxu0 0.0
    %3684 = vmatprep.subr.mxu0 0.0
    %3685 = vmatpush1.xpose.msra.mxu0 0.0
    %3686 = vmatprep.subr.mxu0 0.0
    %3687 = vmatpush1.xpose.msra.mxu0 0.0
    %3688 = vmatprep.subr.mxu0 0.0
    %3689 = vmatpush1.xpose.msra.mxu0 0.0
    %3690 = vmatprep.mubr.f32.mxu0 0.0
    %3691 = vmatmul.mubr.f32.gmra.mrb[0].mxu0 %v3618
    %v3692 = vpop.f32.mrb[0].mxu0
    %v3693 = vadd.f32 0.0, %v3692
    %v3694 = vpop.f32.mrb[0].mxu0
    %3695 = vmatprep.mubr.f32.mxu0 0.0
    %3696 = vmatmul.mubr.f32.gmra.mrb[0].mxu0 %v3620
    %v3697 = vpop.f32.mrb[0].mxu0
    %v3698 = vadd.f32 0.0, %v3697
    %v3699 = vpop.f32.mrb[0].mxu0
    %3700 = vdwg.mxu0
    %v3701 = vsel %vm2144, %v3693, -1e+30
    %v3702 = vsel %vm2145, %v3698, -1e+30
    %v3703 = vsel %vm357, %v3701, -inf
    %3704 = vmax.xlane.f32.xlu0 %v3703
    %v3705 = vpop.xlane.xlu0 %3704
    %v3706 = vsel %vm357, %v3702, -inf
    %3707 = vmax.xlane.f32.xlu0 %v3706
    %v3708 = vpop.xlane.xlu0 %3707
    %v3709 = vsub.f32 %v3701, %v3705
    %v3710 = vsub.f32 %v3702, %v3708
    %v3711 = vmul.f32 %v3709, 1.442695
    %v3712 = vpow.pop %v3711
    %v3713 = vmul.f32 %v3710, 1.442695
    %v3714 = vpow.pop %v3713
    %v3715 = vmul.f32 %v2031, %v3712
    %v3716 = vmul.f32 %v2032, %v3714
    %v3717 = vsel %vm357, %v3715, 0.0
    %3718 = vadd.xlane.f32.xlu0 %v3717
    %v3719 = vpop.xlane.xlu0 %3718
    %v3720 = vsel %vm357, %v3716, 0.0
    %3721 = vadd.xlane.f32.xlu0 %v3720
    %v3722 = vpop.xlane.xlu0 %3721
    %v3723 = vmul.f32 %v3719, 8.0
    %v3724 = vmul.f32 %v3722, 8.0
    %v3725 = vrcp.pop %v3723
    %v3726 = vrcp.pop %v3724
    %v3727 = vmul.f32 %v3715, %v3725
    %v3728 = vmul.f32 %v3716, %v3726
    %3729 = vrot.lane.b32.xlu0 %v2136, 72
    %v3730 = vpop.permute.xlu0 %3729
    %3731 = vrot.lane.b32.xlu0 %v2142, 72
    %v3732 = vpop.permute.xlu0 %3731
    %v3736 = vsel %vm357, %v3727, 0
    %v3739 = vsel %vm357, %v3728, 0
    %3741 = vmatprep.subr.mxu0 0.0
    %3742 = vmatpush1.msra.mxu0 %v3730
    %3743 = vmatprep.subr.mxu0 0.0
    %3744 = vmatpush1.msra.mxu0 %v3732
    %3745 = vmatprep.subr.mxu0 0.0
    %3746 = vmatpush1.msra.mxu0 0.0
    %3747 = vmatprep.subr.mxu0 0.0
    %3748 = vmatpush1.msra.mxu0 0.0
    %3749 = vmatprep.subr.mxu0 0.0
    %3750 = vmatpush1.msra.mxu0 0.0
    %3751 = vmatprep.subr.mxu0 0.0
    %3752 = vmatpush1.msra.mxu0 0.0
    %3753 = vmatprep.subr.mxu0 0.0
    %3754 = vmatpush1.msra.mxu0 0.0
    %3755 = vmatprep.subr.mxu0 0.0
    %3756 = vmatpush1.msra.mxu0 0.0
    %3757 = vmatprep.subr.mxu0 0.0
    %3758 = vmatpush1.msra.mxu0 0.0
    %3759 = vmatprep.subr.mxu0 0.0
    %3760 = vmatpush1.msra.mxu0 0.0
    %3761 = vmatprep.subr.mxu0 0.0
    %3762 = vmatpush1.msra.mxu0 0.0
    %3763 = vmatprep.subr.mxu0 0.0
    %3764 = vmatpush1.msra.mxu0 0.0
    %3765 = vmatprep.subr.mxu0 0.0
    %3766 = vmatpush1.msra.mxu0 0.0
    %3767 = vmatprep.subr.mxu0 0.0
    %3768 = vmatpush1.msra.mxu0 0.0
    %3769 = vmatprep.subr.mxu0 0.0
    %3770 = vmatpush1.msra.mxu0 0.0
    %3771 = vmatprep.subr.mxu0 0.0
    %3772 = vmatpush1.msra.mxu0 0.0
    %3773 = vmatprep.subr.mxu0 0.0
    %3774 = vmatpush1.msra.mxu0 0.0
    %3775 = vmatprep.subr.mxu0 0.0
    %3776 = vmatpush1.msra.mxu0 0.0
    %3777 = vmatprep.subr.mxu0 0.0
    %3778 = vmatpush1.msra.mxu0 0.0
    %3779 = vmatprep.subr.mxu0 0.0
    %3780 = vmatpush1.msra.mxu0 0.0
    %3781 = vmatprep.subr.mxu0 0.0
    %3782 = vmatpush1.msra.mxu0 0.0
    %3783 = vmatprep.subr.mxu0 0.0
    %3784 = vmatpush1.msra.mxu0 0.0
    %3785 = vmatprep.subr.mxu0 0.0
    %3786 = vmatpush1.msra.mxu0 0.0
    %3787 = vmatprep.subr.mxu0 0.0
    %3788 = vmatpush1.msra.mxu0 0.0
    %3789 = vmatprep.subr.mxu0 0.0
    %3790 = vmatpush1.msra.mxu0 0.0
    %3791 = vmatprep.subr.mxu0 0.0
    %3792 = vmatpush1.msra.mxu0 0.0
    %3793 = vmatprep.subr.mxu0 0.0
    %3794 = vmatpush1.msra.mxu0 0.0
    %3795 = vmatprep.subr.mxu0 0.0
    %3796 = vmatpush1.msra.mxu0 0.0
    %3797 = vmatprep.subr.mxu0 0.0
    %3798 = vmatpush1.msra.mxu0 0.0
    %3799 = vmatprep.subr.mxu0 0.0
    %3800 = vmatpush1.msra.mxu0 0.0
    %3801 = vmatprep.subr.mxu0 0.0
    %3802 = vmatpush1.msra.mxu0 0.0
    %3803 = vmatprep.subr.mxu0 0.0
    %3804 = vmatpush1.msra.mxu0 0.0
    %3805 = vmatprep.mubr.f32.mxu0 0.0
    %3806 = vmatmul.mubr.f32.gmra.mrb[0].mxu0 %v3736
    %v3807 = vpop.f32.mrb[0].mxu0
    %v3808 = vadd.f32 0.0, %v3807
    %v3809 = vpop.f32.mrb[0].mxu0
    %3810 = vmatprep.mubr.f32.mxu0 0.0
    %3811 = vmatmul.mubr.f32.gmra.mrb[0].mxu0 %v3739
    %v3812 = vpop.f32.mrb[0].mxu0
    %v3813 = vadd.f32 0.0, %v3812
    %v3814 = vpop.f32.mrb[0].mxu0
    %3815 = vdwg.mxu0
    %v3816 = vmul.f32 %v3719, %v3725
    %v3817 = vmul.f32 %v3722, %v3726
    %v3818 = vadd.f32 %v3608, %v3816
    %v3819 = vadd.f32 %v3609, %v3817
    %3822 = vrot.lane.b32.xlu0 %v2548, 8
    %v3823 = vpop.permute.xlu0 %3822
    %3824 = vrot.lane.b32.xlu0 %v2553, 8
    %v3825 = vpop.permute.xlu0 %3824
    %3830 = vrot.lane.b32.xlu0 %v2758, 16
    %v3831 = vpop.permute.xlu0 %3830
    %3832 = vrot.lane.b32.xlu0 %v2763, 16
    %v3833 = vpop.permute.xlu0 %3832
    %3838 = vrot.lane.b32.xlu0 %v2968, 24
    %v3839 = vpop.permute.xlu0 %3838
    %3840 = vrot.lane.b32.xlu0 %v2973, 24
    %v3841 = vpop.permute.xlu0 %3840
    %3846 = vrot.lane.b32.xlu0 %v3178, 32
    %v3847 = vpop.permute.xlu0 %3846
    %3848 = vrot.lane.b32.xlu0 %v3183, 32
    %v3849 = vpop.permute.xlu0 %3848
    %3854 = vrot.lane.b32.xlu0 %v3388, 40
    %v3855 = vpop.permute.xlu0 %3854
    %3856 = vrot.lane.b32.xlu0 %v3393, 40
    %v3857 = vpop.permute.xlu0 %3856
    %3862 = vrot.lane.b32.xlu0 %v3598, 48
    %v3863 = vpop.permute.xlu0 %3862
    %3864 = vrot.lane.b32.xlu0 %v3603, 48
    %v3865 = vpop.permute.xlu0 %3864
    %3870 = vrot.lane.b32.xlu0 %v3808, 56
    %v3871 = vpop.permute.xlu0 %3870
    %3872 = vrot.lane.b32.xlu0 %v3813, 56
    %v3873 = vpop.permute.xlu0 %3872
    %v3876 = vsel %vm271, %v2336, %v3823
    %v3877 = vsel %vm271, %v2341, %v3825
    %v3878 = vsel %vm357, %v3876, %v3831
    %v3879 = vsel %vm357, %v3877, %v3833
    %v3880 = vsel %vm1969, %v3878, %v3839
    %v3881 = vsel %vm1969, %v3879, %v3841
    %v3882 = vsel %vm1972, %v3880, %v3847
    %v3883 = vsel %vm1972, %v3881, %v3849
    %v3884 = vsel %vm1975, %v3882, %v3855
    %v3885 = vsel %vm1975, %v3883, %v3857
    %v3886 = vsel %vm1978, %v3884, %v3863
    %v3887 = vsel %vm1978, %v3885, %v3865
    %v3888 = vsel %vm1981, %v3886, %v3871
    %v3889 = vsel %vm1981, %v3887, %v3873
    %v3890 = vld [vmem:[%s11] sm:$0x1]
    %v3891 = vld [vmem:[%s12] sm:$0x1]
    %v3892 = vadd.f32 %v3888, %v2029
    %v3893 = vadd.f32 %v3889, %v2030
    %v3894 = vsel %vm179, %v3892, 0.0
    %3895 = vadd.xlane.f32.xlu0 %v3894
    %v3896 = vpop.xlane.xlu0 %3895
    %v3897 = vsel %vm179, %v3893, 0.0
    %3898 = vadd.xlane.f32.xlu0 %v3897
    %v3899 = vpop.xlane.xlu0 %3898
    %v3900 = vmul.f32 %v3896, %v1994
    %v3901 = vmul.f32 %v3899, %v1994
    %v3902 = vsub.f32 %v3892, %v3900
    %v3903 = vsub.f32 %v3893, %v3901
    %v3904 = vmul.f32 %v3902, %v3902
    %v3905 = vmul.f32 %v3903, %v3903
    %v3906 = vsel %vm179, %v3904, 0.0
    %3907 = vadd.xlane.f32.xlu0 %v3906
    %v3908 = vpop.xlane.xlu0 %3907
    %v3909 = vsel %vm179, %v3905, 0.0
    %3910 = vadd.xlane.f32.xlu0 %v3909
    %v3911 = vpop.xlane.xlu0 %3910
    %v3912 = vmul.f32 %v3908, %v1994
    %v3913 = vmul.f32 %v3911, %v1994
    %v3914 = vadd.f32 %v3912, 1e-05
    %v3915 = vadd.f32 %v3913, 1e-05
    %v3916 = vrsqrt.pop %v3914
    %v3917 = vrsqrt.pop %v3915
    %v3918 = vmul.f32 %v3902, %v3916
    %v3919 = vmul.f32 %v3903, %v3917
    %v3921 = vlaneseq
    %v3922 = vshrl.u32 %v3921, 7
    %v3923 = vsub.s32 0, %v3922
    %v3924 = vrot.slane %v3890, %v3923
    %v3926 = vmul.f32 %v3918, %v3924
    %v3927 = vmul.f32 %v3919, %v3924
    %v3929 = vlaneseq
    %v3930 = vshrl.u32 %v3929, 7
    %v3931 = vsub.s32 0, %v3930
    %v3932 = vrot.slane %v3891, %v3931
    %v3934 = vadd.f32 %v3926, %v3932
    %v3935 = vadd.f32 %v3927, %v3932
    %3936 = vst.msk [vmem:[#allocation2] sm:$0xff] %vm179, %v3934
    %3937 = vst.msk [vmem:[#allocation2 + $0x8] sm:$0xff] %vm179, %v3935
    %vm3938 = vcmask 7168
    %3939 = vst.msk [vmem:[%s14] sm:$0xff] %vm3938, %v3818
    %3940 = vst.msk [vmem:[%s14 + $0x8] sm:$0xff] %vm3938, %v3819
    // Predicated region
    $region54: #{local_transformer_encoder.1} parent=1 // pred_check
      _
    $region55: #{local_transformer_encoder.1} parent=1 // pred_check_branch
      %3942 = sbr.rel (0) target = $region57
    $region56: #{local_transformer_encoder.1} parent=1 // pred_region
      %s3944 = ssub.s32 256, 256
      %3945 = vsyncadd [#allocation3], %s3944
      %s3946 = sshll.u32 [#allocation2], 4
      %s3947 = int_to_ptr.vmem [resolvable:$true] %s3946
      %3952 = dma.vmem_to_hbm [thread:$0]  %s3947, 256, %s13, [#allocation3], 128, 128, 8
    $region57: #{local_transformer_encoder.1} parent=1 // pred_fallthru
      _
    // Predicated region
    $region58: #{local_transformer_encoder.1} parent=1 // pred_check
      _
    $region59: #{local_transformer_encoder.1} parent=1 // pred_check_branch
      %3954 = sbr.rel (0) target = $region61
    $region60: #{local_transformer_encoder.1} parent=1 // pred_region
      _
    $region61: #{local_transformer_encoder.1} parent=1 // pred_fallthru
      _
    // Predicated region
    $region62: #{local_transformer_encoder.1} parent=1 // pred_check
      _
    $region63: #{local_transformer_encoder.1} parent=1 // pred_check_branch
      %3956 = sbr.rel (0) target = $region65
    $region64: #{local_transformer_encoder.1} parent=1 // pred_region
      %3957 = dma.done [#allocation3], 256
    $region65: #{local_transformer_encoder.1} parent=1 // pred_fallthru
      _
    // Predicated region
    $region66: #{local_transformer_encoder.1} parent=1 // pred_check
      _
    $region67: #{local_transformer_encoder.1} parent=1 // pred_check_branch
      %3959 = sbr.rel (0) target = $region69
    $region68: #{local_transformer_encoder.1} parent=1 // pred_region
      _
    $region69: #{local_transformer_encoder.1} parent=1 // pred_fallthru
      _
    %3960 = vsyncpa [#allocation3], 1

</llo_original>
